<compile_context>
chip_gen: v7x
topology: tpu7x:2x2x1
jax: 0.10.0
libtpu: 0.0.40
codegen_flags: <defaults>
</compile_context>

<pallas_src>
import functools

import jax
import jax.numpy as jnp
from jax import lax
from jax.experimental import pallas as pl
from jax.experimental.pallas import tpu as pltpu


def _round_up(x, m):
    return ((x + m - 1) // m) * m


def _cdiv(a, b):
    return -(-a // b)


# ----------------------------------------------------------------------------
# Fused Pallas kernel: num_layers GRU stack + linear head, chunked over time.
# ----------------------------------------------------------------------------
def _gru_stack_kernel(x_ref, h0_ref, *rest,
                      num_layers, Tc, Bp, Hp, T_real, T_pad, mm_dtype, unroll):
    """One chunk of Tc timesteps for the whole GRU stack + linear head.

    rest = (w_ih_0, w_hh_0, b_ih_0, b_hh_0, ..., lin_w, lin_b,   # inputs
            out_ref, hT_ref,                                      # outputs
            h_scr, y_scr, g_scr)                                  # scratch
    """
    H3 = 3 * Hp
    n_layer = 4 * num_layers
    layer_refs = rest[:n_layer]
    lin_w_ref, lin_b_ref, out_ref, hT_ref, h_scr, y_scr, g_scr = rest[n_layer:]

    c = pl.program_id(0)
    last_chunk = pl.num_programs(0) - 1

    # Initialize the persistent (VMEM-resident) hidden state on the first chunk.
    @pl.when(c == 0)
    def _():
        h_scr[...] = h0_ref[...]

    for l in range(num_layers):
        w_ih_ref, w_hh_ref, b_ih_ref, b_hh_ref = layer_refs[4 * l: 4 * l + 4]

        # Input projection for the WHOLE chunk in one big MXU matmul.
        # Operands in mm_dtype (bf16 by default), accumulation in f32.
        if l == 0:
            inp = x_ref[...]                      # already mm_dtype
        else:
            inp = y_scr[...].astype(mm_dtype)
        g_scr[...] = (jnp.dot(inp, w_ih_ref[...],
                              preferred_element_type=jnp.float32)
                      + b_ih_ref[...])

        # Hoist loop-invariant weight/bias loads out of the time loop.
        w_hh = w_hh_ref[...]                      # f32: recurrence precision
        b_hh = jnp.broadcast_to(b_hh_ref[...], (Bp, H3))

        def step(t, h, _w_hh=w_hh, _b_hh=b_hh):
            row = pl.multiple_of(t * Bp, Bp)
            gi = g_scr[pl.ds(row, Bp), :]                     # (Bp, 3*Hp)
            gh = jnp.dot(h, _w_hh,
                         preferred_element_type=jnp.float32) + _b_hh
            # PyTorch gate order: r, z, n.  Gate blocks are 128-lane aligned,
            # so all slices below are free vreg views.  r and z share one
            # fused sigmoid over the first 2*Hp lanes (single EUP push).
            rz = jax.nn.sigmoid(gi[:, :2 * Hp] + gh[:, :2 * Hp])
            r = rz[:, :Hp]
            z = rz[:, Hp:]
            n = jnp.tanh(gi[:, 2 * Hp:] + r * gh[:, 2 * Hp:])
            h_new = n + z * (h - n)                           # == (1-z)*n + z*h
            y_scr[pl.ds(row, Bp), :] = h_new
            return h_new

        h_final = lax.fori_loop(0, Tc, step, h_scr[l], unroll=unroll)

        if T_pad == T_real:
            h_scr[l] = h_final
        else:
            # Padded tail lives only in the last chunk.  Instead of a per-step
            # select, carry h_final normally and, on the last chunk, recover
            # the state at the last REAL timestep from y_scr.
            tail_row = ((T_real - 1) % Tc) * Bp

            @pl.when(c != last_chunk)
            def _():
                h_scr[l] = h_final

            @pl.when(c == last_chunk)
            def _():
                h_scr[l] = y_scr[pl.ds(tail_row, Bp), :]

    # Fused linear head over the whole chunk (lane-dense, 128-padded output).
    logits = (jnp.dot(y_scr[...].astype(mm_dtype), lin_w_ref[...],
                      preferred_element_type=jnp.float32)
              + lin_b_ref[...])
    out_ref[...] = logits.astype(out_ref.dtype)

    # Final hidden state: write once, on the last chunk only.
    @pl.when(c == last_chunk)
    def _():
        hT_ref[...] = h_scr[...].astype(hT_ref.dtype)


# ----------------------------------------------------------------------------
# Wrapper
# ----------------------------------------------------------------------------
def _pad_gru_weight(w, in_real, in_p, H, Hp, dtype):
    """torch-layout (3H, in_real) -> (in_p, 3*Hp) with per-gate column pad."""
    out = jnp.zeros((in_p, 3 * Hp), dtype)
    for g in range(3):
        out = out.at[:in_real, g * Hp:g * Hp + H].set(
            w[g * H:(g + 1) * H, :].T.astype(dtype))
    return out


def _pad_gate_bias(b, H, Hp):
    """(1, 3H) -> (1, 3*Hp) with per-gate column pad (f32)."""
    out = jnp.zeros((1, 3 * Hp), jnp.float32)
    for g in range(3):
        out = out.at[:, g * Hp:g * Hp + H].set(b[:, g * H:(g + 1) * H])
    return out


@functools.partial(jax.jit,
                   static_argnames=("gru_num_layers", "matmul_dtype",
                                    "time_chunk"))
def gru_forward(params, x_ids, h=None, gru_num_layers=2,
                matmul_dtype=jnp.bfloat16, time_chunk=None):
    """Equivalent of GRU.forward(x, h). dropout keep_prob=1.0 -> identity."""
    T, B = x_ids.shape
    E = params["embedding"].shape[-1]
    H = params["w_hh_l0"].shape[-1]
    L = params["lin_w"].shape[0]

    Bp = _round_up(max(B, 1), 8)                  # sublane-aligned batch
    Hp = _round_up(max(H, 1), 128)                # lane-aligned gate blocks
    Lp = _round_up(max(L, 1), 128)                # lane-dense head output
    mm_bytes = 2 if matmul_dtype == jnp.bfloat16 else 4

    # ---- Pick the time-chunk size Tc (tunable). Target ~256 MXU rows. ------
    if time_chunk is not None:
        Tc = max(1, int(time_chunk))
    else:
        target_rows = 256
        n_chunks = max(1, _cdiv(T, max(1, target_rows // Bp)))
        Tc = _cdiv(T, n_chunks)
        # VMEM guard: per-chunk scratch + logits footprint under ~12 MiB.
        while Tc > 1 and Tc * Bp * (4 * Hp + Lp) * 4 > (12 << 20):
            n_chunks += 1
            Tc = _cdiv(T, n_chunks)
    num_chunks = _cdiv(T, Tc)
    T_pad = num_chunks * Tc

    # ---- Inputs: embedding gather (plain-JAX glue) + fusable padding. ------
    # TODO(synk): fuse the gather into the kernel via scalar-prefetched ids.
    emb = jnp.take(params["embedding"].astype(matmul_dtype), x_ids, axis=0)
    emb_p = jnp.pad(emb, ((0, T_pad - T), (0, Bp - B), (0, 0)))
    emb2d = emb_p.reshape(T_pad * Bp, E)

    if h is None:
        h = jnp.zeros((gru_num_layers, B, H), jnp.float32)
    h_p = jnp.pad(h.astype(jnp.float32),
                  ((0, 0), (0, Bp - B), (0, Hp - H)))

    # ---- Pre-transpose / gate-pad weights once (outside the kernel). -------
    layer_args = []
    layer_specs = []
    in_real, in_p = E, E
    for l in range(gru_num_layers):
        layer_args += [
            _pad_gru_weight(params[f"w_ih_l{l}"], in_real, in_p, H, Hp,
                            matmul_dtype),                      # (in_p, 3Hp)
            _pad_gru_weight(params[f"w_hh_l{l}"], H, Hp, H, Hp,
                            jnp.float32),                       # (Hp, 3Hp) f32
            _pad_gate_bias(params[f"b_ih_l{l}"], H, Hp),        # (1, 3Hp)
            _pad_gate_bias(params[f"b_hh_l{l}"], H, Hp),        # (1, 3Hp)
        ]
        layer_specs += [
            pl.BlockSpec((in_p, 3 * Hp), lambda c: (0, 0)),
            pl.BlockSpec((Hp, 3 * Hp), lambda c: (0, 0)),
            pl.BlockSpec((1, 3 * Hp), lambda c: (0, 0)),
            pl.BlockSpec((1, 3 * Hp), lambda c: (0, 0)),
        ]
        in_real, in_p = H, Hp

    lin_w_t = jnp.zeros((Hp, Lp), matmul_dtype).at[:H, :L].set(
        params["lin_w"].T.astype(matmul_dtype))
    lin_b_p = jnp.zeros((1, Lp), jnp.float32).at[:, :L].set(params["lin_b"])

    # ---- Explicit VMEM budget (double-buffered ins/outs + scratch). --------
    rows = Tc * Bp
    vmem = 0
    vmem += 2 * rows * E * mm_bytes                       # x chunk
    vmem += 2 * gru_num_layers * Bp * Hp * 4              # h0
    in_sz = E
    for _ in range(gru_num_layers):
        vmem += 2 * (in_sz * 3 * Hp * mm_bytes            # w_ih
                     + Hp * 3 * Hp * 4                    # w_hh (f32)
                     + 2 * 8 * 3 * Hp * 4)                # biases (padded rows)
        in_sz = Hp
    vmem += 2 * (Hp * Lp * mm_bytes + 8 * Lp * 4)         # head
    vmem += 2 * rows * Lp * 4                             # logits out chunk
    vmem += 2 * gru_num_layers * Bp * Hp * 4              # hT out
    vmem += (gru_num_layers * Bp * Hp + rows * Hp + rows * 3 * Hp) * 4
    vmem_limit = min(max(int(vmem * 1.4) + (4 << 20), 32 << 20), 100 << 20)
    # TODO(synk): on v7x (64 MiB physical VMEM) large H may require lowering
    # Tc / single-buffering the invariant weights to stay under budget.

    kernel = functools.partial(
        _gru_stack_kernel,
        num_layers=gru_num_layers, Tc=Tc, Bp=Bp, Hp=Hp,
        T_real=T, T_pad=T_pad, mm_dtype=matmul_dtype,
        unroll=min(Tc, 8))

    logits2d, hT = pl.pallas_call(
        kernel,
        out_shape=(jax.ShapeDtypeStruct((T_pad * Bp, Lp), jnp.float32),
                   jax.ShapeDtypeStruct((gru_num_layers, Bp, Hp), jnp.float32)),
        grid_spec=pltpu.PrefetchScalarGridSpec(
            num_scalar_prefetch=0,
            grid=(num_chunks,),
            in_specs=[pl.BlockSpec((Tc * Bp, E), lambda c: (c, 0)),
                      pl.BlockSpec((gru_num_layers, Bp, Hp),
                                   lambda c: (0, 0, 0))]
                     + layer_specs
                     + [pl.BlockSpec((Hp, Lp), lambda c: (0, 0)),
                        pl.BlockSpec((1, Lp), lambda c: (0, 0))],
            out_specs=[pl.BlockSpec((Tc * Bp, Lp), lambda c: (c, 0)),
                       pl.BlockSpec((gru_num_layers, Bp, Hp),
                                    lambda c: (0, 0, 0))],
            scratch_shapes=[
                pltpu.VMEM((gru_num_layers, Bp, Hp), jnp.float32),  # h state
                pltpu.VMEM((Tc * Bp, Hp), jnp.float32),             # layer out
                pltpu.VMEM((Tc * Bp, 3 * Hp), jnp.float32),         # gate proj
            ],
        ),
        compiler_params=pltpu.CompilerParams(
            dimension_semantics=("arbitrary",),
            vmem_limit_bytes=vmem_limit),
    )(emb2d, h_p, *layer_args, lin_w_t, lin_b_p)

    logits = logits2d.reshape(T_pad, Bp, Lp)[:T, :B, :L]
    hidden = hT[:, :B, :H]
    return logits, hidden


def init_params(key, vocabulary_size, embedding_size, num_langs,
                gru_num_hidden, gru_num_layers):
    """Deterministic parameter init (shapes match torch module __init__)."""
    keys = jax.random.split(key, 2 + 4 * gru_num_layers + 2)
    k = iter(keys)
    H = gru_num_hidden
    bound = 1.0 / jnp.sqrt(jnp.float32(H))
    params = {
        "embedding": jax.random.normal(next(k), (vocabulary_size, embedding_size),
                                       jnp.float32),
    }
    in_sz = embedding_size
    for l in range(gru_num_layers):
        params[f"w_ih_l{l}"] = jax.random.uniform(next(k), (3 * H, in_sz),
                                                  jnp.float32, -bound, bound)
        params[f"w_hh_l{l}"] = jax.random.uniform(next(k), (3 * H, H),
                                                  jnp.float32, -bound, bound)
        params[f"b_ih_l{l}"] = jax.random.uniform(next(k), (1, 3 * H),
                                                  jnp.float32, -bound, bound)
        params[f"b_hh_l{l}"] = jax.random.uniform(next(k), (1, 3 * H),
                                                  jnp.float32, -bound, bound)
        in_sz = H
    params["lin_w"] = jax.random.uniform(next(k), (num_langs, H),
                                         jnp.float32, -bound, bound)
    params["lin_b"] = jax.random.uniform(next(k), (1, num_langs),
                                         jnp.float32, -bound, bound)
    return params


# ----------------------------------------------------------------------------
# Pure-JAX reference (sanity check)
# ----------------------------------------------------------------------------
def gru_forward_ref(params, x_ids, h=None, gru_num_layers=2):
    emb = jnp.take(params["embedding"], x_ids, axis=0)
    T, B, _ = emb.shape
    H = params["w_hh_l0"].shape[-1]
    if h is None:
        h = jnp.zeros((gru_num_layers, B, H), jnp.float32)

    def make_step(w_ih, w_hh, b_ih, b_hh):
        def step(h_prev, x_t):
            gi = x_t @ w_ih.T + b_ih
            gh = h_prev @ w_hh.T + b_hh
            i_r, i_z, i_n = jnp.split(gi, 3, axis=-1)
            h_r, h_z, h_n = jnp.split(gh, 3, axis=-1)
            r = jax.nn.sigmoid(i_r + h_r)
            z = jax.nn.sigmoid(i_z + h_z)
            n = jnp.tanh(i_n + r * h_n)
            h_new = (1.0 - z) * n + z * h_prev
            return h_new, h_new
        return step

    layer_in = emb
    h_finals = []
    for l in range(gru_num_layers):
        step = make_step(params[f"w_ih_l{l}"], params[f"w_hh_l{l}"],
                         params[f"b_ih_l{l}"], params[f"b_hh_l{l}"])
        h_T, outs = lax.scan(step, h[l], layer_in)
        layer_in = outs
        h_finals.append(h_T)
    hidden = jnp.stack(h_finals, axis=0)
    out = layer_in @ params["lin_w"].T + params["lin_b"]
    return out, hidden


# ----------------------------------------------------------------------------
# Main
# ----------------------------------------------------------------------------
if __name__ == "__main__":
    # Small, shape-consistent configuration.
    T, B = 8, 4                 # seq length, batch
    vocabulary_size = 50
    embedding_size = 16
    num_langs = 5
    gru_num_hidden = 32
    gru_num_layers = 2

    key = jax.random.PRNGKey(0)
    k_param, k_ids, k_ids2 = jax.random.split(key, 3)
    params = init_params(k_param, vocabulary_size, embedding_size, num_langs,
                         gru_num_hidden, gru_num_layers)
    x_ids = jax.random.randint(k_ids, (T, B), 0, vocabulary_size, jnp.int32)

    # 1) Default path: bf16 MXU operands (f32 accumulation / state math).
    out, hidden = gru_forward(params, x_ids, None,
                              gru_num_layers=gru_num_layers)
    jax.block_until_ready((out, hidden))
    out_ref, hidden_ref = gru_forward_ref(params, x_ids, None,
                                          gru_num_layers=gru_num_layers)
    assert out.shape == (T, B, num_langs)
    assert hidden.shape == (gru_num_layers, B, gru_num_hidden)
    assert jnp.allclose(out, out_ref, atol=3e-2, rtol=3e-2)
    assert jnp.allclose(hidden, hidden_ref, atol=3e-2, rtol=3e-2)

    # 2) f32 MXU path: tight check of the kernel structure itself.
    out32, hid32 = gru_forward(params, x_ids, None,
                               gru_num_layers=gru_num_layers,
                               matmul_dtype=jnp.float32)
    jax.block_until_ready((out32, hid32))
    assert jnp.allclose(out32, out_ref, atol=1e-3, rtol=1e-3)
    assert jnp.allclose(hid32, hidden_ref, atol=1e-3, rtol=1e-3)

    # 3) Padded-tail time chunking path (T not a multiple of Tc).
    T2 = 11
    x_ids2 = jax.random.randint(k_ids2, (T2, B), 0, vocabulary_size, jnp.int32)
    out2, hid2 = gru_forward(params, x_ids2, None,
                             gru_num_layers=gru_num_layers,
                             matmul_dtype=jnp.float32, time_chunk=4)
    jax.block_until_ready((out2, hid2))
    out2_ref, hid2_ref = gru_forward_ref(params, x_ids2, None,
                                         gru_num_layers=gru_num_layers)
    assert jnp.allclose(out2, out2_ref, atol=1e-3, rtol=1e-3)
    assert jnp.allclose(hid2, hid2_ref, atol=1e-3, rtol=1e-3)

    print("KERNEL_OK")
</pallas_src>

<mosaic_0001>
module attributes {stable_mosaic.version = 11 : i64} {
  func.func @_gru_stack_kernel(%arg0: i32, %arg1: memref<64x16xbf16, #tpu.memory_space<vmem>>, %arg2: memref<2x8x128xf32, #tpu.memory_space<vmem>>, %arg3: memref<16x384xbf16, #tpu.memory_space<vmem>>, %arg4: memref<128x384xf32, #tpu.memory_space<vmem>>, %arg5: memref<1x384xf32, #tpu.memory_space<vmem>>, %arg6: memref<1x384xf32, #tpu.memory_space<vmem>>, %arg7: memref<128x384xbf16, #tpu.memory_space<vmem>>, %arg8: memref<128x384xf32, #tpu.memory_space<vmem>>, %arg9: memref<1x384xf32, #tpu.memory_space<vmem>>, %arg10: memref<1x384xf32, #tpu.memory_space<vmem>>, %arg11: memref<128x128xbf16, #tpu.memory_space<vmem>>, %arg12: memref<1x128xf32, #tpu.memory_space<vmem>>, %arg13: memref<64x128xf32, #tpu.memory_space<vmem>>, %arg14: memref<2x8x128xf32, #tpu.memory_space<vmem>>, %arg15: memref<2x8x128xf32, #tpu.memory_space<vmem>>, %arg16: memref<64x128xf32, #tpu.memory_space<vmem>>, %arg17: memref<64x384xf32, #tpu.memory_space<vmem>>) attributes {dimension_semantics = [#tpu.dimension_semantics<arbitrary>], iteration_bounds = array<i64: 1>, scalar_prefetch = 0 : i64, scratch_operands = 3 : i64, tpu.core_type = #tpu.core_type<tc>, window_params = [{transform_indices = @transform_0, window_bounds = array<i64: 64, 16>}, {pipeline_mode = #tpu.pipeline_mode<synchronous>, transform_indices = @transform_1, window_bounds = array<i64: 2, 8, 128>}, {pipeline_mode = #tpu.pipeline_mode<synchronous>, transform_indices = @transform_2, window_bounds = array<i64: 16, 384>}, {pipeline_mode = #tpu.pipeline_mode<synchronous>, transform_indices = @transform_3, window_bounds = array<i64: 128, 384>}, {pipeline_mode = #tpu.pipeline_mode<synchronous>, transform_indices = @transform_4, window_bounds = array<i64: 1, 384>}, {pipeline_mode = #tpu.pipeline_mode<synchronous>, transform_indices = @transform_5, window_bounds = array<i64: 1, 384>}, {pipeline_mode = #tpu.pipeline_mode<synchronous>, transform_indices = @transform_6, window_bounds = array<i64: 128, 384>}, {pipeline_mode = #tpu.pipeline_mode<synchronous>, transform_indices = @transform_7, window_bounds = array<i64: 128, 384>}, {pipeline_mode = #tpu.pipeline_mode<synchronous>, transform_indices = @transform_8, window_bounds = array<i64: 1, 384>}, {pipeline_mode = #tpu.pipeline_mode<synchronous>, transform_indices = @transform_9, window_bounds = array<i64: 1, 384>}, {pipeline_mode = #tpu.pipeline_mode<synchronous>, transform_indices = @transform_10, window_bounds = array<i64: 128, 128>}, {pipeline_mode = #tpu.pipeline_mode<synchronous>, transform_indices = @transform_11, window_bounds = array<i64: 1, 128>}, {transform_indices = @transform_12, window_bounds = array<i64: 64, 128>}, {pipeline_mode = #tpu.pipeline_mode<synchronous>, transform_indices = @transform_13, window_bounds = array<i64: 2, 8, 128>}]} {
    %c0_i32 = arith.constant 0 : i32
    %0 = arith.cmpi eq, %arg0, %c0_i32 : i32
    %1 = arith.extui %0 : i1 to i32
    %c0_i32_0 = arith.constant 0 : i32
    %2 = arith.cmpi ne, %1, %c0_i32_0 : i32
    scf.if %2 {
      %c0_137 = arith.constant 0 : index
      %c0_138 = arith.constant 0 : index
      %c0_139 = arith.constant 0 : index
      %463 = vector.load %arg2[%c0_137, %c0_138, %c0_139] : memref<2x8x128xf32, #tpu.memory_space<vmem>>, vector<2x8x128xf32>
      %c0_140 = arith.constant 0 : index
      %c0_141 = arith.constant 0 : index
      %c0_142 = arith.constant 0 : index
      %464 = vector.load %arg15[%c0_140, %c0_141, %c0_142] : memref<2x8x128xf32, #tpu.memory_space<vmem>>, vector<2x8x128xf32>
      tpu.vector_store %arg15[%c0_140, %c0_141, %c0_142], %463 {strides = array<i32>} : memref<2x8x128xf32, #tpu.memory_space<vmem>>, vector<2x8x128xf32>,
    } else {
    }
    %c0 = arith.constant 0 : index
    %c0_1 = arith.constant 0 : index
    %3 = vector.load %arg1[%c0, %c0_1] : memref<64x16xbf16, #tpu.memory_space<vmem>>, vector<64x16xbf16>
    %c0_2 = arith.constant 0 : index
    %c0_3 = arith.constant 0 : index
    %4 = vector.load %arg3[%c0_2, %c0_3] : memref<16x384xbf16, #tpu.memory_space<vmem>>, vector<16x384xbf16>
    %cst = arith.constant dense<0.000000e+00> : vector<64x384xf32>
    %5 = tpu.matmul %3, %4, %cst {dimension_numbers = #tpu.dot_dimension_numbers<[1], [0], [0], [1], [0, 0, 1, 1], [], []>} : vector<64x16xbf16>, vector<16x384xbf16>, vector<64x384xf32> -> vector<64x384xf32>
    %c0_4 = arith.constant 0 : index
    %c0_5 = arith.constant 0 : index
    %6 = vector.load %arg5[%c0_4, %c0_5] : memref<1x384xf32, #tpu.memory_space<vmem>>, vector<1x384xf32>
    %7 = vector.broadcast %6 : vector<1x384xf32> to vector<64x384xf32>
    %8 = arith.addf %5, %7 : vector<64x384xf32>
    %c0_6 = arith.constant 0 : index
    %c0_7 = arith.constant 0 : index
    %9 = vector.load %arg17[%c0_6, %c0_7] : memref<64x384xf32, #tpu.memory_space<vmem>>, vector<64x384xf32>
    tpu.vector_store %arg17[%c0_6, %c0_7], %8 {strides = array<i32>} : memref<64x384xf32, #tpu.memory_space<vmem>>, vector<64x384xf32>,
    %c0_8 = arith.constant 0 : index
    %c0_9 = arith.constant 0 : index
    %10 = vector.load %arg4[%c0_8, %c0_9] : memref<128x384xf32, #tpu.memory_space<vmem>>, vector<128x384xf32>
    %c0_10 = arith.constant 0 : index
    %c0_11 = arith.constant 0 : index
    %11 = vector.load %arg6[%c0_10, %c0_11] : memref<1x384xf32, #tpu.memory_space<vmem>>, vector<1x384xf32>
    %12 = vector.shape_cast %11 : vector<1x384xf32> to vector<1x384xf32>
    %13 = vector.broadcast %12 : vector<1x384xf32> to vector<8x384xf32>
    %c0_12 = arith.constant 0 : index
    %c0_13 = arith.constant 0 : index
    %c0_14 = arith.constant 0 : index
    %14 = vector.load %arg15[%c0_12, %c0_13, %c0_14] : memref<2x8x128xf32, #tpu.memory_space<vmem>>, vector<1x8x128xf32>
    %15 = vector.shape_cast %14 : vector<1x8x128xf32> to vector<8x128xf32>
    %c0_i32_15 = arith.constant 0 : i32
    %c8_i32 = arith.constant 8 : i32
    %16 = arith.muli %c0_i32_15, %c8_i32 : i32
    %17 = tpu.assume_multiple %16, 8 : i32
    %18 = arith.index_cast %17 : i32 to index
    %c0_16 = arith.constant 0 : index
    %19 = vector.load %arg17[%18, %c0_16] : memref<64x384xf32, #tpu.memory_space<vmem>>, vector<8x384xf32>
    %cst_17 = arith.constant dense<0.000000e+00> : vector<8x384xf32>
    %20 = tpu.matmul %15, %10, %cst_17 {dimension_numbers = #tpu.dot_dimension_numbers<[1], [0], [0], [1], [0, 0, 1, 1], [], []>} : vector<8x128xf32>, vector<128x384xf32>, vector<8x384xf32> -> vector<8x384xf32>
    %21 = arith.addf %20, %13 : vector<8x384xf32>
    %22 = vector.extract_strided_slice %19 {offsets = [0, 0], sizes = [8, 256], strides = [1, 1]} : vector<8x384xf32> to vector<8x256xf32>
    %23 = vector.extract_strided_slice %21 {offsets = [0, 0], sizes = [8, 256], strides = [1, 1]} : vector<8x384xf32> to vector<8x256xf32>
    %24 = arith.addf %22, %23 : vector<8x256xf32>
    %25 = arith.negf %24 : vector<8x256xf32>
    %26 = math.exp %25 : vector<8x256xf32>
    %cst_18 = arith.constant 1.000000e+00 : f32
    %27 = vector.broadcast %cst_18 : f32 to vector<8x256xf32>
    %28 = arith.addf %27, %26 : vector<8x256xf32>
    %29 = arith.divf %27, %28 : vector<8x256xf32>
    %30 = vector.extract_strided_slice %29 {offsets = [0, 0], sizes = [8, 128], strides = [1, 1]} : vector<8x256xf32> to vector<8x128xf32>
    %31 = vector.extract_strided_slice %29 {offsets = [0, 128], sizes = [8, 128], strides = [1, 1]} : vector<8x256xf32> to vector<8x128xf32>
    %32 = vector.extract_strided_slice %19 {offsets = [0, 256], sizes = [8, 128], strides = [1, 1]} : vector<8x384xf32> to vector<8x128xf32>
    %33 = vector.extract_strided_slice %21 {offsets = [0, 256], sizes = [8, 128], strides = [1, 1]} : vector<8x384xf32> to vector<8x128xf32>
    %34 = arith.mulf %30, %33 : vector<8x128xf32>
    %35 = arith.addf %32, %34 : vector<8x128xf32>
    %36 = math.tanh %35 : vector<8x128xf32>
    %37 = arith.subf %15, %36 : vector<8x128xf32>
    %38 = arith.mulf %31, %37 : vector<8x128xf32>
    %39 = arith.addf %36, %38 : vector<8x128xf32>
    %40 = arith.index_cast %17 : i32 to index
    %c0_19 = arith.constant 0 : index
    %41 = vector.load %arg16[%40, %c0_19] : memref<64x128xf32, #tpu.memory_space<vmem>>, vector<8x128xf32>
    tpu.vector_store %arg16[%40, %c0_19], %39 {strides = array<i32>} : memref<64x128xf32, #tpu.memory_space<vmem>>, vector<8x128xf32>,
    %c1_i32 = arith.constant 1 : i32
    %c8_i32_20 = arith.constant 8 : i32
    %42 = arith.muli %c1_i32, %c8_i32_20 : i32
    %43 = tpu.assume_multiple %42, 8 : i32
    %44 = arith.index_cast %43 : i32 to index
    %c0_21 = arith.constant 0 : index
    %45 = vector.load %arg17[%44, %c0_21] : memref<64x384xf32, #tpu.memory_space<vmem>>, vector<8x384xf32>
    %cst_22 = arith.constant dense<0.000000e+00> : vector<8x384xf32>
    %46 = tpu.matmul %39, %10, %cst_22 {dimension_numbers = #tpu.dot_dimension_numbers<[1], [0], [0], [1], [0, 0, 1, 1], [], []>} : vector<8x128xf32>, vector<128x384xf32>, vector<8x384xf32> -> vector<8x384xf32>
    %47 = arith.addf %46, %13 : vector<8x384xf32>
    %48 = vector.extract_strided_slice %45 {offsets = [0, 0], sizes = [8, 256], strides = [1, 1]} : vector<8x384xf32> to vector<8x256xf32>
    %49 = vector.extract_strided_slice %47 {offsets = [0, 0], sizes = [8, 256], strides = [1, 1]} : vector<8x384xf32> to vector<8x256xf32>
    %50 = arith.addf %48, %49 : vector<8x256xf32>
    %51 = arith.negf %50 : vector<8x256xf32>
    %52 = math.exp %51 : vector<8x256xf32>
    %cst_23 = arith.constant 1.000000e+00 : f32
    %53 = vector.broadcast %cst_23 : f32 to vector<8x256xf32>
    %54 = arith.addf %53, %52 : vector<8x256xf32>
    %55 = arith.divf %53, %54 : vector<8x256xf32>
    %56 = vector.extract_strided_slice %55 {offsets = [0, 0], sizes = [8, 128], strides = [1, 1]} : vector<8x256xf32> to vector<8x128xf32>
    %57 = vector.extract_strided_slice %55 {offsets = [0, 128], sizes = [8, 128], strides = [1, 1]} : vector<8x256xf32> to vector<8x128xf32>
    %58 = vector.extract_strided_slice %45 {offsets = [0, 256], sizes = [8, 128], strides = [1, 1]} : vector<8x384xf32> to vector<8x128xf32>
    %59 = vector.extract_strided_slice %47 {offsets = [0, 256], sizes = [8, 128], strides = [1, 1]} : vector<8x384xf32> to vector<8x128xf32>
    %60 = arith.mulf %56, %59 : vector<8x128xf32>
    %61 = arith.addf %58, %60 : vector<8x128xf32>
    %62 = math.tanh %61 : vector<8x128xf32>
    %63 = arith.subf %39, %62 : vector<8x128xf32>
    %64 = arith.mulf %57, %63 : vector<8x128xf32>
    %65 = arith.addf %62, %64 : vector<8x128xf32>
    %66 = arith.index_cast %43 : i32 to index
    %c0_24 = arith.constant 0 : index
    %67 = vector.load %arg16[%66, %c0_24] : memref<64x128xf32, #tpu.memory_space<vmem>>, vector<8x128xf32>
    tpu.vector_store %arg16[%66, %c0_24], %65 {strides = array<i32>} : memref<64x128xf32, #tpu.memory_space<vmem>>, vector<8x128xf32>,
    %c2_i32 = arith.constant 2 : i32
    %c8_i32_25 = arith.constant 8 : i32
    %68 = arith.muli %c2_i32, %c8_i32_25 : i32
    %69 = tpu.assume_multiple %68, 8 : i32
    %70 = arith.index_cast %69 : i32 to index
    %c0_26 = arith.constant 0 : index
    %71 = vector.load %arg17[%70, %c0_26] : memref<64x384xf32, #tpu.memory_space<vmem>>, vector<8x384xf32>
    %cst_27 = arith.constant dense<0.000000e+00> : vector<8x384xf32>
    %72 = tpu.matmul %65, %10, %cst_27 {dimension_numbers = #tpu.dot_dimension_numbers<[1], [0], [0], [1], [0, 0, 1, 1], [], []>} : vector<8x128xf32>, vector<128x384xf32>, vector<8x384xf32> -> vector<8x384xf32>
    %73 = arith.addf %72, %13 : vector<8x384xf32>
    %74 = vector.extract_strided_slice %71 {offsets = [0, 0], sizes = [8, 256], strides = [1, 1]} : vector<8x384xf32> to vector<8x256xf32>
    %75 = vector.extract_strided_slice %73 {offsets = [0, 0], sizes = [8, 256], strides = [1, 1]} : vector<8x384xf32> to vector<8x256xf32>
    %76 = arith.addf %74, %75 : vector<8x256xf32>
    %77 = arith.negf %76 : vector<8x256xf32>
    %78 = math.exp %77 : vector<8x256xf32>
    %cst_28 = arith.constant 1.000000e+00 : f32
    %79 = vector.broadcast %cst_28 : f32 to vector<8x256xf32>
    %80 = arith.addf %79, %78 : vector<8x256xf32>
    %81 = arith.divf %79, %80 : vector<8x256xf32>
    %82 = vector.extract_strided_slice %81 {offsets = [0, 0], sizes = [8, 128], strides = [1, 1]} : vector<8x256xf32> to vector<8x128xf32>
    %83 = vector.extract_strided_slice %81 {offsets = [0, 128], sizes = [8, 128], strides = [1, 1]} : vector<8x256xf32> to vector<8x128xf32>
    %84 = vector.extract_strided_slice %71 {offsets = [0, 256], sizes = [8, 128], strides = [1, 1]} : vector<8x384xf32> to vector<8x128xf32>
    %85 = vector.extract_strided_slice %73 {offsets = [0, 256], sizes = [8, 128], strides = [1, 1]} : vector<8x384xf32> to vector<8x128xf32>
    %86 = arith.mulf %82, %85 : vector<8x128xf32>
    %87 = arith.addf %84, %86 : vector<8x128xf32>
    %88 = math.tanh %87 : vector<8x128xf32>
    %89 = arith.subf %65, %88 : vector<8x128xf32>
    %90 = arith.mulf %83, %89 : vector<8x128xf32>
    %91 = arith.addf %88, %90 : vector<8x128xf32>
    %92 = arith.index_cast %69 : i32 to index
    %c0_29 = arith.constant 0 : index
    %93 = vector.load %arg16[%92, %c0_29] : memref<64x128xf32, #tpu.memory_space<vmem>>, vector<8x128xf32>
    tpu.vector_store %arg16[%92, %c0_29], %91 {strides = array<i32>} : memref<64x128xf32, #tpu.memory_space<vmem>>, vector<8x128xf32>,
    %c3_i32 = arith.constant 3 : i32
    %c8_i32_30 = arith.constant 8 : i32
    %94 = arith.muli %c3_i32, %c8_i32_30 : i32
    %95 = tpu.assume_multiple %94, 8 : i32
    %96 = arith.index_cast %95 : i32 to index
    %c0_31 = arith.constant 0 : index
    %97 = vector.load %arg17[%96, %c0_31] : memref<64x384xf32, #tpu.memory_space<vmem>>, vector<8x384xf32>
    %cst_32 = arith.constant dense<0.000000e+00> : vector<8x384xf32>
    %98 = tpu.matmul %91, %10, %cst_32 {dimension_numbers = #tpu.dot_dimension_numbers<[1], [0], [0], [1], [0, 0, 1, 1], [], []>} : vector<8x128xf32>, vector<128x384xf32>, vector<8x384xf32> -> vector<8x384xf32>
    %99 = arith.addf %98, %13 : vector<8x384xf32>
    %100 = vector.extract_strided_slice %97 {offsets = [0, 0], sizes = [8, 256], strides = [1, 1]} : vector<8x384xf32> to vector<8x256xf32>
    %101 = vector.extract_strided_slice %99 {offsets = [0, 0], sizes = [8, 256], strides = [1, 1]} : vector<8x384xf32> to vector<8x256xf32>
    %102 = arith.addf %100, %101 : vector<8x256xf32>
    %103 = arith.negf %102 : vector<8x256xf32>
    %104 = math.exp %103 : vector<8x256xf32>
    %cst_33 = arith.constant 1.000000e+00 : f32
    %105 = vector.broadcast %cst_33 : f32 to vector<8x256xf32>
    %106 = arith.addf %105, %104 : vector<8x256xf32>
    %107 = arith.divf %105, %106 : vector<8x256xf32>
    %108 = vector.extract_strided_slice %107 {offsets = [0, 0], sizes = [8, 128], strides = [1, 1]} : vector<8x256xf32> to vector<8x128xf32>
    %109 = vector.extract_strided_slice %107 {offsets = [0, 128], sizes = [8, 128], strides = [1, 1]} : vector<8x256xf32> to vector<8x128xf32>
    %110 = vector.extract_strided_slice %97 {offsets = [0, 256], sizes = [8, 128], strides = [1, 1]} : vector<8x384xf32> to vector<8x128xf32>
    %111 = vector.extract_strided_slice %99 {offsets = [0, 256], sizes = [8, 128], strides = [1, 1]} : vector<8x384xf32> to vector<8x128xf32>
    %112 = arith.mulf %108, %111 : vector<8x128xf32>
    %113 = arith.addf %110, %112 : vector<8x128xf32>
    %114 = math.tanh %113 : vector<8x128xf32>
    %115 = arith.subf %91, %114 : vector<8x128xf32>
    %116 = arith.mulf %109, %115 : vector<8x128xf32>
    %117 = arith.addf %114, %116 : vector<8x128xf32>
    %118 = arith.index_cast %95 : i32 to index
    %c0_34 = arith.constant 0 : index
    %119 = vector.load %arg16[%118, %c0_34] : memref<64x128xf32, #tpu.memory_space<vmem>>, vector<8x128xf32>
    tpu.vector_store %arg16[%118, %c0_34], %117 {strides = array<i32>} : memref<64x128xf32, #tpu.memory_space<vmem>>, vector<8x128xf32>,
    %c4_i32 = arith.constant 4 : i32
    %c8_i32_35 = arith.constant 8 : i32
    %120 = arith.muli %c4_i32, %c8_i32_35 : i32
    %121 = tpu.assume_multiple %120, 8 : i32
    %122 = arith.index_cast %121 : i32 to index
    %c0_36 = arith.constant 0 : index
    %123 = vector.load %arg17[%122, %c0_36] : memref<64x384xf32, #tpu.memory_space<vmem>>, vector<8x384xf32>
    %cst_37 = arith.constant dense<0.000000e+00> : vector<8x384xf32>
    %124 = tpu.matmul %117, %10, %cst_37 {dimension_numbers = #tpu.dot_dimension_numbers<[1], [0], [0], [1], [0, 0, 1, 1], [], []>} : vector<8x128xf32>, vector<128x384xf32>, vector<8x384xf32> -> vector<8x384xf32>
    %125 = arith.addf %124, %13 : vector<8x384xf32>
    %126 = vector.extract_strided_slice %123 {offsets = [0, 0], sizes = [8, 256], strides = [1, 1]} : vector<8x384xf32> to vector<8x256xf32>
    %127 = vector.extract_strided_slice %125 {offsets = [0, 0], sizes = [8, 256], strides = [1, 1]} : vector<8x384xf32> to vector<8x256xf32>
    %128 = arith.addf %126, %127 : vector<8x256xf32>
    %129 = arith.negf %128 : vector<8x256xf32>
    %130 = math.exp %129 : vector<8x256xf32>
    %cst_38 = arith.constant 1.000000e+00 : f32
    %131 = vector.broadcast %cst_38 : f32 to vector<8x256xf32>
    %132 = arith.addf %131, %130 : vector<8x256xf32>
    %133 = arith.divf %131, %132 : vector<8x256xf32>
    %134 = vector.extract_strided_slice %133 {offsets = [0, 0], sizes = [8, 128], strides = [1, 1]} : vector<8x256xf32> to vector<8x128xf32>
    %135 = vector.extract_strided_slice %133 {offsets = [0, 128], sizes = [8, 128], strides = [1, 1]} : vector<8x256xf32> to vector<8x128xf32>
    %136 = vector.extract_strided_slice %123 {offsets = [0, 256], sizes = [8, 128], strides = [1, 1]} : vector<8x384xf32> to vector<8x128xf32>
    %137 = vector.extract_strided_slice %125 {offsets = [0, 256], sizes = [8, 128], strides = [1, 1]} : vector<8x384xf32> to vector<8x128xf32>
    %138 = arith.mulf %134, %137 : vector<8x128xf32>
    %139 = arith.addf %136, %138 : vector<8x128xf32>
    %140 = math.tanh %139 : vector<8x128xf32>
    %141 = arith.subf %117, %140 : vector<8x128xf32>
    %142 = arith.mulf %135, %141 : vector<8x128xf32>
    %143 = arith.addf %140, %142 : vector<8x128xf32>
    %144 = arith.index_cast %121 : i32 to index
    %c0_39 = arith.constant 0 : index
    %145 = vector.load %arg16[%144, %c0_39] : memref<64x128xf32, #tpu.memory_space<vmem>>, vector<8x128xf32>
    tpu.vector_store %arg16[%144, %c0_39], %143 {strides = array<i32>} : memref<64x128xf32, #tpu.memory_space<vmem>>, vector<8x128xf32>,
    %c5_i32 = arith.constant 5 : i32
    %c8_i32_40 = arith.constant 8 : i32
    %146 = arith.muli %c5_i32, %c8_i32_40 : i32
    %147 = tpu.assume_multiple %146, 8 : i32
    %148 = arith.index_cast %147 : i32 to index
    %c0_41 = arith.constant 0 : index
    %149 = vector.load %arg17[%148, %c0_41] : memref<64x384xf32, #tpu.memory_space<vmem>>, vector<8x384xf32>
    %cst_42 = arith.constant dense<0.000000e+00> : vector<8x384xf32>
    %150 = tpu.matmul %143, %10, %cst_42 {dimension_numbers = #tpu.dot_dimension_numbers<[1], [0], [0], [1], [0, 0, 1, 1], [], []>} : vector<8x128xf32>, vector<128x384xf32>, vector<8x384xf32> -> vector<8x384xf32>
    %151 = arith.addf %150, %13 : vector<8x384xf32>
    %152 = vector.extract_strided_slice %149 {offsets = [0, 0], sizes = [8, 256], strides = [1, 1]} : vector<8x384xf32> to vector<8x256xf32>
    %153 = vector.extract_strided_slice %151 {offsets = [0, 0], sizes = [8, 256], strides = [1, 1]} : vector<8x384xf32> to vector<8x256xf32>
    %154 = arith.addf %152, %153 : vector<8x256xf32>
    %155 = arith.negf %154 : vector<8x256xf32>
    %156 = math.exp %155 : vector<8x256xf32>
    %cst_43 = arith.constant 1.000000e+00 : f32
    %157 = vector.broadcast %cst_43 : f32 to vector<8x256xf32>
    %158 = arith.addf %157, %156 : vector<8x256xf32>
    %159 = arith.divf %157, %158 : vector<8x256xf32>
    %160 = vector.extract_strided_slice %159 {offsets = [0, 0], sizes = [8, 128], strides = [1, 1]} : vector<8x256xf32> to vector<8x128xf32>
    %161 = vector.extract_strided_slice %159 {offsets = [0, 128], sizes = [8, 128], strides = [1, 1]} : vector<8x256xf32> to vector<8x128xf32>
    %162 = vector.extract_strided_slice %149 {offsets = [0, 256], sizes = [8, 128], strides = [1, 1]} : vector<8x384xf32> to vector<8x128xf32>
    %163 = vector.extract_strided_slice %151 {offsets = [0, 256], sizes = [8, 128], strides = [1, 1]} : vector<8x384xf32> to vector<8x128xf32>
    %164 = arith.mulf %160, %163 : vector<8x128xf32>
    %165 = arith.addf %162, %164 : vector<8x128xf32>
    %166 = math.tanh %165 : vector<8x128xf32>
    %167 = arith.subf %143, %166 : vector<8x128xf32>
    %168 = arith.mulf %161, %167 : vector<8x128xf32>
    %169 = arith.addf %166, %168 : vector<8x128xf32>
    %170 = arith.index_cast %147 : i32 to index
    %c0_44 = arith.constant 0 : index
    %171 = vector.load %arg16[%170, %c0_44] : memref<64x128xf32, #tpu.memory_space<vmem>>, vector<8x128xf32>
    tpu.vector_store %arg16[%170, %c0_44], %169 {strides = array<i32>} : memref<64x128xf32, #tpu.memory_space<vmem>>, vector<8x128xf32>,
    %c6_i32 = arith.constant 6 : i32
    %c8_i32_45 = arith.constant 8 : i32
    %172 = arith.muli %c6_i32, %c8_i32_45 : i32
    %173 = tpu.assume_multiple %172, 8 : i32
    %174 = arith.index_cast %173 : i32 to index
    %c0_46 = arith.constant 0 : index
    %175 = vector.load %arg17[%174, %c0_46] : memref<64x384xf32, #tpu.memory_space<vmem>>, vector<8x384xf32>
    %cst_47 = arith.constant dense<0.000000e+00> : vector<8x384xf32>
    %176 = tpu.matmul %169, %10, %cst_47 {dimension_numbers = #tpu.dot_dimension_numbers<[1], [0], [0], [1], [0, 0, 1, 1], [], []>} : vector<8x128xf32>, vector<128x384xf32>, vector<8x384xf32> -> vector<8x384xf32>
    %177 = arith.addf %176, %13 : vector<8x384xf32>
    %178 = vector.extract_strided_slice %175 {offsets = [0, 0], sizes = [8, 256], strides = [1, 1]} : vector<8x384xf32> to vector<8x256xf32>
    %179 = vector.extract_strided_slice %177 {offsets = [0, 0], sizes = [8, 256], strides = [1, 1]} : vector<8x384xf32> to vector<8x256xf32>
    %180 = arith.addf %178, %179 : vector<8x256xf32>
    %181 = arith.negf %180 : vector<8x256xf32>
    %182 = math.exp %181 : vector<8x256xf32>
    %cst_48 = arith.constant 1.000000e+00 : f32
    %183 = vector.broadcast %cst_48 : f32 to vector<8x256xf32>
    %184 = arith.addf %183, %182 : vector<8x256xf32>
    %185 = arith.divf %183, %184 : vector<8x256xf32>
    %186 = vector.extract_strided_slice %185 {offsets = [0, 0], sizes = [8, 128], strides = [1, 1]} : vector<8x256xf32> to vector<8x128xf32>
    %187 = vector.extract_strided_slice %185 {offsets = [0, 128], sizes = [8, 128], strides = [1, 1]} : vector<8x256xf32> to vector<8x128xf32>
    %188 = vector.extract_strided_slice %175 {offsets = [0, 256], sizes = [8, 128], strides = [1, 1]} : vector<8x384xf32> to vector<8x128xf32>
    %189 = vector.extract_strided_slice %177 {offsets = [0, 256], sizes = [8, 128], strides = [1, 1]} : vector<8x384xf32> to vector<8x128xf32>
    %190 = arith.mulf %186, %189 : vector<8x128xf32>
    %191 = arith.addf %188, %190 : vector<8x128xf32>
    %192 = math.tanh %191 : vector<8x128xf32>
    %193 = arith.subf %169, %192 : vector<8x128xf32>
    %194 = arith.mulf %187, %193 : vector<8x128xf32>
    %195 = arith.addf %192, %194 : vector<8x128xf32>
    %196 = arith.index_cast %173 : i32 to index
    %c0_49 = arith.constant 0 : index
    %197 = vector.load %arg16[%196, %c0_49] : memref<64x128xf32, #tpu.memory_space<vmem>>, vector<8x128xf32>
    tpu.vector_store %arg16[%196, %c0_49], %195 {strides = array<i32>} : memref<64x128xf32, #tpu.memory_space<vmem>>, vector<8x128xf32>,
    %c7_i32 = arith.constant 7 : i32
    %c8_i32_50 = arith.constant 8 : i32
    %198 = arith.muli %c7_i32, %c8_i32_50 : i32
    %199 = tpu.assume_multiple %198, 8 : i32
    %200 = arith.index_cast %199 : i32 to index
    %c0_51 = arith.constant 0 : index
    %201 = vector.load %arg17[%200, %c0_51] : memref<64x384xf32, #tpu.memory_space<vmem>>, vector<8x384xf32>
    %cst_52 = arith.constant dense<0.000000e+00> : vector<8x384xf32>
    %202 = tpu.matmul %195, %10, %cst_52 {dimension_numbers = #tpu.dot_dimension_numbers<[1], [0], [0], [1], [0, 0, 1, 1], [], []>} : vector<8x128xf32>, vector<128x384xf32>, vector<8x384xf32> -> vector<8x384xf32>
    %203 = arith.addf %202, %13 : vector<8x384xf32>
    %204 = vector.extract_strided_slice %201 {offsets = [0, 0], sizes = [8, 256], strides = [1, 1]} : vector<8x384xf32> to vector<8x256xf32>
    %205 = vector.extract_strided_slice %203 {offsets = [0, 0], sizes = [8, 256], strides = [1, 1]} : vector<8x384xf32> to vector<8x256xf32>
    %206 = arith.addf %204, %205 : vector<8x256xf32>
    %207 = arith.negf %206 : vector<8x256xf32>
    %208 = math.exp %207 : vector<8x256xf32>
    %cst_53 = arith.constant 1.000000e+00 : f32
    %209 = vector.broadcast %cst_53 : f32 to vector<8x256xf32>
    %210 = arith.addf %209, %208 : vector<8x256xf32>
    %211 = arith.divf %209, %210 : vector<8x256xf32>
    %212 = vector.extract_strided_slice %211 {offsets = [0, 0], sizes = [8, 128], strides = [1, 1]} : vector<8x256xf32> to vector<8x128xf32>
    %213 = vector.extract_strided_slice %211 {offsets = [0, 128], sizes = [8, 128], strides = [1, 1]} : vector<8x256xf32> to vector<8x128xf32>
    %214 = vector.extract_strided_slice %201 {offsets = [0, 256], sizes = [8, 128], strides = [1, 1]} : vector<8x384xf32> to vector<8x128xf32>
    %215 = vector.extract_strided_slice %203 {offsets = [0, 256], sizes = [8, 128], strides = [1, 1]} : vector<8x384xf32> to vector<8x128xf32>
    %216 = arith.mulf %212, %215 : vector<8x128xf32>
    %217 = arith.addf %214, %216 : vector<8x128xf32>
    %218 = math.tanh %217 : vector<8x128xf32>
    %219 = arith.subf %195, %218 : vector<8x128xf32>
    %220 = arith.mulf %213, %219 : vector<8x128xf32>
    %221 = arith.addf %218, %220 : vector<8x128xf32>
    %222 = arith.index_cast %199 : i32 to index
    %c0_54 = arith.constant 0 : index
    %223 = vector.load %arg16[%222, %c0_54] : memref<64x128xf32, #tpu.memory_space<vmem>>, vector<8x128xf32>
    tpu.vector_store %arg16[%222, %c0_54], %221 {strides = array<i32>} : memref<64x128xf32, #tpu.memory_space<vmem>>, vector<8x128xf32>,
    %c8_i32_55 = arith.constant 8 : i32
    %c0_56 = arith.constant 0 : index
    %c0_57 = arith.constant 0 : index
    %c0_58 = arith.constant 0 : index
    %224 = vector.load %arg15[%c0_56, %c0_57, %c0_58] : memref<2x8x128xf32, #tpu.memory_space<vmem>>, vector<1x8x128xf32>
    %225 = vector.shape_cast %224 : vector<1x8x128xf32> to vector<8x128xf32>
    %226 = vector.shape_cast %221 : vector<8x128xf32> to vector<1x8x128xf32>
    tpu.vector_store %arg15[%c0_56, %c0_57, %c0_58], %226 {strides = array<i32>} : memref<2x8x128xf32, #tpu.memory_space<vmem>>, vector<1x8x128xf32>,
    %c0_59 = arith.constant 0 : index
    %c0_60 = arith.constant 0 : index
    %227 = vector.load %arg16[%c0_59, %c0_60] : memref<64x128xf32, #tpu.memory_space<vmem>>, vector<64x128xf32>
    %228 = arith.truncf %227 : vector<64x128xf32> to vector<64x128xbf16>
    %c0_61 = arith.constant 0 : index
    %c0_62 = arith.constant 0 : index
    %229 = vector.load %arg7[%c0_61, %c0_62] : memref<128x384xbf16, #tpu.memory_space<vmem>>, vector<128x384xbf16>
    %cst_63 = arith.constant dense<0.000000e+00> : vector<64x384xf32>
    %230 = tpu.matmul %228, %229, %cst_63 {dimension_numbers = #tpu.dot_dimension_numbers<[1], [0], [0], [1], [0, 0, 1, 1], [], []>} : vector<64x128xbf16>, vector<128x384xbf16>, vector<64x384xf32> -> vector<64x384xf32>
    %c0_64 = arith.constant 0 : index
    %c0_65 = arith.constant 0 : index
    %231 = vector.load %arg9[%c0_64, %c0_65] : memref<1x384xf32, #tpu.memory_space<vmem>>, vector<1x384xf32>
    %232 = vector.broadcast %231 : vector<1x384xf32> to vector<64x384xf32>
    %233 = arith.addf %230, %232 : vector<64x384xf32>
    %c0_66 = arith.constant 0 : index
    %c0_67 = arith.constant 0 : index
    %234 = vector.load %arg17[%c0_66, %c0_67] : memref<64x384xf32, #tpu.memory_space<vmem>>, vector<64x384xf32>
    tpu.vector_store %arg17[%c0_66, %c0_67], %233 {strides = array<i32>} : memref<64x384xf32, #tpu.memory_space<vmem>>, vector<64x384xf32>,
    %c0_68 = arith.constant 0 : index
    %c0_69 = arith.constant 0 : index
    %235 = vector.load %arg8[%c0_68, %c0_69] : memref<128x384xf32, #tpu.memory_space<vmem>>, vector<128x384xf32>
    %c0_70 = arith.constant 0 : index
    %c0_71 = arith.constant 0 : index
    %236 = vector.load %arg10[%c0_70, %c0_71] : memref<1x384xf32, #tpu.memory_space<vmem>>, vector<1x384xf32>
    %237 = vector.shape_cast %236 : vector<1x384xf32> to vector<1x384xf32>
    %238 = vector.broadcast %237 : vector<1x384xf32> to vector<8x384xf32>
    %c1 = arith.constant 1 : index
    %c0_72 = arith.constant 0 : index
    %c0_73 = arith.constant 0 : index
    %239 = vector.load %arg15[%c1, %c0_72, %c0_73] : memref<2x8x128xf32, #tpu.memory_space<vmem>>, vector<1x8x128xf32>
    %240 = vector.shape_cast %239 : vector<1x8x128xf32> to vector<8x128xf32>
    %c0_i32_74 = arith.constant 0 : i32
    %c8_i32_75 = arith.constant 8 : i32
    %241 = arith.muli %c0_i32_74, %c8_i32_75 : i32
    %242 = tpu.assume_multiple %241, 8 : i32
    %243 = arith.index_cast %242 : i32 to index
    %c0_76 = arith.constant 0 : index
    %244 = vector.load %arg17[%243, %c0_76] : memref<64x384xf32, #tpu.memory_space<vmem>>, vector<8x384xf32>
    %cst_77 = arith.constant dense<0.000000e+00> : vector<8x384xf32>
    %245 = tpu.matmul %240, %235, %cst_77 {dimension_numbers = #tpu.dot_dimension_numbers<[1], [0], [0], [1], [0, 0, 1, 1], [], []>} : vector<8x128xf32>, vector<128x384xf32>, vector<8x384xf32> -> vector<8x384xf32>
    %246 = arith.addf %245, %238 : vector<8x384xf32>
    %247 = vector.extract_strided_slice %244 {offsets = [0, 0], sizes = [8, 256], strides = [1, 1]} : vector<8x384xf32> to vector<8x256xf32>
    %248 = vector.extract_strided_slice %246 {offsets = [0, 0], sizes = [8, 256], strides = [1, 1]} : vector<8x384xf32> to vector<8x256xf32>
    %249 = arith.addf %247, %248 : vector<8x256xf32>
    %250 = arith.negf %249 : vector<8x256xf32>
    %251 = math.exp %250 : vector<8x256xf32>
    %cst_78 = arith.constant 1.000000e+00 : f32
    %252 = vector.broadcast %cst_78 : f32 to vector<8x256xf32>
    %253 = arith.addf %252, %251 : vector<8x256xf32>
    %254 = arith.divf %252, %253 : vector<8x256xf32>
    %255 = vector.extract_strided_slice %254 {offsets = [0, 0], sizes = [8, 128], strides = [1, 1]} : vector<8x256xf32> to vector<8x128xf32>
    %256 = vector.extract_strided_slice %254 {offsets = [0, 128], sizes = [8, 128], strides = [1, 1]} : vector<8x256xf32> to vector<8x128xf32>
    %257 = vector.extract_strided_slice %244 {offsets = [0, 256], sizes = [8, 128], strides = [1, 1]} : vector<8x384xf32> to vector<8x128xf32>
    %258 = vector.extract_strided_slice %246 {offsets = [0, 256], sizes = [8, 128], strides = [1, 1]} : vector<8x384xf32> to vector<8x128xf32>
    %259 = arith.mulf %255, %258 : vector<8x128xf32>
    %260 = arith.addf %257, %259 : vector<8x128xf32>
    %261 = math.tanh %260 : vector<8x128xf32>
    %262 = arith.subf %240, %261 : vector<8x128xf32>
    %263 = arith.mulf %256, %262 : vector<8x128xf32>
    %264 = arith.addf %261, %263 : vector<8x128xf32>
    %265 = arith.index_cast %242 : i32 to index
    %c0_79 = arith.constant 0 : index
    %266 = vector.load %arg16[%265, %c0_79] : memref<64x128xf32, #tpu.memory_space<vmem>>, vector<8x128xf32>
    tpu.vector_store %arg16[%265, %c0_79], %264 {strides = array<i32>} : memref<64x128xf32, #tpu.memory_space<vmem>>, vector<8x128xf32>,
    %c1_i32_80 = arith.constant 1 : i32
    %c8_i32_81 = arith.constant 8 : i32
    %267 = arith.muli %c1_i32_80, %c8_i32_81 : i32
    %268 = tpu.assume_multiple %267, 8 : i32
    %269 = arith.index_cast %268 : i32 to index
    %c0_82 = arith.constant 0 : index
    %270 = vector.load %arg17[%269, %c0_82] : memref<64x384xf32, #tpu.memory_space<vmem>>, vector<8x384xf32>
    %cst_83 = arith.constant dense<0.000000e+00> : vector<8x384xf32>
    %271 = tpu.matmul %264, %235, %cst_83 {dimension_numbers = #tpu.dot_dimension_numbers<[1], [0], [0], [1], [0, 0, 1, 1], [], []>} : vector<8x128xf32>, vector<128x384xf32>, vector<8x384xf32> -> vector<8x384xf32>
    %272 = arith.addf %271, %238 : vector<8x384xf32>
    %273 = vector.extract_strided_slice %270 {offsets = [0, 0], sizes = [8, 256], strides = [1, 1]} : vector<8x384xf32> to vector<8x256xf32>
    %274 = vector.extract_strided_slice %272 {offsets = [0, 0], sizes = [8, 256], strides = [1, 1]} : vector<8x384xf32> to vector<8x256xf32>
    %275 = arith.addf %273, %274 : vector<8x256xf32>
    %276 = arith.negf %275 : vector<8x256xf32>
    %277 = math.exp %276 : vector<8x256xf32>
    %cst_84 = arith.constant 1.000000e+00 : f32
    %278 = vector.broadcast %cst_84 : f32 to vector<8x256xf32>
    %279 = arith.addf %278, %277 : vector<8x256xf32>
    %280 = arith.divf %278, %279 : vector<8x256xf32>
    %281 = vector.extract_strided_slice %280 {offsets = [0, 0], sizes = [8, 128], strides = [1, 1]} : vector<8x256xf32> to vector<8x128xf32>
    %282 = vector.extract_strided_slice %280 {offsets = [0, 128], sizes = [8, 128], strides = [1, 1]} : vector<8x256xf32> to vector<8x128xf32>
    %283 = vector.extract_strided_slice %270 {offsets = [0, 256], sizes = [8, 128], strides = [1, 1]} : vector<8x384xf32> to vector<8x128xf32>
    %284 = vector.extract_strided_slice %272 {offsets = [0, 256], sizes = [8, 128], strides = [1, 1]} : vector<8x384xf32> to vector<8x128xf32>
    %285 = arith.mulf %281, %284 : vector<8x128xf32>
    %286 = arith.addf %283, %285 : vector<8x128xf32>
    %287 = math.tanh %286 : vector<8x128xf32>
    %288 = arith.subf %264, %287 : vector<8x128xf32>
    %289 = arith.mulf %282, %288 : vector<8x128xf32>
    %290 = arith.addf %287, %289 : vector<8x128xf32>
    %291 = arith.index_cast %268 : i32 to index
    %c0_85 = arith.constant 0 : index
    %292 = vector.load %arg16[%291, %c0_85] : memref<64x128xf32, #tpu.memory_space<vmem>>, vector<8x128xf32>
    tpu.vector_store %arg16[%291, %c0_85], %290 {strides = array<i32>} : memref<64x128xf32, #tpu.memory_space<vmem>>, vector<8x128xf32>,
    %c2_i32_86 = arith.constant 2 : i32
    %c8_i32_87 = arith.constant 8 : i32
    %293 = arith.muli %c2_i32_86, %c8_i32_87 : i32
    %294 = tpu.assume_multiple %293, 8 : i32
    %295 = arith.index_cast %294 : i32 to index
    %c0_88 = arith.constant 0 : index
    %296 = vector.load %arg17[%295, %c0_88] : memref<64x384xf32, #tpu.memory_space<vmem>>, vector<8x384xf32>
    %cst_89 = arith.constant dense<0.000000e+00> : vector<8x384xf32>
    %297 = tpu.matmul %290, %235, %cst_89 {dimension_numbers = #tpu.dot_dimension_numbers<[1], [0], [0], [1], [0, 0, 1, 1], [], []>} : vector<8x128xf32>, vector<128x384xf32>, vector<8x384xf32> -> vector<8x384xf32>
    %298 = arith.addf %297, %238 : vector<8x384xf32>
    %299 = vector.extract_strided_slice %296 {offsets = [0, 0], sizes = [8, 256], strides = [1, 1]} : vector<8x384xf32> to vector<8x256xf32>
    %300 = vector.extract_strided_slice %298 {offsets = [0, 0], sizes = [8, 256], strides = [1, 1]} : vector<8x384xf32> to vector<8x256xf32>
    %301 = arith.addf %299, %300 : vector<8x256xf32>
    %302 = arith.negf %301 : vector<8x256xf32>
    %303 = math.exp %302 : vector<8x256xf32>
    %cst_90 = arith.constant 1.000000e+00 : f32
    %304 = vector.broadcast %cst_90 : f32 to vector<8x256xf32>
    %305 = arith.addf %304, %303 : vector<8x256xf32>
    %306 = arith.divf %304, %305 : vector<8x256xf32>
    %307 = vector.extract_strided_slice %306 {offsets = [0, 0], sizes = [8, 128], strides = [1, 1]} : vector<8x256xf32> to vector<8x128xf32>
    %308 = vector.extract_strided_slice %306 {offsets = [0, 128], sizes = [8, 128], strides = [1, 1]} : vector<8x256xf32> to vector<8x128xf32>
    %309 = vector.extract_strided_slice %296 {offsets = [0, 256], sizes = [8, 128], strides = [1, 1]} : vector<8x384xf32> to vector<8x128xf32>
    %310 = vector.extract_strided_slice %298 {offsets = [0, 256], sizes = [8, 128], strides = [1, 1]} : vector<8x384xf32> to vector<8x128xf32>
    %311 = arith.mulf %307, %310 : vector<8x128xf32>
    %312 = arith.addf %309, %311 : vector<8x128xf32>
    %313 = math.tanh %312 : vector<8x128xf32>
    %314 = arith.subf %290, %313 : vector<8x128xf32>
    %315 = arith.mulf %308, %314 : vector<8x128xf32>
    %316 = arith.addf %313, %315 : vector<8x128xf32>
    %317 = arith.index_cast %294 : i32 to index
    %c0_91 = arith.constant 0 : index
    %318 = vector.load %arg16[%317, %c0_91] : memref<64x128xf32, #tpu.memory_space<vmem>>, vector<8x128xf32>
    tpu.vector_store %arg16[%317, %c0_91], %316 {strides = array<i32>} : memref<64x128xf32, #tpu.memory_space<vmem>>, vector<8x128xf32>,
    %c3_i32_92 = arith.constant 3 : i32
    %c8_i32_93 = arith.constant 8 : i32
    %319 = arith.muli %c3_i32_92, %c8_i32_93 : i32
    %320 = tpu.assume_multiple %319, 8 : i32
    %321 = arith.index_cast %320 : i32 to index
    %c0_94 = arith.constant 0 : index
    %322 = vector.load %arg17[%321, %c0_94] : memref<64x384xf32, #tpu.memory_space<vmem>>, vector<8x384xf32>
    %cst_95 = arith.constant dense<0.000000e+00> : vector<8x384xf32>
    %323 = tpu.matmul %316, %235, %cst_95 {dimension_numbers = #tpu.dot_dimension_numbers<[1], [0], [0], [1], [0, 0, 1, 1], [], []>} : vector<8x128xf32>, vector<128x384xf32>, vector<8x384xf32> -> vector<8x384xf32>
    %324 = arith.addf %323, %238 : vector<8x384xf32>
    %325 = vector.extract_strided_slice %322 {offsets = [0, 0], sizes = [8, 256], strides = [1, 1]} : vector<8x384xf32> to vector<8x256xf32>
    %326 = vector.extract_strided_slice %324 {offsets = [0, 0], sizes = [8, 256], strides = [1, 1]} : vector<8x384xf32> to vector<8x256xf32>
    %327 = arith.addf %325, %326 : vector<8x256xf32>
    %328 = arith.negf %327 : vector<8x256xf32>
    %329 = math.exp %328 : vector<8x256xf32>
    %cst_96 = arith.constant 1.000000e+00 : f32
    %330 = vector.broadcast %cst_96 : f32 to vector<8x256xf32>
    %331 = arith.addf %330, %329 : vector<8x256xf32>
    %332 = arith.divf %330, %331 : vector<8x256xf32>
    %333 = vector.extract_strided_slice %332 {offsets = [0, 0], sizes = [8, 128], strides = [1, 1]} : vector<8x256xf32> to vector<8x128xf32>
    %334 = vector.extract_strided_slice %332 {offsets = [0, 128], sizes = [8, 128], strides = [1, 1]} : vector<8x256xf32> to vector<8x128xf32>
    %335 = vector.extract_strided_slice %322 {offsets = [0, 256], sizes = [8, 128], strides = [1, 1]} : vector<8x384xf32> to vector<8x128xf32>
    %336 = vector.extract_strided_slice %324 {offsets = [0, 256], sizes = [8, 128], strides = [1, 1]} : vector<8x384xf32> to vector<8x128xf32>
    %337 = arith.mulf %333, %336 : vector<8x128xf32>
    %338 = arith.addf %335, %337 : vector<8x128xf32>
    %339 = math.tanh %338 : vector<8x128xf32>
    %340 = arith.subf %316, %339 : vector<8x128xf32>
    %341 = arith.mulf %334, %340 : vector<8x128xf32>
    %342 = arith.addf %339, %341 : vector<8x128xf32>
    %343 = arith.index_cast %320 : i32 to index
    %c0_97 = arith.constant 0 : index
    %344 = vector.load %arg16[%343, %c0_97] : memref<64x128xf32, #tpu.memory_space<vmem>>, vector<8x128xf32>
    tpu.vector_store %arg16[%343, %c0_97], %342 {strides = array<i32>} : memref<64x128xf32, #tpu.memory_space<vmem>>, vector<8x128xf32>,
    %c4_i32_98 = arith.constant 4 : i32
    %c8_i32_99 = arith.constant 8 : i32
    %345 = arith.muli %c4_i32_98, %c8_i32_99 : i32
    %346 = tpu.assume_multiple %345, 8 : i32
    %347 = arith.index_cast %346 : i32 to index
    %c0_100 = arith.constant 0 : index
    %348 = vector.load %arg17[%347, %c0_100] : memref<64x384xf32, #tpu.memory_space<vmem>>, vector<8x384xf32>
    %cst_101 = arith.constant dense<0.000000e+00> : vector<8x384xf32>
    %349 = tpu.matmul %342, %235, %cst_101 {dimension_numbers = #tpu.dot_dimension_numbers<[1], [0], [0], [1], [0, 0, 1, 1], [], []>} : vector<8x128xf32>, vector<128x384xf32>, vector<8x384xf32> -> vector<8x384xf32>
    %350 = arith.addf %349, %238 : vector<8x384xf32>
    %351 = vector.extract_strided_slice %348 {offsets = [0, 0], sizes = [8, 256], strides = [1, 1]} : vector<8x384xf32> to vector<8x256xf32>
    %352 = vector.extract_strided_slice %350 {offsets = [0, 0], sizes = [8, 256], strides = [1, 1]} : vector<8x384xf32> to vector<8x256xf32>
    %353 = arith.addf %351, %352 : vector<8x256xf32>
    %354 = arith.negf %353 : vector<8x256xf32>
    %355 = math.exp %354 : vector<8x256xf32>
    %cst_102 = arith.constant 1.000000e+00 : f32
    %356 = vector.broadcast %cst_102 : f32 to vector<8x256xf32>
    %357 = arith.addf %356, %355 : vector<8x256xf32>
    %358 = arith.divf %356, %357 : vector<8x256xf32>
    %359 = vector.extract_strided_slice %358 {offsets = [0, 0], sizes = [8, 128], strides = [1, 1]} : vector<8x256xf32> to vector<8x128xf32>
    %360 = vector.extract_strided_slice %358 {offsets = [0, 128], sizes = [8, 128], strides = [1, 1]} : vector<8x256xf32> to vector<8x128xf32>
    %361 = vector.extract_strided_slice %348 {offsets = [0, 256], sizes = [8, 128], strides = [1, 1]} : vector<8x384xf32> to vector<8x128xf32>
    %362 = vector.extract_strided_slice %350 {offsets = [0, 256], sizes = [8, 128], strides = [1, 1]} : vector<8x384xf32> to vector<8x128xf32>
    %363 = arith.mulf %359, %362 : vector<8x128xf32>
    %364 = arith.addf %361, %363 : vector<8x128xf32>
    %365 = math.tanh %364 : vector<8x128xf32>
    %366 = arith.subf %342, %365 : vector<8x128xf32>
    %367 = arith.mulf %360, %366 : vector<8x128xf32>
    %368 = arith.addf %365, %367 : vector<8x128xf32>
    %369 = arith.index_cast %346 : i32 to index
    %c0_103 = arith.constant 0 : index
    %370 = vector.load %arg16[%369, %c0_103] : memref<64x128xf32, #tpu.memory_space<vmem>>, vector<8x128xf32>
    tpu.vector_store %arg16[%369, %c0_103], %368 {strides = array<i32>} : memref<64x128xf32, #tpu.memory_space<vmem>>, vector<8x128xf32>,
    %c5_i32_104 = arith.constant 5 : i32
    %c8_i32_105 = arith.constant 8 : i32
    %371 = arith.muli %c5_i32_104, %c8_i32_105 : i32
    %372 = tpu.assume_multiple %371, 8 : i32
    %373 = arith.index_cast %372 : i32 to index
    %c0_106 = arith.constant 0 : index
    %374 = vector.load %arg17[%373, %c0_106] : memref<64x384xf32, #tpu.memory_space<vmem>>, vector<8x384xf32>
    %cst_107 = arith.constant dense<0.000000e+00> : vector<8x384xf32>
    %375 = tpu.matmul %368, %235, %cst_107 {dimension_numbers = #tpu.dot_dimension_numbers<[1], [0], [0], [1], [0, 0, 1, 1], [], []>} : vector<8x128xf32>, vector<128x384xf32>, vector<8x384xf32> -> vector<8x384xf32>
    %376 = arith.addf %375, %238 : vector<8x384xf32>
    %377 = vector.extract_strided_slice %374 {offsets = [0, 0], sizes = [8, 256], strides = [1, 1]} : vector<8x384xf32> to vector<8x256xf32>
    %378 = vector.extract_strided_slice %376 {offsets = [0, 0], sizes = [8, 256], strides = [1, 1]} : vector<8x384xf32> to vector<8x256xf32>
    %379 = arith.addf %377, %378 : vector<8x256xf32>
    %380 = arith.negf %379 : vector<8x256xf32>
    %381 = math.exp %380 : vector<8x256xf32>
    %cst_108 = arith.constant 1.000000e+00 : f32
    %382 = vector.broadcast %cst_108 : f32 to vector<8x256xf32>
    %383 = arith.addf %382, %381 : vector<8x256xf32>
    %384 = arith.divf %382, %383 : vector<8x256xf32>
    %385 = vector.extract_strided_slice %384 {offsets = [0, 0], sizes = [8, 128], strides = [1, 1]} : vector<8x256xf32> to vector<8x128xf32>
    %386 = vector.extract_strided_slice %384 {offsets = [0, 128], sizes = [8, 128], strides = [1, 1]} : vector<8x256xf32> to vector<8x128xf32>
    %387 = vector.extract_strided_slice %374 {offsets = [0, 256], sizes = [8, 128], strides = [1, 1]} : vector<8x384xf32> to vector<8x128xf32>
    %388 = vector.extract_strided_slice %376 {offsets = [0, 256], sizes = [8, 128], strides = [1, 1]} : vector<8x384xf32> to vector<8x128xf32>
    %389 = arith.mulf %385, %388 : vector<8x128xf32>
    %390 = arith.addf %387, %389 : vector<8x128xf32>
    %391 = math.tanh %390 : vector<8x128xf32>
    %392 = arith.subf %368, %391 : vector<8x128xf32>
    %393 = arith.mulf %386, %392 : vector<8x128xf32>
    %394 = arith.addf %391, %393 : vector<8x128xf32>
    %395 = arith.index_cast %372 : i32 to index
    %c0_109 = arith.constant 0 : index
    %396 = vector.load %arg16[%395, %c0_109] : memref<64x128xf32, #tpu.memory_space<vmem>>, vector<8x128xf32>
    tpu.vector_store %arg16[%395, %c0_109], %394 {strides = array<i32>} : memref<64x128xf32, #tpu.memory_space<vmem>>, vector<8x128xf32>,
    %c6_i32_110 = arith.constant 6 : i32
    %c8_i32_111 = arith.constant 8 : i32
    %397 = arith.muli %c6_i32_110, %c8_i32_111 : i32
    %398 = tpu.assume_multiple %397, 8 : i32
    %399 = arith.index_cast %398 : i32 to index
    %c0_112 = arith.constant 0 : index
    %400 = vector.load %arg17[%399, %c0_112] : memref<64x384xf32, #tpu.memory_space<vmem>>, vector<8x384xf32>
    %cst_113 = arith.constant dense<0.000000e+00> : vector<8x384xf32>
    %401 = tpu.matmul %394, %235, %cst_113 {dimension_numbers = #tpu.dot_dimension_numbers<[1], [0], [0], [1], [0, 0, 1, 1], [], []>} : vector<8x128xf32>, vector<128x384xf32>, vector<8x384xf32> -> vector<8x384xf32>
    %402 = arith.addf %401, %238 : vector<8x384xf32>
    %403 = vector.extract_strided_slice %400 {offsets = [0, 0], sizes = [8, 256], strides = [1, 1]} : vector<8x384xf32> to vector<8x256xf32>
    %404 = vector.extract_strided_slice %402 {offsets = [0, 0], sizes = [8, 256], strides = [1, 1]} : vector<8x384xf32> to vector<8x256xf32>
    %405 = arith.addf %403, %404 : vector<8x256xf32>
    %406 = arith.negf %405 : vector<8x256xf32>
    %407 = math.exp %406 : vector<8x256xf32>
    %cst_114 = arith.constant 1.000000e+00 : f32
    %408 = vector.broadcast %cst_114 : f32 to vector<8x256xf32>
    %409 = arith.addf %408, %407 : vector<8x256xf32>
    %410 = arith.divf %408, %409 : vector<8x256xf32>
    %411 = vector.extract_strided_slice %410 {offsets = [0, 0], sizes = [8, 128], strides = [1, 1]} : vector<8x256xf32> to vector<8x128xf32>
    %412 = vector.extract_strided_slice %410 {offsets = [0, 128], sizes = [8, 128], strides = [1, 1]} : vector<8x256xf32> to vector<8x128xf32>
    %413 = vector.extract_strided_slice %400 {offsets = [0, 256], sizes = [8, 128], strides = [1, 1]} : vector<8x384xf32> to vector<8x128xf32>
    %414 = vector.extract_strided_slice %402 {offsets = [0, 256], sizes = [8, 128], strides = [1, 1]} : vector<8x384xf32> to vector<8x128xf32>
    %415 = arith.mulf %411, %414 : vector<8x128xf32>
    %416 = arith.addf %413, %415 : vector<8x128xf32>
    %417 = math.tanh %416 : vector<8x128xf32>
    %418 = arith.subf %394, %417 : vector<8x128xf32>
    %419 = arith.mulf %412, %418 : vector<8x128xf32>
    %420 = arith.addf %417, %419 : vector<8x128xf32>
    %421 = arith.index_cast %398 : i32 to index
    %c0_115 = arith.constant 0 : index
    %422 = vector.load %arg16[%421, %c0_115] : memref<64x128xf32, #tpu.memory_space<vmem>>, vector<8x128xf32>
    tpu.vector_store %arg16[%421, %c0_115], %420 {strides = array<i32>} : memref<64x128xf32, #tpu.memory_space<vmem>>, vector<8x128xf32>,
    %c7_i32_116 = arith.constant 7 : i32
    %c8_i32_117 = arith.constant 8 : i32
    %423 = arith.muli %c7_i32_116, %c8_i32_117 : i32
    %424 = tpu.assume_multiple %423, 8 : i32
    %425 = arith.index_cast %424 : i32 to index
    %c0_118 = arith.constant 0 : index
    %426 = vector.load %arg17[%425, %c0_118] : memref<64x384xf32, #tpu.memory_space<vmem>>, vector<8x384xf32>
    %cst_119 = arith.constant dense<0.000000e+00> : vector<8x384xf32>
    %427 = tpu.matmul %420, %235, %cst_119 {dimension_numbers = #tpu.dot_dimension_numbers<[1], [0], [0], [1], [0, 0, 1, 1], [], []>} : vector<8x128xf32>, vector<128x384xf32>, vector<8x384xf32> -> vector<8x384xf32>
    %428 = arith.addf %427, %238 : vector<8x384xf32>
    %429 = vector.extract_strided_slice %426 {offsets = [0, 0], sizes = [8, 256], strides = [1, 1]} : vector<8x384xf32> to vector<8x256xf32>
    %430 = vector.extract_strided_slice %428 {offsets = [0, 0], sizes = [8, 256], strides = [1, 1]} : vector<8x384xf32> to vector<8x256xf32>
    %431 = arith.addf %429, %430 : vector<8x256xf32>
    %432 = arith.negf %431 : vector<8x256xf32>
    %433 = math.exp %432 : vector<8x256xf32>
    %cst_120 = arith.constant 1.000000e+00 : f32
    %434 = vector.broadcast %cst_120 : f32 to vector<8x256xf32>
    %435 = arith.addf %434, %433 : vector<8x256xf32>
    %436 = arith.divf %434, %435 : vector<8x256xf32>
    %437 = vector.extract_strided_slice %436 {offsets = [0, 0], sizes = [8, 128], strides = [1, 1]} : vector<8x256xf32> to vector<8x128xf32>
    %438 = vector.extract_strided_slice %436 {offsets = [0, 128], sizes = [8, 128], strides = [1, 1]} : vector<8x256xf32> to vector<8x128xf32>
    %439 = vector.extract_strided_slice %426 {offsets = [0, 256], sizes = [8, 128], strides = [1, 1]} : vector<8x384xf32> to vector<8x128xf32>
    %440 = vector.extract_strided_slice %428 {offsets = [0, 256], sizes = [8, 128], strides = [1, 1]} : vector<8x384xf32> to vector<8x128xf32>
    %441 = arith.mulf %437, %440 : vector<8x128xf32>
    %442 = arith.addf %439, %441 : vector<8x128xf32>
    %443 = math.tanh %442 : vector<8x128xf32>
    %444 = arith.subf %420, %443 : vector<8x128xf32>
    %445 = arith.mulf %438, %444 : vector<8x128xf32>
    %446 = arith.addf %443, %445 : vector<8x128xf32>
    %447 = arith.index_cast %424 : i32 to index
    %c0_121 = arith.constant 0 : index
    %448 = vector.load %arg16[%447, %c0_121] : memref<64x128xf32, #tpu.memory_space<vmem>>, vector<8x128xf32>
    tpu.vector_store %arg16[%447, %c0_121], %446 {strides = array<i32>} : memref<64x128xf32, #tpu.memory_space<vmem>>, vector<8x128xf32>,
    %c8_i32_122 = arith.constant 8 : i32
    %c1_123 = arith.constant 1 : index
    %c0_124 = arith.constant 0 : index
    %c0_125 = arith.constant 0 : index
    %449 = vector.load %arg15[%c1_123, %c0_124, %c0_125] : memref<2x8x128xf32, #tpu.memory_space<vmem>>, vector<1x8x128xf32>
    %450 = vector.shape_cast %449 : vector<1x8x128xf32> to vector<8x128xf32>
    %451 = vector.shape_cast %446 : vector<8x128xf32> to vector<1x8x128xf32>
    tpu.vector_store %arg15[%c1_123, %c0_124, %c0_125], %451 {strides = array<i32>} : memref<2x8x128xf32, #tpu.memory_space<vmem>>, vector<1x8x128xf32>,
    %c0_126 = arith.constant 0 : index
    %c0_127 = arith.constant 0 : index
    %452 = vector.load %arg16[%c0_126, %c0_127] : memref<64x128xf32, #tpu.memory_space<vmem>>, vector<64x128xf32>
    %453 = arith.truncf %452 : vector<64x128xf32> to vector<64x128xbf16>
    %c0_128 = arith.constant 0 : index
    %c0_129 = arith.constant 0 : index
    %454 = vector.load %arg11[%c0_128, %c0_129] : memref<128x128xbf16, #tpu.memory_space<vmem>>, vector<128x128xbf16>
    %cst_130 = arith.constant dense<0.000000e+00> : vector<64x128xf32>
    %455 = tpu.matmul %453, %454, %cst_130 {dimension_numbers = #tpu.dot_dimension_numbers<[1], [0], [0], [1], [0, 0, 1, 1], [], []>} : vector<64x128xbf16>, vector<128x128xbf16>, vector<64x128xf32> -> vector<64x128xf32>
    %c0_131 = arith.constant 0 : index
    %c0_132 = arith.constant 0 : index
    %456 = vector.load %arg12[%c0_131, %c0_132] : memref<1x128xf32, #tpu.memory_space<vmem>>, vector<1x128xf32>
    %457 = vector.broadcast %456 : vector<1x128xf32> to vector<64x128xf32>
    %458 = arith.addf %455, %457 : vector<64x128xf32>
    %c0_133 = arith.constant 0 : index
    %c0_134 = arith.constant 0 : index
    %459 = vector.load %arg13[%c0_133, %c0_134] : memref<64x128xf32, #tpu.memory_space<vmem>>, vector<64x128xf32>
    tpu.vector_store %arg13[%c0_133, %c0_134], %458 {strides = array<i32>} : memref<64x128xf32, #tpu.memory_space<vmem>>, vector<64x128xf32>,
    %c0_i32_135 = arith.constant 0 : i32
    %460 = arith.cmpi eq, %arg0, %c0_i32_135 : i32
    %461 = arith.extui %460 : i1 to i32
    %c0_i32_136 = arith.constant 0 : i32
    %462 = arith.cmpi ne, %461, %c0_i32_136 : i32
    scf.if %462 {
      %c0_137 = arith.constant 0 : index
      %c0_138 = arith.constant 0 : index
      %c0_139 = arith.constant 0 : index
      %463 = vector.load %arg15[%c0_137, %c0_138, %c0_139] : memref<2x8x128xf32, #tpu.memory_space<vmem>>, vector<2x8x128xf32>
      %c0_140 = arith.constant 0 : index
      %c0_141 = arith.constant 0 : index
      %c0_142 = arith.constant 0 : index
      %464 = vector.load %arg14[%c0_140, %c0_141, %c0_142] : memref<2x8x128xf32, #tpu.memory_space<vmem>>, vector<2x8x128xf32>
      tpu.vector_store %arg14[%c0_140, %c0_141, %c0_142], %463 {strides = array<i32>} : memref<2x8x128xf32, #tpu.memory_space<vmem>>, vector<2x8x128xf32>,
    } else {
    }
    return
  }
  func.func @transform_0(%arg0: i32) -> (i32, i32) {
    %c0_i32 = arith.constant 0 : i32
    %c0_i32_0 = arith.constant 0 : i32
    return %arg0, %c0_i32 : i32, i32
  }
  func.func @transform_1(%arg0: i32) -> (i32, i32, i32) {
    %c0_i32 = arith.constant 0 : i32
    %c0_i32_0 = arith.constant 0 : i32
    %c0_i32_1 = arith.constant 0 : i32
    %c0_i32_2 = arith.constant 0 : i32
    return %c0_i32, %c0_i32_0, %c0_i32_1 : i32, i32, i32
  }
  func.func @transform_2(%arg0: i32) -> (i32, i32) {
    %c0_i32 = arith.constant 0 : i32
    %c0_i32_0 = arith.constant 0 : i32
    %c0_i32_1 = arith.constant 0 : i32
    return %c0_i32, %c0_i32_0 : i32, i32
  }
  func.func @transform_3(%arg0: i32) -> (i32, i32) {
    %c0_i32 = arith.constant 0 : i32
    %c0_i32_0 = arith.constant 0 : i32
    %c0_i32_1 = arith.constant 0 : i32
    return %c0_i32, %c0_i32_0 : i32, i32
  }
  func.func @transform_4(%arg0: i32) -> (i32, i32) {
    %c0_i32 = arith.constant 0 : i32
    %c0_i32_0 = arith.constant 0 : i32
    %c0_i32_1 = arith.constant 0 : i32
    return %c0_i32, %c0_i32_0 : i32, i32
  }
  func.func @transform_5(%arg0: i32) -> (i32, i32) {
    %c0_i32 = arith.constant 0 : i32
    %c0_i32_0 = arith.constant 0 : i32
    %c0_i32_1 = arith.constant 0 : i32
    return %c0_i32, %c0_i32_0 : i32, i32
  }
  func.func @transform_6(%arg0: i32) -> (i32, i32) {
    %c0_i32 = arith.constant 0 : i32
    %c0_i32_0 = arith.constant 0 : i32
    %c0_i32_1 = arith.constant 0 : i32
    return %c0_i32, %c0_i32_0 : i32, i32
  }
  func.func @transform_7(%arg0: i32) -> (i32, i32) {
    %c0_i32 = arith.constant 0 : i32
    %c0_i32_0 = arith.constant 0 : i32
    %c0_i32_1 = arith.constant 0 : i32
    return %c0_i32, %c0_i32_0 : i32, i32
  }
  func.func @transform_8(%arg0: i32) -> (i32, i32) {
    %c0_i32 = arith.constant 0 : i32
    %c0_i32_0 = arith.constant 0 : i32
    %c0_i32_1 = arith.constant 0 : i32
    return %c0_i32, %c0_i32_0 : i32, i32
  }
  func.func @transform_9(%arg0: i32) -> (i32, i32) {
    %c0_i32 = arith.constant 0 : i32
    %c0_i32_0 = arith.constant 0 : i32
    %c0_i32_1 = arith.constant 0 : i32
    return %c0_i32, %c0_i32_0 : i32, i32
  }
  func.func @transform_10(%arg0: i32) -> (i32, i32) {
    %c0_i32 = arith.constant 0 : i32
    %c0_i32_0 = arith.constant 0 : i32
    %c0_i32_1 = arith.constant 0 : i32
    return %c0_i32, %c0_i32_0 : i32, i32
  }
  func.func @transform_11(%arg0: i32) -> (i32, i32) {
    %c0_i32 = arith.constant 0 : i32
    %c0_i32_0 = arith.constant 0 : i32
    %c0_i32_1 = arith.constant 0 : i32
    return %c0_i32, %c0_i32_0 : i32, i32
  }
  func.func @transform_12(%arg0: i32) -> (i32, i32) {
    %c0_i32 = arith.constant 0 : i32
    %c0_i32_0 = arith.constant 0 : i32
    return %arg0, %c0_i32 : i32, i32
  }
  func.func @transform_13(%arg0: i32) -> (i32, i32, i32) {
    %c0_i32 = arith.constant 0 : i32
    %c0_i32_0 = arith.constant 0 : i32
    %c0_i32_1 = arith.constant 0 : i32
    %c0_i32_2 = arith.constant 0 : i32
    return %c0_i32, %c0_i32_0, %c0_i32_1 : i32, i32, i32
  }
}

</mosaic_0001>

<llo_original>
// kernel: gru_forward.1
$region0: #{gru_forward.1}
  #allocation0 [shape = 'u32[]', space=smem, size = 0x4, offset = 0x4, fixed_abs, tag = 'smem constant byte address 0x4 - core index']
  #allocation1 [shape = 'u32[144,128]{1,0:T(1,128)}', space=vmem, size = 0x12000, scoped, tag = 'internal scratch']
  #allocation2 [shape = 'f32[2,8,128]{2,1,0:T(8,128)}', space=vmem, size = 0x2000, scoped, tag = 'scratch operand']
  #allocation3 [shape = 'f32[64,128]{1,0:T(8,128)}', space=vmem, size = 0x8000, scoped, tag = 'scratch operand']
  #allocation4 [shape = 'f32[64,384]{1,0:T(8,128)}', space=vmem, size = 0x18000, scoped, tag = 'scratch operand']
  %s0 = inlined_call_operand.vmem [shape: bf16[64,16], index: 0, kind: input, shape index: {}]
  %s1 = inlined_call_operand.vmem [shape: f32[2,8,128], index: 1, kind: input, shape index: {}]
  %s2 = inlined_call_operand.vmem [shape: bf16[16,384], index: 2, kind: input, shape index: {}]
  %s3 = inlined_call_operand.vmem [shape: f32[128,384], index: 3, kind: input, shape index: {}]
  %s4 = inlined_call_operand.vmem [shape: f32[1,384], index: 4, kind: input, shape index: {}]
  %s5 = inlined_call_operand.vmem [shape: f32[1,384], index: 5, kind: input, shape index: {}]
  %s6 = inlined_call_operand.vmem [shape: bf16[128,384], index: 6, kind: input, shape index: {}]
  %s7 = inlined_call_operand.vmem [shape: f32[128,384], index: 7, kind: input, shape index: {}]
  %s8 = inlined_call_operand.vmem [shape: f32[1,384], index: 8, kind: input, shape index: {}]
  %s9 = inlined_call_operand.vmem [shape: f32[1,384], index: 9, kind: input, shape index: {}]
  %s10 = inlined_call_operand.vmem [shape: bf16[128,128], index: 10, kind: input, shape index: {}]
  %s11 = inlined_call_operand.vmem [shape: f32[1,128], index: 11, kind: input, shape index: {}]
  %s12 = inlined_call_operand.vmem [shape: f32[64,128], index: 12, kind: output, shape index: {0}]
  %s13 = inlined_call_operand.vmem [shape: f32[2,8,128], index: 13, kind: output, shape index: {1}]
  %14 = xla_tuple %s12, %s13
  %s15 = sld [smem:[#allocation0]]
  $region74: #{gru_forward.1} parent=0
    _
  %s17 = ssub.s32 1, %s15
  %s18 = scalar_select 0, %s17, %s15
  // Predicated region
  $region2: #{gru_forward.1} parent=0 // pred_check
    _
  $region3: #{gru_forward.1} parent=0 // pred_check_branch
    %20 = sbr.rel (0) target = $region5
  $region4: #{gru_forward.1} parent=0 // pred_region
    _
  $region5: #{gru_forward.1} parent=0 // pred_fallthru
    _
  // Predicated region
  $region6: #{gru_forward.1} parent=0 // pred_check
    _
  $region7: #{gru_forward.1} parent=0 // pred_check_branch
    %22 = sbr.rel (0) target = $region9
  $region8: #{gru_forward.1} parent=0 // pred_region
    _
  $region9: #{gru_forward.1} parent=0 // pred_fallthru
    _
  // Predicated region
  $region10: #{gru_forward.1} parent=0 // pred_check
    _
  $region11: #{gru_forward.1} parent=0 // pred_check_branch
    %24 = sbr.rel (0) target = $region13
  $region12: #{gru_forward.1} parent=0 // pred_region
    _
  $region13: #{gru_forward.1} parent=0 // pred_fallthru
    _
  // Predicated region
  $region14: #{gru_forward.1} parent=0 // pred_check
    _
  $region15: #{gru_forward.1} parent=0 // pred_check_branch
    %26 = sbr.rel (0) target = $region17
  $region16: #{gru_forward.1} parent=0 // pred_region
    _
  $region17: #{gru_forward.1} parent=0 // pred_fallthru
    _
  // Predicated region
  $region18: #{gru_forward.1} parent=0 // pred_check
    _
  $region19: #{gru_forward.1} parent=0 // pred_check_branch
    %28 = sbr.rel (0) target = $region21
  $region20: #{gru_forward.1} parent=0 // pred_region
    _
  $region21: #{gru_forward.1} parent=0 // pred_fallthru
    _
  // Predicated region
  $region22: #{gru_forward.1} parent=0 // pred_check
    _
  $region23: #{gru_forward.1} parent=0 // pred_check_branch
    %30 = sbr.rel (0) target = $region25
  $region24: #{gru_forward.1} parent=0 // pred_region
    _
  $region25: #{gru_forward.1} parent=0 // pred_fallthru
    _
  // Predicated region
  $region26: #{gru_forward.1} parent=0 // pred_check
    _
  $region27: #{gru_forward.1} parent=0 // pred_check_branch
    %32 = sbr.rel (0) target = $region29
  $region28: #{gru_forward.1} parent=0 // pred_region
    _
  $region29: #{gru_forward.1} parent=0 // pred_fallthru
    _
  // Predicated region
  $region30: #{gru_forward.1} parent=0 // pred_check
    _
  $region31: #{gru_forward.1} parent=0 // pred_check_branch
    %34 = sbr.rel (0) target = $region33
  $region32: #{gru_forward.1} parent=0 // pred_region
    _
  $region33: #{gru_forward.1} parent=0 // pred_fallthru
    _
  // Predicated region
  $region34: #{gru_forward.1} parent=0 // pred_check
    _
  $region35: #{gru_forward.1} parent=0 // pred_check_branch
    %36 = sbr.rel (0) target = $region37
  $region36: #{gru_forward.1} parent=0 // pred_region
    _
  $region37: #{gru_forward.1} parent=0 // pred_fallthru
    _
  // Predicated region
  $region38: #{gru_forward.1} parent=0 // pred_check
    _
  $region39: #{gru_forward.1} parent=0 // pred_check_branch
    %38 = sbr.rel (0) target = $region41
  $region40: #{gru_forward.1} parent=0 // pred_region
    _
  $region41: #{gru_forward.1} parent=0 // pred_fallthru
    _
  // Predicated region
  $region42: #{gru_forward.1} parent=0 // pred_check
    _
  $region43: #{gru_forward.1} parent=0 // pred_check_branch
    %40 = sbr.rel (0) target = $region45
  $region44: #{gru_forward.1} parent=0 // pred_region
    _
  $region45: #{gru_forward.1} parent=0 // pred_fallthru
    _
  // Predicated region
  $region46: #{gru_forward.1} parent=0 // pred_check
    _
  $region47: #{gru_forward.1} parent=0 // pred_check_branch
    %42 = sbr.rel (0) target = $region49
  $region48: #{gru_forward.1} parent=0 // pred_region
    _
  $region49: #{gru_forward.1} parent=0 // pred_fallthru
    _
  %p44 = scmp.eq.s32.totalorder 0, 0
  // Predicated region
  $region50: #{gru_forward.1} parent=0 // pred_check
    %p45 = pneg %p44
  $region51: #{gru_forward.1} parent=0 // pred_check_branch
    %47 = sbr.rel (%p45) target = $region53
  $region52: #{gru_forward.1} parent=0 // pred_region
    %v48 = vld [vmem:[%s1] sm:$0xff]
    %v49 = vld [vmem:[%s1 + $0x8] sm:$0xff]
    %50 = vst [vmem:[#allocation2] sm:$0xff] %v48
    %51 = vst [vmem:[#allocation2 + $0x8] sm:$0xff] %v49
  $region53: #{gru_forward.1} parent=0 // pred_fallthru
    _
  %v52 = vld [vmem:[%s0] sm:$0xf]
  %v53 = vld [vmem:[%s0 + $0x4] sm:$0xf]
  %v54 = vld [vmem:[%s0 + $0x8] sm:$0xf]
  %v55 = vld [vmem:[%s0 + $0xc] sm:$0xf]
  %v56 = vld [vmem:[%s0 + $0x10] sm:$0xf]
  %v57 = vld [vmem:[%s0 + $0x14] sm:$0xf]
  %v58 = vld [vmem:[%s0 + $0x18] sm:$0xf]
  %v59 = vld [vmem:[%s0 + $0x1c] sm:$0xf]
  %v60 = vld [vmem:[%s2] sm:$0xff]
  %v61 = vld [vmem:[%s2 + $0x8] sm:$0xf]
  %v62 = vld [vmem:[%s2 + $0xc] sm:$0xff]
  %v63 = vld [vmem:[%s2 + $0x14] sm:$0xf]
  %v64 = vld [vmem:[%s4] sm:$0x7]
  %v66 = vlaneseq
  %v67 = vshrl.u32 %v66, 7
  %v68 = vsub.s32 0, %v67
  %v69 = vrot.slane %v64, %v68
  %v70 = vlaneseq
  %v71 = vshrl.u32 %v70, 7
  %v72 = vsub.s32 1, %v71
  %v73 = vrot.slane %v64, %v72
  %v74 = vlaneseq
  %v75 = vshrl.u32 %v74, 7
  %v76 = vsub.s32 2, %v75
  %v77 = vrot.slane %v64, %v76
  %v89 = vunpack.c.l.b16 %v52
  %v90 = vunpack.c.l.b16 %v53
  %v91 = vunpack.c.l.b16 %v54
  %v92 = vunpack.c.l.b16 %v55
  %v93 = vunpack.c.l.b16 %v56
  %v94 = vunpack.c.l.b16 %v57
  %v95 = vunpack.c.l.b16 %v58
  %v96 = vunpack.c.l.b16 %v59
  %v97 = vpack.c.b16 %v90, %v89
  %v98 = vpack.c.b16 %v92, %v91
  %v99 = vpack.c.b16 %v94, %v93
  %v100 = vpack.c.b16 %v96, %v95
  %v105 = vunpack.c.l.b16 %v60
  %v106 = vunpack.c.h.b16 %v60
  %v107 = vunpack.c.l.b16 %v61
  %v108 = vunpack.c.l.b16 %v62
  %v109 = vunpack.c.h.b16 %v62
  %v110 = vunpack.c.l.b16 %v63
  %v111 = vpack.c.b16 %v108, %v105
  %v112 = vpack.c.b16 %v109, %v106
  %v113 = vpack.c.b16 %v110, %v107
  %vm117 = vcmask 130048
  %v119 = vsel %vm117, %v97, 0
  %v122 = vsel %vm117, %v98, 0
  %v125 = vsel %vm117, %v99, 0
  %v128 = vsel %vm117, %v100, 0
  %130 = vmatprep.subr.bf16.mxu0 %v112
  %131 = vmatpush1.bf16.msra.mxu0 %v111
  %132 = vmatprep.subr.bf16.mxu0 0
  %133 = vmatpush1.bf16.msra.mxu0 0
  %134 = vmatprep.subr.bf16.mxu0 0
  %135 = vmatpush1.bf16.msra.mxu0 0
  %136 = vmatprep.subr.bf16.mxu0 0
  %137 = vmatpush1.bf16.msra.mxu0 0
  %138 = vmatprep.subr.bf16.mxu0 0
  %139 = vmatpush1.bf16.msra.mxu0 0
  %140 = vmatprep.subr.bf16.mxu0 0
  %141 = vmatpush1.bf16.msra.mxu0 0
  %142 = vmatprep.subr.bf16.mxu0 0
  %143 = vmatpush1.bf16.msra.mxu0 0
  %144 = vmatprep.subr.bf16.mxu0 0
  %145 = vmatpush1.bf16.msra.mxu0 0
  %146 = vmatprep.subr.bf16.mxu0 0
  %147 = vmatpush1.bf16.msra.mxu0 0
  %148 = vmatprep.subr.bf16.mxu0 0
  %149 = vmatpush1.bf16.msra.mxu0 0
  %150 = vmatprep.subr.bf16.mxu0 0
  %151 = vmatpush1.bf16.msra.mxu0 0
  %152 = vmatprep.subr.bf16.mxu0 0
  %153 = vmatpush1.bf16.msra.mxu0 0
  %154 = vmatprep.subr.bf16.mxu0 0
  %155 = vmatpush1.bf16.msra.mxu0 0
  %156 = vmatprep.subr.bf16.mxu0 0
  %157 = vmatpush1.bf16.msra.mxu0 0
  %158 = vmatprep.subr.bf16.mxu0 0
  %159 = vmatpush1.bf16.msra.mxu0 0
  %160 = vmatprep.subr.bf16.mxu0 0
  %161 = vmatpush1.bf16.msra.mxu0 0
  %162 = vmatprep.mubr.bf16.mxu0 0
  %163 = vmatmul.mubr.bf16.gmra.mrb[0].mxu0 %v119
  %v164 = vpop.f32.mrb[0].mxu0
  %v165 = vadd.f32 %v69, %v164
  %v166 = vpop.f32.mrb[0].mxu0
  %v167 = vadd.f32 %v73, %v166
  %v168 = vpop.f32.mrb[0].mxu0
  %v169 = vadd.f32 %v69, %v168
  %v170 = vpop.f32.mrb[0].mxu0
  %v171 = vadd.f32 %v73, %v170
  %172 = vmatprep.mubr.bf16.mxu0 0
  %173 = vmatmul.mubr.bf16.gmra.mrb[0].mxu0 %v122
  %v174 = vpop.f32.mrb[0].mxu0
  %v175 = vadd.f32 %v69, %v174
  %v176 = vpop.f32.mrb[0].mxu0
  %v177 = vadd.f32 %v73, %v176
  %v178 = vpop.f32.mrb[0].mxu0
  %v179 = vadd.f32 %v69, %v178
  %v180 = vpop.f32.mrb[0].mxu0
  %v181 = vadd.f32 %v73, %v180
  %182 = vmatprep.mubr.bf16.mxu0 0
  %183 = vmatmul.mubr.bf16.gmra.mrb[0].mxu0 %v125
  %v184 = vpop.f32.mrb[0].mxu0
  %v185 = vadd.f32 %v69, %v184
  %v186 = vpop.f32.mrb[0].mxu0
  %v187 = vadd.f32 %v73, %v186
  %v188 = vpop.f32.mrb[0].mxu0
  %v189 = vadd.f32 %v69, %v188
  %v190 = vpop.f32.mrb[0].mxu0
  %v191 = vadd.f32 %v73, %v190
  %192 = vmatprep.mubr.bf16.mxu0 0
  %193 = vmatmul.mubr.bf16.gmra.mrb[0].mxu0 %v128
  %v194 = vpop.f32.mrb[0].mxu0
  %v195 = vadd.f32 %v69, %v194
  %v196 = vpop.f32.mrb[0].mxu0
  %v197 = vadd.f32 %v73, %v196
  %v198 = vpop.f32.mrb[0].mxu0
  %v199 = vadd.f32 %v69, %v198
  %v200 = vpop.f32.mrb[0].mxu0
  %v201 = vadd.f32 %v73, %v200
  %202 = vdwg.mxu0
  %203 = vmatprep.subr.bf16.mxu0 0
  %204 = vmatpush1.bf16.msra.mxu0 %v113
  %205 = vmatprep.subr.bf16.mxu0 0
  %206 = vmatpush1.bf16.msra.mxu0 0
  %207 = vmatprep.subr.bf16.mxu0 0
  %208 = vmatpush1.bf16.msra.mxu0 0
  %209 = vmatprep.subr.bf16.mxu0 0
  %210 = vmatpush1.bf16.msra.mxu0 0
  %211 = vmatprep.subr.bf16.mxu0 0
  %212 = vmatpush1.bf16.msra.mxu0 0
  %213 = vmatprep.subr.bf16.mxu0 0
  %214 = vmatpush1.bf16.msra.mxu0 0
  %215 = vmatprep.subr.bf16.mxu0 0
  %216 = vmatpush1.bf16.msra.mxu0 0
  %217 = vmatprep.subr.bf16.mxu0 0
  %218 = vmatpush1.bf16.msra.mxu0 0
  %219 = vmatprep.subr.bf16.mxu0 0
  %220 = vmatpush1.bf16.msra.mxu0 0
  %221 = vmatprep.subr.bf16.mxu0 0
  %222 = vmatpush1.bf16.msra.mxu0 0
  %223 = vmatprep.subr.bf16.mxu0 0
  %224 = vmatpush1.bf16.msra.mxu0 0
  %225 = vmatprep.subr.bf16.mxu0 0
  %226 = vmatpush1.bf16.msra.mxu0 0
  %227 = vmatprep.subr.bf16.mxu0 0
  %228 = vmatpush1.bf16.msra.mxu0 0
  %229 = vmatprep.subr.bf16.mxu0 0
  %230 = vmatpush1.bf16.msra.mxu0 0
  %231 = vmatprep.subr.bf16.mxu0 0
  %232 = vmatpush1.bf16.msra.mxu0 0
  %233 = vmatprep.subr.bf16.mxu0 0
  %234 = vmatpush1.bf16.msra.mxu0 0
  %235 = vmatprep.mubr.bf16.mxu0 0
  %236 = vmatmul.mubr.bf16.gmra.mrb[0].mxu0 %v119
  %v237 = vpop.f32.mrb[0].mxu0
  %v238 = vadd.f32 %v77, %v237
  %v239 = vpop.f32.mrb[0].mxu0
  %v240 = vpop.f32.mrb[0].mxu0
  %v241 = vadd.f32 %v77, %v240
  %v242 = vpop.f32.mrb[0].mxu0
  %243 = vmatprep.mubr.bf16.mxu0 0
  %244 = vmatmul.mubr.bf16.gmra.mrb[0].mxu0 %v122
  %v245 = vpop.f32.mrb[0].mxu0
  %v246 = vadd.f32 %v77, %v245
  %v247 = vpop.f32.mrb[0].mxu0
  %v248 = vpop.f32.mrb[0].mxu0
  %v249 = vadd.f32 %v77, %v248
  %v250 = vpop.f32.mrb[0].mxu0
  %251 = vmatprep.mubr.bf16.mxu0 0
  %252 = vmatmul.mubr.bf16.gmra.mrb[0].mxu0 %v125
  %v253 = vpop.f32.mrb[0].mxu0
  %v254 = vadd.f32 %v77, %v253
  %v255 = vpop.f32.mrb[0].mxu0
  %v256 = vpop.f32.mrb[0].mxu0
  %v257 = vadd.f32 %v77, %v256
  %v258 = vpop.f32.mrb[0].mxu0
  %259 = vmatprep.mubr.bf16.mxu0 0
  %260 = vmatmul.mubr.bf16.gmra.mrb[0].mxu0 %v128
  %v261 = vpop.f32.mrb[0].mxu0
  %v262 = vadd.f32 %v77, %v261
  %v263 = vpop.f32.mrb[0].mxu0
  %v264 = vpop.f32.mrb[0].mxu0
  %v265 = vadd.f32 %v77, %v264
  %v266 = vpop.f32.mrb[0].mxu0
  %267 = vdwg.mxu0
  %268 = vst [vmem:[#allocation4] sm:$0xff] %v165
  %269 = vst [vmem:[#allocation4 + $0x8] sm:$0xff] %v167
  %270 = vst [vmem:[#allocation4 + $0x10] sm:$0xff] %v238
  %271 = vst [vmem:[#allocation4 + $0x18] sm:$0xff] %v169
  %272 = vst [vmem:[#allocation4 + $0x20] sm:$0xff] %v171
  %273 = vst [vmem:[#allocation4 + $0x28] sm:$0xff] %v241
  %274 = vst [vmem:[#allocation4 + $0x30] sm:$0xff] %v175
  %275 = vst [vmem:[#allocation4 + $0x38] sm:$0xff] %v177
  %276 = vst [vmem:[#allocation4 + $0x40] sm:$0xff] %v246
  %277 = vst [vmem:[#allocation4 + $0x48] sm:$0xff] %v179
  %278 = vst [vmem:[#allocation4 + $0x50] sm:$0xff] %v181
  %279 = vst [vmem:[#allocation4 + $0x58] sm:$0xff] %v249
  %280 = vst [vmem:[#allocation4 + $0x60] sm:$0xff] %v185
  %281 = vst [vmem:[#allocation4 + $0x68] sm:$0xff] %v187
  %282 = vst [vmem:[#allocation4 + $0x70] sm:$0xff] %v254
  %283 = vst [vmem:[#allocation4 + $0x78] sm:$0xff] %v189
  %284 = vst [vmem:[#allocation4 + $0x80] sm:$0xff] %v191
  %285 = vst [vmem:[#allocation4 + $0x88] sm:$0xff] %v257
  %286 = vst [vmem:[#allocation4 + $0x90] sm:$0xff] %v195
  %287 = vst [vmem:[#allocation4 + $0x98] sm:$0xff] %v197
  %288 = vst [vmem:[#allocation4 + $0xa0] sm:$0xff] %v262
  %289 = vst [vmem:[#allocation4 + $0xa8] sm:$0xff] %v199
  %290 = vst [vmem:[#allocation4 + $0xb0] sm:$0xff] %v201
  %291 = vst [vmem:[#allocation4 + $0xb8] sm:$0xff] %v265
  %v292 = vld [vmem:[%s3] sm:$0xff]
  %v293 = vld [vmem:[%s3 + $0x8] sm:$0xff]
  %v294 = vld [vmem:[%s3 + $0x10] sm:$0xff]
  %v295 = vld [vmem:[%s3 + $0x18] sm:$0xff]
  %v296 = vld [vmem:[%s3 + $0x20] sm:$0xff]
  %v297 = vld [vmem:[%s3 + $0x28] sm:$0xff]
  %v298 = vld [vmem:[%s3 + $0x30] sm:$0xff]
  %v299 = vld [vmem:[%s3 + $0x38] sm:$0xff]
  %v300 = vld [vmem:[%s3 + $0x40] sm:$0xff]
  %v301 = vld [vmem:[%s3 + $0x48] sm:$0xff]
  %v302 = vld [vmem:[%s3 + $0x50] sm:$0xff]
  %v303 = vld [vmem:[%s3 + $0x58] sm:$0xff]
  %v304 = vld [vmem:[%s3 + $0x60] sm:$0xff]
  %v305 = vld [vmem:[%s3 + $0x68] sm:$0xff]
  %v306 = vld [vmem:[%s3 + $0x70] sm:$0xff]
  %v307 = vld [vmem:[%s3 + $0x78] sm:$0xff]
  %v308 = vld [vmem:[%s3 + $0x80] sm:$0xff]
  %v309 = vld [vmem:[%s3 + $0x88] sm:$0xff]
  %v310 = vld [vmem:[%s3 + $0x90] sm:$0xff]
  %v311 = vld [vmem:[%s3 + $0x98] sm:$0xff]
  %v312 = vld [vmem:[%s3 + $0xa0] sm:$0xff]
  %v313 = vld [vmem:[%s3 + $0xa8] sm:$0xff]
  %v314 = vld [vmem:[%s3 + $0xb0] sm:$0xff]
  %v315 = vld [vmem:[%s3 + $0xb8] sm:$0xff]
  %v316 = vld [vmem:[%s3 + $0xc0] sm:$0xff]
  %v317 = vld [vmem:[%s3 + $0xc8] sm:$0xff]
  %v318 = vld [vmem:[%s3 + $0xd0] sm:$0xff]
  %v319 = vld [vmem:[%s3 + $0xd8] sm:$0xff]
  %v320 = vld [vmem:[%s3 + $0xe0] sm:$0xff]
  %v321 = vld [vmem:[%s3 + $0xe8] sm:$0xff]
  %v322 = vld [vmem:[%s3 + $0xf0] sm:$0xff]
  %v323 = vld [vmem:[%s3 + $0xf8] sm:$0xff]
  %v324 = vld [vmem:[%s3 + $0x100] sm:$0xff]
  %v325 = vld [vmem:[%s3 + $0x108] sm:$0xff]
  %v326 = vld [vmem:[%s3 + $0x110] sm:$0xff]
  %v327 = vld [vmem:[%s3 + $0x118] sm:$0xff]
  %v328 = vld [vmem:[%s3 + $0x120] sm:$0xff]
  %v329 = vld [vmem:[%s3 + $0x128] sm:$0xff]
  %v330 = vld [vmem:[%s3 + $0x130] sm:$0xff]
  %v331 = vld [vmem:[%s3 + $0x138] sm:$0xff]
  %v332 = vld [vmem:[%s3 + $0x140] sm:$0xff]
  %v333 = vld [vmem:[%s3 + $0x148] sm:$0xff]
  %v334 = vld [vmem:[%s3 + $0x150] sm:$0xff]
  %v335 = vld [vmem:[%s3 + $0x158] sm:$0xff]
  %v336 = vld [vmem:[%s3 + $0x160] sm:$0xff]
  %v337 = vld [vmem:[%s3 + $0x168] sm:$0xff]
  %v338 = vld [vmem:[%s3 + $0x170] sm:$0xff]
  %v339 = vld [vmem:[%s3 + $0x178] sm:$0xff]
  %v340 = vld [vmem:[%s5] sm:$0x7]
  %v342 = vlaneseq
  %v343 = vshrl.u32 %v342, 7
  %v344 = vsub.s32 0, %v343
  %v345 = vrot.slane %v340, %v344
  %v346 = vlaneseq
  %v347 = vshrl.u32 %v346, 7
  %v348 = vsub.s32 1, %v347
  %v349 = vrot.slane %v340, %v348
  %v350 = vlaneseq
  %v351 = vshrl.u32 %v350, 7
  %v352 = vsub.s32 2, %v351
  %v353 = vrot.slane %v340, %v352
  %v357 = vld [vmem:[#allocation2] sm:$0xff]
  %s358 = smul.u32 0, 3
  %s359 = smul.addr %s358, 8
  %s360 = scalar_lea.vmem [#allocation4], %s359
  %v361 = vld [vmem:[%s360] sm:$0xff]
  %v362 = vld [vmem:[%s360 + $0x8] sm:$0xff]
  %v363 = vld [vmem:[%s360 + $0x10] sm:$0xff]
  %364 = vmatprep.subr.mxu0 %v293
  %365 = vmatpush1.msra.mxu0 %v292
  %366 = vmatprep.subr.mxu0 %v296
  %367 = vmatpush1.msra.mxu0 %v295
  %368 = vmatprep.subr.mxu0 %v299
  %369 = vmatpush1.msra.mxu0 %v298
  %370 = vmatprep.subr.mxu0 %v302
  %371 = vmatpush1.msra.mxu0 %v301
  %372 = vmatprep.subr.mxu0 %v305
  %373 = vmatpush1.msra.mxu0 %v304
  %374 = vmatprep.subr.mxu0 %v308
  %375 = vmatpush1.msra.mxu0 %v307
  %376 = vmatprep.subr.mxu0 %v311
  %377 = vmatpush1.msra.mxu0 %v310
  %378 = vmatprep.subr.mxu0 %v314
  %379 = vmatpush1.msra.mxu0 %v313
  %380 = vmatprep.subr.mxu0 %v317
  %381 = vmatpush1.msra.mxu0 %v316
  %382 = vmatprep.subr.mxu0 %v320
  %383 = vmatpush1.msra.mxu0 %v319
  %384 = vmatprep.subr.mxu0 %v323
  %385 = vmatpush1.msra.mxu0 %v322
  %386 = vmatprep.subr.mxu0 %v326
  %387 = vmatpush1.msra.mxu0 %v325
  %388 = vmatprep.subr.mxu0 %v329
  %389 = vmatpush1.msra.mxu0 %v328
  %390 = vmatprep.subr.mxu0 %v332
  %391 = vmatpush1.msra.mxu0 %v331
  %392 = vmatprep.subr.mxu0 %v335
  %393 = vmatpush1.msra.mxu0 %v334
  %394 = vmatprep.subr.mxu0 %v338
  %395 = vmatpush1.msra.mxu0 %v337
  %396 = vmatprep.subr.mxu0 0.0
  %397 = vmatpush1.msra.mxu0 0.0
  %398 = vmatprep.subr.mxu0 0.0
  %399 = vmatpush1.msra.mxu0 0.0
  %400 = vmatprep.subr.mxu0 0.0
  %401 = vmatpush1.msra.mxu0 0.0
  %402 = vmatprep.subr.mxu0 0.0
  %403 = vmatpush1.msra.mxu0 0.0
  %404 = vmatprep.subr.mxu0 0.0
  %405 = vmatpush1.msra.mxu0 0.0
  %406 = vmatprep.subr.mxu0 0.0
  %407 = vmatpush1.msra.mxu0 0.0
  %408 = vmatprep.subr.mxu0 0.0
  %409 = vmatpush1.msra.mxu0 0.0
  %410 = vmatprep.subr.mxu0 0.0
  %411 = vmatpush1.msra.mxu0 0.0
  %412 = vmatprep.subr.mxu0 0.0
  %413 = vmatpush1.msra.mxu0 0.0
  %414 = vmatprep.subr.mxu0 0.0
  %415 = vmatpush1.msra.mxu0 0.0
  %416 = vmatprep.subr.mxu0 0.0
  %417 = vmatpush1.msra.mxu0 0.0
  %418 = vmatprep.subr.mxu0 0.0
  %419 = vmatpush1.msra.mxu0 0.0
  %420 = vmatprep.subr.mxu0 0.0
  %421 = vmatpush1.msra.mxu0 0.0
  %422 = vmatprep.subr.mxu0 0.0
  %423 = vmatpush1.msra.mxu0 0.0
  %424 = vmatprep.subr.mxu0 0.0
  %425 = vmatpush1.msra.mxu0 0.0
  %426 = vmatprep.subr.mxu0 0.0
  %427 = vmatpush1.msra.mxu0 0.0
  %428 = vmatprep.mubr.f32.mxu0 0.0
  %429 = vmatmul.mubr.f32.gmra.mrb[0].mxu0 %v357
  %v430 = vpop.f32.mrb[0].mxu0
  %v431 = vadd.f32 %v345, %v430
  %v432 = vpop.f32.mrb[0].mxu0
  %v433 = vadd.f32 %v349, %v432
  %434 = vdwg.mxu0
  %435 = vmatprep.subr.mxu0 0.0
  %436 = vmatpush1.msra.mxu0 %v294
  %437 = vmatprep.subr.mxu0 0.0
  %438 = vmatpush1.msra.mxu0 %v297
  %439 = vmatprep.subr.mxu0 0.0
  %440 = vmatpush1.msra.mxu0 %v300
  %441 = vmatprep.subr.mxu0 0.0
  %442 = vmatpush1.msra.mxu0 %v303
  %443 = vmatprep.subr.mxu0 0.0
  %444 = vmatpush1.msra.mxu0 %v306
  %445 = vmatprep.subr.mxu0 0.0
  %446 = vmatpush1.msra.mxu0 %v309
  %447 = vmatprep.subr.mxu0 0.0
  %448 = vmatpush1.msra.mxu0 %v312
  %449 = vmatprep.subr.mxu0 0.0
  %450 = vmatpush1.msra.mxu0 %v315
  %451 = vmatprep.subr.mxu0 0.0
  %452 = vmatpush1.msra.mxu0 %v318
  %453 = vmatprep.subr.mxu0 0.0
  %454 = vmatpush1.msra.mxu0 %v321
  %455 = vmatprep.subr.mxu0 0.0
  %456 = vmatpush1.msra.mxu0 %v324
  %457 = vmatprep.subr.mxu0 0.0
  %458 = vmatpush1.msra.mxu0 %v327
  %459 = vmatprep.subr.mxu0 0.0
  %460 = vmatpush1.msra.mxu0 %v330
  %461 = vmatprep.subr.mxu0 0.0
  %462 = vmatpush1.msra.mxu0 %v333
  %463 = vmatprep.subr.mxu0 0.0
  %464 = vmatpush1.msra.mxu0 %v336
  %465 = vmatprep.subr.mxu0 0.0
  %466 = vmatpush1.msra.mxu0 %v339
  %467 = vmatprep.subr.mxu0 0.0
  %468 = vmatpush1.msra.mxu0 0.0
  %469 = vmatprep.subr.mxu0 0.0
  %470 = vmatpush1.msra.mxu0 0.0
  %471 = vmatprep.subr.mxu0 0.0
  %472 = vmatpush1.msra.mxu0 0.0
  %473 = vmatprep.subr.mxu0 0.0
  %474 = vmatpush1.msra.mxu0 0.0
  %475 = vmatprep.subr.mxu0 0.0
  %476 = vmatpush1.msra.mxu0 0.0
  %477 = vmatprep.subr.mxu0 0.0
  %478 = vmatpush1.msra.mxu0 0.0
  %479 = vmatprep.subr.mxu0 0.0
  %480 = vmatpush1.msra.mxu0 0.0
  %481 = vmatprep.subr.mxu0 0.0
  %482 = vmatpush1.msra.mxu0 0.0
  %483 = vmatprep.subr.mxu0 0.0
  %484 = vmatpush1.msra.mxu0 0.0
  %485 = vmatprep.subr.mxu0 0.0
  %486 = vmatpush1.msra.mxu0 0.0
  %487 = vmatprep.subr.mxu0 0.0
  %488 = vmatpush1.msra.mxu0 0.0
  %489 = vmatprep.subr.mxu0 0.0
  %490 = vmatpush1.msra.mxu0 0.0
  %491 = vmatprep.subr.mxu0 0.0
  %492 = vmatpush1.msra.mxu0 0.0
  %493 = vmatprep.subr.mxu0 0.0
  %494 = vmatpush1.msra.mxu0 0.0
  %495 = vmatprep.subr.mxu0 0.0
  %496 = vmatpush1.msra.mxu0 0.0
  %497 = vmatprep.subr.mxu0 0.0
  %498 = vmatpush1.msra.mxu0 0.0
  %499 = vmatprep.mubr.f32.mxu0 0.0
  %500 = vmatmul.mubr.f32.gmra.mrb[0].mxu0 %v357
  %v501 = vpop.f32.mrb[0].mxu0
  %v502 = vadd.f32 %v353, %v501
  %v503 = vpop.f32.mrb[0].mxu0
  %504 = vdwg.mxu0
  %v505 = vadd.f32 %v361, %v431
  %v506 = vadd.f32 %v362, %v433
  %v507 = vxor.u32 %v505, 2147483648
  %v508 = vxor.u32 %v506, 2147483648
  %v509 = vmul.f32 %v507, 1.442695
  %v510 = vpow.pop %v509
  %v511 = vmul.f32 %v508, 1.442695
  %v512 = vpow.pop %v511
  %v513 = vadd.f32 %v510, 1.0
  %v514 = vadd.f32 %v512, 1.0
  %v515 = vrcp.pop %v513
  %v516 = vmul.f32 1.0, %v515
  %v517 = vrcp.pop %v514
  %v518 = vmul.f32 1.0, %v517
  %v519 = vmul.f32 %v516, %v502
  %v520 = vadd.f32 %v363, %v519
  %v521 = vtanh.pop %v520
  %v522 = vsub.f32 %v357, %v521
  %v523 = vmul.f32 %v518, %v522
  %v524 = vadd.f32 %v521, %v523
  %525 = vst [vmem:[#allocation3] sm:$0xff] %v524
  %s526 = smul.u32 1, 3
  %s527 = smul.addr %s526, 8
  %s528 = scalar_lea.vmem [#allocation4], %s527
  %v529 = vld [vmem:[%s528] sm:$0xff]
  %v530 = vld [vmem:[%s528 + $0x8] sm:$0xff]
  %v531 = vld [vmem:[%s528 + $0x10] sm:$0xff]
  %532 = vmatprep.subr.mxu0 %v293
  %533 = vmatpush1.msra.mxu0 %v292
  %534 = vmatprep.subr.mxu0 %v296
  %535 = vmatpush1.msra.mxu0 %v295
  %536 = vmatprep.subr.mxu0 %v299
  %537 = vmatpush1.msra.mxu0 %v298
  %538 = vmatprep.subr.mxu0 %v302
  %539 = vmatpush1.msra.mxu0 %v301
  %540 = vmatprep.subr.mxu0 %v305
  %541 = vmatpush1.msra.mxu0 %v304
  %542 = vmatprep.subr.mxu0 %v308
  %543 = vmatpush1.msra.mxu0 %v307
  %544 = vmatprep.subr.mxu0 %v311
  %545 = vmatpush1.msra.mxu0 %v310
  %546 = vmatprep.subr.mxu0 %v314
  %547 = vmatpush1.msra.mxu0 %v313
  %548 = vmatprep.subr.mxu0 %v317
  %549 = vmatpush1.msra.mxu0 %v316
  %550 = vmatprep.subr.mxu0 %v320
  %551 = vmatpush1.msra.mxu0 %v319
  %552 = vmatprep.subr.mxu0 %v323
  %553 = vmatpush1.msra.mxu0 %v322
  %554 = vmatprep.subr.mxu0 %v326
  %555 = vmatpush1.msra.mxu0 %v325
  %556 = vmatprep.subr.mxu0 %v329
  %557 = vmatpush1.msra.mxu0 %v328
  %558 = vmatprep.subr.mxu0 %v332
  %559 = vmatpush1.msra.mxu0 %v331
  %560 = vmatprep.subr.mxu0 %v335
  %561 = vmatpush1.msra.mxu0 %v334
  %562 = vmatprep.subr.mxu0 %v338
  %563 = vmatpush1.msra.mxu0 %v337
  %564 = vmatprep.subr.mxu0 0.0
  %565 = vmatpush1.msra.mxu0 0.0
  %566 = vmatprep.subr.mxu0 0.0
  %567 = vmatpush1.msra.mxu0 0.0
  %568 = vmatprep.subr.mxu0 0.0
  %569 = vmatpush1.msra.mxu0 0.0
  %570 = vmatprep.subr.mxu0 0.0
  %571 = vmatpush1.msra.mxu0 0.0
  %572 = vmatprep.subr.mxu0 0.0
  %573 = vmatpush1.msra.mxu0 0.0
  %574 = vmatprep.subr.mxu0 0.0
  %575 = vmatpush1.msra.mxu0 0.0
  %576 = vmatprep.subr.mxu0 0.0
  %577 = vmatpush1.msra.mxu0 0.0
  %578 = vmatprep.subr.mxu0 0.0
  %579 = vmatpush1.msra.mxu0 0.0
  %580 = vmatprep.subr.mxu0 0.0
  %581 = vmatpush1.msra.mxu0 0.0
  %582 = vmatprep.subr.mxu0 0.0
  %583 = vmatpush1.msra.mxu0 0.0
  %584 = vmatprep.subr.mxu0 0.0
  %585 = vmatpush1.msra.mxu0 0.0
  %586 = vmatprep.subr.mxu0 0.0
  %587 = vmatpush1.msra.mxu0 0.0
  %588 = vmatprep.subr.mxu0 0.0
  %589 = vmatpush1.msra.mxu0 0.0
  %590 = vmatprep.subr.mxu0 0.0
  %591 = vmatpush1.msra.mxu0 0.0
  %592 = vmatprep.subr.mxu0 0.0
  %593 = vmatpush1.msra.mxu0 0.0
  %594 = vmatprep.subr.mxu0 0.0
  %595 = vmatpush1.msra.mxu0 0.0
  %596 = vmatprep.mubr.f32.mxu0 0.0
  %597 = vmatmul.mubr.f32.gmra.mrb[0].mxu0 %v524
  %v598 = vpop.f32.mrb[0].mxu0
  %v599 = vadd.f32 %v345, %v598
  %v600 = vpop.f32.mrb[0].mxu0
  %v601 = vadd.f32 %v349, %v600
  %602 = vdwg.mxu0
  %603 = vmatprep.subr.mxu0 0.0
  %604 = vmatpush1.msra.mxu0 %v294
  %605 = vmatprep.subr.mxu0 0.0
  %606 = vmatpush1.msra.mxu0 %v297
  %607 = vmatprep.subr.mxu0 0.0
  %608 = vmatpush1.msra.mxu0 %v300
  %609 = vmatprep.subr.mxu0 0.0
  %610 = vmatpush1.msra.mxu0 %v303
  %611 = vmatprep.subr.mxu0 0.0
  %612 = vmatpush1.msra.mxu0 %v306
  %613 = vmatprep.subr.mxu0 0.0
  %614 = vmatpush1.msra.mxu0 %v309
  %615 = vmatprep.subr.mxu0 0.0
  %616 = vmatpush1.msra.mxu0 %v312
  %617 = vmatprep.subr.mxu0 0.0
  %618 = vmatpush1.msra.mxu0 %v315
  %619 = vmatprep.subr.mxu0 0.0
  %620 = vmatpush1.msra.mxu0 %v318
  %621 = vmatprep.subr.mxu0 0.0
  %622 = vmatpush1.msra.mxu0 %v321
  %623 = vmatprep.subr.mxu0 0.0
  %624 = vmatpush1.msra.mxu0 %v324
  %625 = vmatprep.subr.mxu0 0.0
  %626 = vmatpush1.msra.mxu0 %v327
  %627 = vmatprep.subr.mxu0 0.0
  %628 = vmatpush1.msra.mxu0 %v330
  %629 = vmatprep.subr.mxu0 0.0
  %630 = vmatpush1.msra.mxu0 %v333
  %631 = vmatprep.subr.mxu0 0.0
  %632 = vmatpush1.msra.mxu0 %v336
  %633 = vmatprep.subr.mxu0 0.0
  %634 = vmatpush1.msra.mxu0 %v339
  %635 = vmatprep.subr.mxu0 0.0
  %636 = vmatpush1.msra.mxu0 0.0
  %637 = vmatprep.subr.mxu0 0.0
  %638 = vmatpush1.msra.mxu0 0.0
  %639 = vmatprep.subr.mxu0 0.0
  %640 = vmatpush1.msra.mxu0 0.0
  %641 = vmatprep.subr.mxu0 0.0
  %642 = vmatpush1.msra.mxu0 0.0
  %643 = vmatprep.subr.mxu0 0.0
  %644 = vmatpush1.msra.mxu0 0.0
  %645 = vmatprep.subr.mxu0 0.0
  %646 = vmatpush1.msra.mxu0 0.0
  %647 = vmatprep.subr.mxu0 0.0
  %648 = vmatpush1.msra.mxu0 0.0
  %649 = vmatprep.subr.mxu0 0.0
  %650 = vmatpush1.msra.mxu0 0.0
  %651 = vmatprep.subr.mxu0 0.0
  %652 = vmatpush1.msra.mxu0 0.0
  %653 = vmatprep.subr.mxu0 0.0
  %654 = vmatpush1.msra.mxu0 0.0
  %655 = vmatprep.subr.mxu0 0.0
  %656 = vmatpush1.msra.mxu0 0.0
  %657 = vmatprep.subr.mxu0 0.0
  %658 = vmatpush1.msra.mxu0 0.0
  %659 = vmatprep.subr.mxu0 0.0
  %660 = vmatpush1.msra.mxu0 0.0
  %661 = vmatprep.subr.mxu0 0.0
  %662 = vmatpush1.msra.mxu0 0.0
  %663 = vmatprep.subr.mxu0 0.0
  %664 = vmatpush1.msra.mxu0 0.0
  %665 = vmatprep.subr.mxu0 0.0
  %666 = vmatpush1.msra.mxu0 0.0
  %667 = vmatprep.mubr.f32.mxu0 0.0
  %668 = vmatmul.mubr.f32.gmra.mrb[0].mxu0 %v524
  %v669 = vpop.f32.mrb[0].mxu0
  %v670 = vadd.f32 %v353, %v669
  %v671 = vpop.f32.mrb[0].mxu0
  %672 = vdwg.mxu0
  %v673 = vadd.f32 %v529, %v599
  %v674 = vadd.f32 %v530, %v601
  %v675 = vxor.u32 %v673, 2147483648
  %v676 = vxor.u32 %v674, 2147483648
  %v677 = vmul.f32 %v675, 1.442695
  %v678 = vpow.pop %v677
  %v679 = vmul.f32 %v676, 1.442695
  %v680 = vpow.pop %v679
  %v681 = vadd.f32 %v678, 1.0
  %v682 = vadd.f32 %v680, 1.0
  %v683 = vrcp.pop %v681
  %v684 = vmul.f32 1.0, %v683
  %v685 = vrcp.pop %v682
  %v686 = vmul.f32 1.0, %v685
  %v687 = vmul.f32 %v684, %v670
  %v688 = vadd.f32 %v531, %v687
  %v689 = vtanh.pop %v688
  %v690 = vsub.f32 %v524, %v689
  %v691 = vmul.f32 %v686, %v690
  %v692 = vadd.f32 %v689, %v691
  %s693 = scalar_lea.vmem [#allocation3], 8
  %694 = vst [vmem:[%s693] sm:$0xff] %v692
  %s695 = smul.u32 2, 3
  %s696 = smul.addr %s695, 8
  %s697 = scalar_lea.vmem [#allocation4], %s696
  %v698 = vld [vmem:[%s697] sm:$0xff]
  %v699 = vld [vmem:[%s697 + $0x8] sm:$0xff]
  %v700 = vld [vmem:[%s697 + $0x10] sm:$0xff]
  %701 = vmatprep.subr.mxu0 %v293
  %702 = vmatpush1.msra.mxu0 %v292
  %703 = vmatprep.subr.mxu0 %v296
  %704 = vmatpush1.msra.mxu0 %v295
  %705 = vmatprep.subr.mxu0 %v299
  %706 = vmatpush1.msra.mxu0 %v298
  %707 = vmatprep.subr.mxu0 %v302
  %708 = vmatpush1.msra.mxu0 %v301
  %709 = vmatprep.subr.mxu0 %v305
  %710 = vmatpush1.msra.mxu0 %v304
  %711 = vmatprep.subr.mxu0 %v308
  %712 = vmatpush1.msra.mxu0 %v307
  %713 = vmatprep.subr.mxu0 %v311
  %714 = vmatpush1.msra.mxu0 %v310
  %715 = vmatprep.subr.mxu0 %v314
  %716 = vmatpush1.msra.mxu0 %v313
  %717 = vmatprep.subr.mxu0 %v317
  %718 = vmatpush1.msra.mxu0 %v316
  %719 = vmatprep.subr.mxu0 %v320
  %720 = vmatpush1.msra.mxu0 %v319
  %721 = vmatprep.subr.mxu0 %v323
  %722 = vmatpush1.msra.mxu0 %v322
  %723 = vmatprep.subr.mxu0 %v326
  %724 = vmatpush1.msra.mxu0 %v325
  %725 = vmatprep.subr.mxu0 %v329
  %726 = vmatpush1.msra.mxu0 %v328
  %727 = vmatprep.subr.mxu0 %v332
  %728 = vmatpush1.msra.mxu0 %v331
  %729 = vmatprep.subr.mxu0 %v335
  %730 = vmatpush1.msra.mxu0 %v334
  %731 = vmatprep.subr.mxu0 %v338
  %732 = vmatpush1.msra.mxu0 %v337
  %733 = vmatprep.subr.mxu0 0.0
  %734 = vmatpush1.msra.mxu0 0.0
  %735 = vmatprep.subr.mxu0 0.0
  %736 = vmatpush1.msra.mxu0 0.0
  %737 = vmatprep.subr.mxu0 0.0
  %738 = vmatpush1.msra.mxu0 0.0
  %739 = vmatprep.subr.mxu0 0.0
  %740 = vmatpush1.msra.mxu0 0.0
  %741 = vmatprep.subr.mxu0 0.0
  %742 = vmatpush1.msra.mxu0 0.0
  %743 = vmatprep.subr.mxu0 0.0
  %744 = vmatpush1.msra.mxu0 0.0
  %745 = vmatprep.subr.mxu0 0.0
  %746 = vmatpush1.msra.mxu0 0.0
  %747 = vmatprep.subr.mxu0 0.0
  %748 = vmatpush1.msra.mxu0 0.0
  %749 = vmatprep.subr.mxu0 0.0
  %750 = vmatpush1.msra.mxu0 0.0
  %751 = vmatprep.subr.mxu0 0.0
  %752 = vmatpush1.msra.mxu0 0.0
  %753 = vmatprep.subr.mxu0 0.0
  %754 = vmatpush1.msra.mxu0 0.0
  %755 = vmatprep.subr.mxu0 0.0
  %756 = vmatpush1.msra.mxu0 0.0
  %757 = vmatprep.subr.mxu0 0.0
  %758 = vmatpush1.msra.mxu0 0.0
  %759 = vmatprep.subr.mxu0 0.0
  %760 = vmatpush1.msra.mxu0 0.0
  %761 = vmatprep.subr.mxu0 0.0
  %762 = vmatpush1.msra.mxu0 0.0
  %763 = vmatprep.subr.mxu0 0.0
  %764 = vmatpush1.msra.mxu0 0.0
  %765 = vmatprep.mubr.f32.mxu0 0.0
  %766 = vmatmul.mubr.f32.gmra.mrb[0].mxu0 %v692
  %v767 = vpop.f32.mrb[0].mxu0
  %v768 = vadd.f32 %v345, %v767
  %v769 = vpop.f32.mrb[0].mxu0
  %v770 = vadd.f32 %v349, %v769
  %771 = vdwg.mxu0
  %772 = vmatprep.subr.mxu0 0.0
  %773 = vmatpush1.msra.mxu0 %v294
  %774 = vmatprep.subr.mxu0 0.0
  %775 = vmatpush1.msra.mxu0 %v297
  %776 = vmatprep.subr.mxu0 0.0
  %777 = vmatpush1.msra.mxu0 %v300
  %778 = vmatprep.subr.mxu0 0.0
  %779 = vmatpush1.msra.mxu0 %v303
  %780 = vmatprep.subr.mxu0 0.0
  %781 = vmatpush1.msra.mxu0 %v306
  %782 = vmatprep.subr.mxu0 0.0
  %783 = vmatpush1.msra.mxu0 %v309
  %784 = vmatprep.subr.mxu0 0.0
  %785 = vmatpush1.msra.mxu0 %v312
  %786 = vmatprep.subr.mxu0 0.0
  %787 = vmatpush1.msra.mxu0 %v315
  %788 = vmatprep.subr.mxu0 0.0
  %789 = vmatpush1.msra.mxu0 %v318
  %790 = vmatprep.subr.mxu0 0.0
  %791 = vmatpush1.msra.mxu0 %v321
  %792 = vmatprep.subr.mxu0 0.0
  %793 = vmatpush1.msra.mxu0 %v324
  %794 = vmatprep.subr.mxu0 0.0
  %795 = vmatpush1.msra.mxu0 %v327
  %796 = vmatprep.subr.mxu0 0.0
  %797 = vmatpush1.msra.mxu0 %v330
  %798 = vmatprep.subr.mxu0 0.0
  %799 = vmatpush1.msra.mxu0 %v333
  %800 = vmatprep.subr.mxu0 0.0
  %801 = vmatpush1.msra.mxu0 %v336
  %802 = vmatprep.subr.mxu0 0.0
  %803 = vmatpush1.msra.mxu0 %v339
  %804 = vmatprep.subr.mxu0 0.0
  %805 = vmatpush1.msra.mxu0 0.0
  %806 = vmatprep.subr.mxu0 0.0
  %807 = vmatpush1.msra.mxu0 0.0
  %808 = vmatprep.subr.mxu0 0.0
  %809 = vmatpush1.msra.mxu0 0.0
  %810 = vmatprep.subr.mxu0 0.0
  %811 = vmatpush1.msra.mxu0 0.0
  %812 = vmatprep.subr.mxu0 0.0
  %813 = vmatpush1.msra.mxu0 0.0
  %814 = vmatprep.subr.mxu0 0.0
  %815 = vmatpush1.msra.mxu0 0.0
  %816 = vmatprep.subr.mxu0 0.0
  %817 = vmatpush1.msra.mxu0 0.0
  %818 = vmatprep.subr.mxu0 0.0
  %819 = vmatpush1.msra.mxu0 0.0
  %820 = vmatprep.subr.mxu0 0.0
  %821 = vmatpush1.msra.mxu0 0.0
  %822 = vmatprep.subr.mxu0 0.0
  %823 = vmatpush1.msra.mxu0 0.0
  %824 = vmatprep.subr.mxu0 0.0
  %825 = vmatpush1.msra.mxu0 0.0
  %826 = vmatprep.subr.mxu0 0.0
  %827 = vmatpush1.msra.mxu0 0.0
  %828 = vmatprep.subr.mxu0 0.0
  %829 = vmatpush1.msra.mxu0 0.0
  %830 = vmatprep.subr.mxu0 0.0
  %831 = vmatpush1.msra.mxu0 0.0
  %832 = vmatprep.subr.mxu0 0.0
  %833 = vmatpush1.msra.mxu0 0.0
  %834 = vmatprep.subr.mxu0 0.0
  %835 = vmatpush1.msra.mxu0 0.0
  %836 = vmatprep.mubr.f32.mxu0 0.0
  %837 = vmatmul.mubr.f32.gmra.mrb[0].mxu0 %v692
  %v838 = vpop.f32.mrb[0].mxu0
  %v839 = vadd.f32 %v353, %v838
  %v840 = vpop.f32.mrb[0].mxu0
  %841 = vdwg.mxu0
  %v842 = vadd.f32 %v698, %v768
  %v843 = vadd.f32 %v699, %v770
  %v844 = vxor.u32 %v842, 2147483648
  %v845 = vxor.u32 %v843, 2147483648
  %v846 = vmul.f32 %v844, 1.442695
  %v847 = vpow.pop %v846
  %v848 = vmul.f32 %v845, 1.442695
  %v849 = vpow.pop %v848
  %v850 = vadd.f32 %v847, 1.0
  %v851 = vadd.f32 %v849, 1.0
  %v852 = vrcp.pop %v850
  %v853 = vmul.f32 1.0, %v852
  %v854 = vrcp.pop %v851
  %v855 = vmul.f32 1.0, %v854
  %v856 = vmul.f32 %v853, %v839
  %v857 = vadd.f32 %v700, %v856
  %v858 = vtanh.pop %v857
  %v859 = vsub.f32 %v692, %v858
  %v860 = vmul.f32 %v855, %v859
  %v861 = vadd.f32 %v858, %v860
  %s862 = scalar_lea.vmem [#allocation3], 16
  %863 = vst [vmem:[%s862] sm:$0xff] %v861
  %s864 = smul.u32 3, 3
  %s865 = smul.addr %s864, 8
  %s866 = scalar_lea.vmem [#allocation4], %s865
  %v867 = vld [vmem:[%s866] sm:$0xff]
  %v868 = vld [vmem:[%s866 + $0x8] sm:$0xff]
  %v869 = vld [vmem:[%s866 + $0x10] sm:$0xff]
  %870 = vmatprep.subr.mxu0 %v293
  %871 = vmatpush1.msra.mxu0 %v292
  %872 = vmatprep.subr.mxu0 %v296
  %873 = vmatpush1.msra.mxu0 %v295
  %874 = vmatprep.subr.mxu0 %v299
  %875 = vmatpush1.msra.mxu0 %v298
  %876 = vmatprep.subr.mxu0 %v302
  %877 = vmatpush1.msra.mxu0 %v301
  %878 = vmatprep.subr.mxu0 %v305
  %879 = vmatpush1.msra.mxu0 %v304
  %880 = vmatprep.subr.mxu0 %v308
  %881 = vmatpush1.msra.mxu0 %v307
  %882 = vmatprep.subr.mxu0 %v311
  %883 = vmatpush1.msra.mxu0 %v310
  %884 = vmatprep.subr.mxu0 %v314
  %885 = vmatpush1.msra.mxu0 %v313
  %886 = vmatprep.subr.mxu0 %v317
  %887 = vmatpush1.msra.mxu0 %v316
  %888 = vmatprep.subr.mxu0 %v320
  %889 = vmatpush1.msra.mxu0 %v319
  %890 = vmatprep.subr.mxu0 %v323
  %891 = vmatpush1.msra.mxu0 %v322
  %892 = vmatprep.subr.mxu0 %v326
  %893 = vmatpush1.msra.mxu0 %v325
  %894 = vmatprep.subr.mxu0 %v329
  %895 = vmatpush1.msra.mxu0 %v328
  %896 = vmatprep.subr.mxu0 %v332
  %897 = vmatpush1.msra.mxu0 %v331
  %898 = vmatprep.subr.mxu0 %v335
  %899 = vmatpush1.msra.mxu0 %v334
  %900 = vmatprep.subr.mxu0 %v338
  %901 = vmatpush1.msra.mxu0 %v337
  %902 = vmatprep.subr.mxu0 0.0
  %903 = vmatpush1.msra.mxu0 0.0
  %904 = vmatprep.subr.mxu0 0.0
  %905 = vmatpush1.msra.mxu0 0.0
  %906 = vmatprep.subr.mxu0 0.0
  %907 = vmatpush1.msra.mxu0 0.0
  %908 = vmatprep.subr.mxu0 0.0
  %909 = vmatpush1.msra.mxu0 0.0
  %910 = vmatprep.subr.mxu0 0.0
  %911 = vmatpush1.msra.mxu0 0.0
  %912 = vmatprep.subr.mxu0 0.0
  %913 = vmatpush1.msra.mxu0 0.0
  %914 = vmatprep.subr.mxu0 0.0
  %915 = vmatpush1.msra.mxu0 0.0
  %916 = vmatprep.subr.mxu0 0.0
  %917 = vmatpush1.msra.mxu0 0.0
  %918 = vmatprep.subr.mxu0 0.0
  %919 = vmatpush1.msra.mxu0 0.0
  %920 = vmatprep.subr.mxu0 0.0
  %921 = vmatpush1.msra.mxu0 0.0
  %922 = vmatprep.subr.mxu0 0.0
  %923 = vmatpush1.msra.mxu0 0.0
  %924 = vmatprep.subr.mxu0 0.0
  %925 = vmatpush1.msra.mxu0 0.0
  %926 = vmatprep.subr.mxu0 0.0
  %927 = vmatpush1.msra.mxu0 0.0
  %928 = vmatprep.subr.mxu0 0.0
  %929 = vmatpush1.msra.mxu0 0.0
  %930 = vmatprep.subr.mxu0 0.0
  %931 = vmatpush1.msra.mxu0 0.0
  %932 = vmatprep.subr.mxu0 0.0
  %933 = vmatpush1.msra.mxu0 0.0
  %934 = vmatprep.mubr.f32.mxu0 0.0
  %935 = vmatmul.mubr.f32.gmra.mrb[0].mxu0 %v861
  %v936 = vpop.f32.mrb[0].mxu0
  %v937 = vadd.f32 %v345, %v936
  %v938 = vpop.f32.mrb[0].mxu0
  %v939 = vadd.f32 %v349, %v938
  %940 = vdwg.mxu0
  %941 = vmatprep.subr.mxu0 0.0
  %942 = vmatpush1.msra.mxu0 %v294
  %943 = vmatprep.subr.mxu0 0.0
  %944 = vmatpush1.msra.mxu0 %v297
  %945 = vmatprep.subr.mxu0 0.0
  %946 = vmatpush1.msra.mxu0 %v300
  %947 = vmatprep.subr.mxu0 0.0
  %948 = vmatpush1.msra.mxu0 %v303
  %949 = vmatprep.subr.mxu0 0.0
  %950 = vmatpush1.msra.mxu0 %v306
  %951 = vmatprep.subr.mxu0 0.0
  %952 = vmatpush1.msra.mxu0 %v309
  %953 = vmatprep.subr.mxu0 0.0
  %954 = vmatpush1.msra.mxu0 %v312
  %955 = vmatprep.subr.mxu0 0.0
  %956 = vmatpush1.msra.mxu0 %v315
  %957 = vmatprep.subr.mxu0 0.0
  %958 = vmatpush1.msra.mxu0 %v318
  %959 = vmatprep.subr.mxu0 0.0
  %960 = vmatpush1.msra.mxu0 %v321
  %961 = vmatprep.subr.mxu0 0.0
  %962 = vmatpush1.msra.mxu0 %v324
  %963 = vmatprep.subr.mxu0 0.0
  %964 = vmatpush1.msra.mxu0 %v327
  %965 = vmatprep.subr.mxu0 0.0
  %966 = vmatpush1.msra.mxu0 %v330
  %967 = vmatprep.subr.mxu0 0.0
  %968 = vmatpush1.msra.mxu0 %v333
  %969 = vmatprep.subr.mxu0 0.0
  %970 = vmatpush1.msra.mxu0 %v336
  %971 = vmatprep.subr.mxu0 0.0
  %972 = vmatpush1.msra.mxu0 %v339
  %973 = vmatprep.subr.mxu0 0.0
  %974 = vmatpush1.msra.mxu0 0.0
  %975 = vmatprep.subr.mxu0 0.0
  %976 = vmatpush1.msra.mxu0 0.0
  %977 = vmatprep.subr.mxu0 0.0
  %978 = vmatpush1.msra.mxu0 0.0
  %979 = vmatprep.subr.mxu0 0.0
  %980 = vmatpush1.msra.mxu0 0.0
  %981 = vmatprep.subr.mxu0 0.0
  %982 = vmatpush1.msra.mxu0 0.0
  %983 = vmatprep.subr.mxu0 0.0
  %984 = vmatpush1.msra.mxu0 0.0
  %985 = vmatprep.subr.mxu0 0.0
  %986 = vmatpush1.msra.mxu0 0.0
  %987 = vmatprep.subr.mxu0 0.0
  %988 = vmatpush1.msra.mxu0 0.0
  %989 = vmatprep.subr.mxu0 0.0
  %990 = vmatpush1.msra.mxu0 0.0
  %991 = vmatprep.subr.mxu0 0.0
  %992 = vmatpush1.msra.mxu0 0.0
  %993 = vmatprep.subr.mxu0 0.0
  %994 = vmatpush1.msra.mxu0 0.0
  %995 = vmatprep.subr.mxu0 0.0
  %996 = vmatpush1.msra.mxu0 0.0
  %997 = vmatprep.subr.mxu0 0.0
  %998 = vmatpush1.msra.mxu0 0.0
  %999 = vmatprep.subr.mxu0 0.0
  %1000 = vmatpush1.msra.mxu0 0.0
  %1001 = vmatprep.subr.mxu0 0.0
  %1002 = vmatpush1.msra.mxu0 0.0
  %1003 = vmatprep.subr.mxu0 0.0
  %1004 = vmatpush1.msra.mxu0 0.0
  %1005 = vmatprep.mubr.f32.mxu0 0.0
  %1006 = vmatmul.mubr.f32.gmra.mrb[0].mxu0 %v861
  %v1007 = vpop.f32.mrb[0].mxu0
  %v1008 = vadd.f32 %v353, %v1007
  %v1009 = vpop.f32.mrb[0].mxu0
  %1010 = vdwg.mxu0
  %v1011 = vadd.f32 %v867, %v937
  %v1012 = vadd.f32 %v868, %v939
  %v1013 = vxor.u32 %v1011, 2147483648
  %v1014 = vxor.u32 %v1012, 2147483648
  %v1015 = vmul.f32 %v1013, 1.442695
  %v1016 = vpow.pop %v1015
  %v1017 = vmul.f32 %v1014, 1.442695
  %v1018 = vpow.pop %v1017
  %v1019 = vadd.f32 %v1016, 1.0
  %v1020 = vadd.f32 %v1018, 1.0
  %v1021 = vrcp.pop %v1019
  %v1022 = vmul.f32 1.0, %v1021
  %v1023 = vrcp.pop %v1020
  %v1024 = vmul.f32 1.0, %v1023
  %v1025 = vmul.f32 %v1022, %v1008
  %v1026 = vadd.f32 %v869, %v1025
  %v1027 = vtanh.pop %v1026
  %v1028 = vsub.f32 %v861, %v1027
  %v1029 = vmul.f32 %v1024, %v1028
  %v1030 = vadd.f32 %v1027, %v1029
  %s1031 = scalar_lea.vmem [#allocation3], 24
  %1032 = vst [vmem:[%s1031] sm:$0xff] %v1030
  %s1033 = smul.u32 4, 3
  %s1034 = smul.addr %s1033, 8
  %s1035 = scalar_lea.vmem [#allocation4], %s1034
  %v1036 = vld [vmem:[%s1035] sm:$0xff]
  %v1037 = vld [vmem:[%s1035 + $0x8] sm:$0xff]
  %v1038 = vld [vmem:[%s1035 + $0x10] sm:$0xff]
  %1039 = vmatprep.subr.mxu0 %v293
  %1040 = vmatpush1.msra.mxu0 %v292
  %1041 = vmatprep.subr.mxu0 %v296
  %1042 = vmatpush1.msra.mxu0 %v295
  %1043 = vmatprep.subr.mxu0 %v299
  %1044 = vmatpush1.msra.mxu0 %v298
  %1045 = vmatprep.subr.mxu0 %v302
  %1046 = vmatpush1.msra.mxu0 %v301
  %1047 = vmatprep.subr.mxu0 %v305
  %1048 = vmatpush1.msra.mxu0 %v304
  %1049 = vmatprep.subr.mxu0 %v308
  %1050 = vmatpush1.msra.mxu0 %v307
  %1051 = vmatprep.subr.mxu0 %v311
  %1052 = vmatpush1.msra.mxu0 %v310
  %1053 = vmatprep.subr.mxu0 %v314
  %1054 = vmatpush1.msra.mxu0 %v313
  %1055 = vmatprep.subr.mxu0 %v317
  %1056 = vmatpush1.msra.mxu0 %v316
  %1057 = vmatprep.subr.mxu0 %v320
  %1058 = vmatpush1.msra.mxu0 %v319
  %1059 = vmatprep.subr.mxu0 %v323
  %1060 = vmatpush1.msra.mxu0 %v322
  %1061 = vmatprep.subr.mxu0 %v326
  %1062 = vmatpush1.msra.mxu0 %v325
  %1063 = vmatprep.subr.mxu0 %v329
  %1064 = vmatpush1.msra.mxu0 %v328
  %1065 = vmatprep.subr.mxu0 %v332
  %1066 = vmatpush1.msra.mxu0 %v331
  %1067 = vmatprep.subr.mxu0 %v335
  %1068 = vmatpush1.msra.mxu0 %v334
  %1069 = vmatprep.subr.mxu0 %v338
  %1070 = vmatpush1.msra.mxu0 %v337
  %1071 = vmatprep.subr.mxu0 0.0
  %1072 = vmatpush1.msra.mxu0 0.0
  %1073 = vmatprep.subr.mxu0 0.0
  %1074 = vmatpush1.msra.mxu0 0.0
  %1075 = vmatprep.subr.mxu0 0.0
  %1076 = vmatpush1.msra.mxu0 0.0
  %1077 = vmatprep.subr.mxu0 0.0
  %1078 = vmatpush1.msra.mxu0 0.0
  %1079 = vmatprep.subr.mxu0 0.0
  %1080 = vmatpush1.msra.mxu0 0.0
  %1081 = vmatprep.subr.mxu0 0.0
  %1082 = vmatpush1.msra.mxu0 0.0
  %1083 = vmatprep.subr.mxu0 0.0
  %1084 = vmatpush1.msra.mxu0 0.0
  %1085 = vmatprep.subr.mxu0 0.0
  %1086 = vmatpush1.msra.mxu0 0.0
  %1087 = vmatprep.subr.mxu0 0.0
  %1088 = vmatpush1.msra.mxu0 0.0
  %1089 = vmatprep.subr.mxu0 0.0
  %1090 = vmatpush1.msra.mxu0 0.0
  %1091 = vmatprep.subr.mxu0 0.0
  %1092 = vmatpush1.msra.mxu0 0.0
  %1093 = vmatprep.subr.mxu0 0.0
  %1094 = vmatpush1.msra.mxu0 0.0
  %1095 = vmatprep.subr.mxu0 0.0
  %1096 = vmatpush1.msra.mxu0 0.0
  %1097 = vmatprep.subr.mxu0 0.0
  %1098 = vmatpush1.msra.mxu0 0.0
  %1099 = vmatprep.subr.mxu0 0.0
  %1100 = vmatpush1.msra.mxu0 0.0
  %1101 = vmatprep.subr.mxu0 0.0
  %1102 = vmatpush1.msra.mxu0 0.0
  %1103 = vmatprep.mubr.f32.mxu0 0.0
  %1104 = vmatmul.mubr.f32.gmra.mrb[0].mxu0 %v1030
  %v1105 = vpop.f32.mrb[0].mxu0
  %v1106 = vadd.f32 %v345, %v1105
  %v1107 = vpop.f32.mrb[0].mxu0
  %v1108 = vadd.f32 %v349, %v1107
  %1109 = vdwg.mxu0
  %1110 = vmatprep.subr.mxu0 0.0
  %1111 = vmatpush1.msra.mxu0 %v294
  %1112 = vmatprep.subr.mxu0 0.0
  %1113 = vmatpush1.msra.mxu0 %v297
  %1114 = vmatprep.subr.mxu0 0.0
  %1115 = vmatpush1.msra.mxu0 %v300
  %1116 = vmatprep.subr.mxu0 0.0
  %1117 = vmatpush1.msra.mxu0 %v303
  %1118 = vmatprep.subr.mxu0 0.0
  %1119 = vmatpush1.msra.mxu0 %v306
  %1120 = vmatprep.subr.mxu0 0.0
  %1121 = vmatpush1.msra.mxu0 %v309
  %1122 = vmatprep.subr.mxu0 0.0
  %1123 = vmatpush1.msra.mxu0 %v312
  %1124 = vmatprep.subr.mxu0 0.0
  %1125 = vmatpush1.msra.mxu0 %v315
  %1126 = vmatprep.subr.mxu0 0.0
  %1127 = vmatpush1.msra.mxu0 %v318
  %1128 = vmatprep.subr.mxu0 0.0
  %1129 = vmatpush1.msra.mxu0 %v321
  %1130 = vmatprep.subr.mxu0 0.0
  %1131 = vmatpush1.msra.mxu0 %v324
  %1132 = vmatprep.subr.mxu0 0.0
  %1133 = vmatpush1.msra.mxu0 %v327
  %1134 = vmatprep.subr.mxu0 0.0
  %1135 = vmatpush1.msra.mxu0 %v330
  %1136 = vmatprep.subr.mxu0 0.0
  %1137 = vmatpush1.msra.mxu0 %v333
  %1138 = vmatprep.subr.mxu0 0.0
  %1139 = vmatpush1.msra.mxu0 %v336
  %1140 = vmatprep.subr.mxu0 0.0
  %1141 = vmatpush1.msra.mxu0 %v339
  %1142 = vmatprep.subr.mxu0 0.0
  %1143 = vmatpush1.msra.mxu0 0.0
  %1144 = vmatprep.subr.mxu0 0.0
  %1145 = vmatpush1.msra.mxu0 0.0
  %1146 = vmatprep.subr.mxu0 0.0
  %1147 = vmatpush1.msra.mxu0 0.0
  %1148 = vmatprep.subr.mxu0 0.0
  %1149 = vmatpush1.msra.mxu0 0.0
  %1150 = vmatprep.subr.mxu0 0.0
  %1151 = vmatpush1.msra.mxu0 0.0
  %1152 = vmatprep.subr.mxu0 0.0
  %1153 = vmatpush1.msra.mxu0 0.0
  %1154 = vmatprep.subr.mxu0 0.0
  %1155 = vmatpush1.msra.mxu0 0.0
  %1156 = vmatprep.subr.mxu0 0.0
  %1157 = vmatpush1.msra.mxu0 0.0
  %1158 = vmatprep.subr.mxu0 0.0
  %1159 = vmatpush1.msra.mxu0 0.0
  %1160 = vmatprep.subr.mxu0 0.0
  %1161 = vmatpush1.msra.mxu0 0.0
  %1162 = vmatprep.subr.mxu0 0.0
  %1163 = vmatpush1.msra.mxu0 0.0
  %1164 = vmatprep.subr.mxu0 0.0
  %1165 = vmatpush1.msra.mxu0 0.0
  %1166 = vmatprep.subr.mxu0 0.0
  %1167 = vmatpush1.msra.mxu0 0.0
  %1168 = vmatprep.subr.mxu0 0.0
  %1169 = vmatpush1.msra.mxu0 0.0
  %1170 = vmatprep.subr.mxu0 0.0
  %1171 = vmatpush1.msra.mxu0 0.0
  %1172 = vmatprep.subr.mxu0 0.0
  %1173 = vmatpush1.msra.mxu0 0.0
  %1174 = vmatprep.mubr.f32.mxu0 0.0
  %1175 = vmatmul.mubr.f32.gmra.mrb[0].mxu0 %v1030
  %v1176 = vpop.f32.mrb[0].mxu0
  %v1177 = vadd.f32 %v353, %v1176
  %v1178 = vpop.f32.mrb[0].mxu0
  %1179 = vdwg.mxu0
  %v1180 = vadd.f32 %v1036, %v1106
  %v1181 = vadd.f32 %v1037, %v1108
  %v1182 = vxor.u32 %v1180, 2147483648
  %v1183 = vxor.u32 %v1181, 2147483648
  %v1184 = vmul.f32 %v1182, 1.442695
  %v1185 = vpow.pop %v1184
  %v1186 = vmul.f32 %v1183, 1.442695
  %v1187 = vpow.pop %v1186
  %v1188 = vadd.f32 %v1185, 1.0
  %v1189 = vadd.f32 %v1187, 1.0
  %v1190 = vrcp.pop %v1188
  %v1191 = vmul.f32 1.0, %v1190
  %v1192 = vrcp.pop %v1189
  %v1193 = vmul.f32 1.0, %v1192
  %v1194 = vmul.f32 %v1191, %v1177
  %v1195 = vadd.f32 %v1038, %v1194
  %v1196 = vtanh.pop %v1195
  %v1197 = vsub.f32 %v1030, %v1196
  %v1198 = vmul.f32 %v1193, %v1197
  %v1199 = vadd.f32 %v1196, %v1198
  %s1200 = scalar_lea.vmem [#allocation3], 32
  %1201 = vst [vmem:[%s1200] sm:$0xff] %v1199
  %s1202 = smul.u32 5, 3
  %s1203 = smul.addr %s1202, 8
  %s1204 = scalar_lea.vmem [#allocation4], %s1203
  %v1205 = vld [vmem:[%s1204] sm:$0xff]
  %v1206 = vld [vmem:[%s1204 + $0x8] sm:$0xff]
  %v1207 = vld [vmem:[%s1204 + $0x10] sm:$0xff]
  %1208 = vmatprep.subr.mxu0 %v293
  %1209 = vmatpush1.msra.mxu0 %v292
  %1210 = vmatprep.subr.mxu0 %v296
  %1211 = vmatpush1.msra.mxu0 %v295
  %1212 = vmatprep.subr.mxu0 %v299
  %1213 = vmatpush1.msra.mxu0 %v298
  %1214 = vmatprep.subr.mxu0 %v302
  %1215 = vmatpush1.msra.mxu0 %v301
  %1216 = vmatprep.subr.mxu0 %v305
  %1217 = vmatpush1.msra.mxu0 %v304
  %1218 = vmatprep.subr.mxu0 %v308
  %1219 = vmatpush1.msra.mxu0 %v307
  %1220 = vmatprep.subr.mxu0 %v311
  %1221 = vmatpush1.msra.mxu0 %v310
  %1222 = vmatprep.subr.mxu0 %v314
  %1223 = vmatpush1.msra.mxu0 %v313
  %1224 = vmatprep.subr.mxu0 %v317
  %1225 = vmatpush1.msra.mxu0 %v316
  %1226 = vmatprep.subr.mxu0 %v320
  %1227 = vmatpush1.msra.mxu0 %v319
  %1228 = vmatprep.subr.mxu0 %v323
  %1229 = vmatpush1.msra.mxu0 %v322
  %1230 = vmatprep.subr.mxu0 %v326
  %1231 = vmatpush1.msra.mxu0 %v325
  %1232 = vmatprep.subr.mxu0 %v329
  %1233 = vmatpush1.msra.mxu0 %v328
  %1234 = vmatprep.subr.mxu0 %v332
  %1235 = vmatpush1.msra.mxu0 %v331
  %1236 = vmatprep.subr.mxu0 %v335
  %1237 = vmatpush1.msra.mxu0 %v334
  %1238 = vmatprep.subr.mxu0 %v338
  %1239 = vmatpush1.msra.mxu0 %v337
  %1240 = vmatprep.subr.mxu0 0.0
  %1241 = vmatpush1.msra.mxu0 0.0
  %1242 = vmatprep.subr.mxu0 0.0
  %1243 = vmatpush1.msra.mxu0 0.0
  %1244 = vmatprep.subr.mxu0 0.0
  %1245 = vmatpush1.msra.mxu0 0.0
  %1246 = vmatprep.subr.mxu0 0.0
  %1247 = vmatpush1.msra.mxu0 0.0
  %1248 = vmatprep.subr.mxu0 0.0
  %1249 = vmatpush1.msra.mxu0 0.0
  %1250 = vmatprep.subr.mxu0 0.0
  %1251 = vmatpush1.msra.mxu0 0.0
  %1252 = vmatprep.subr.mxu0 0.0
  %1253 = vmatpush1.msra.mxu0 0.0
  %1254 = vmatprep.subr.mxu0 0.0
  %1255 = vmatpush1.msra.mxu0 0.0
  %1256 = vmatprep.subr.mxu0 0.0
  %1257 = vmatpush1.msra.mxu0 0.0
  %1258 = vmatprep.subr.mxu0 0.0
  %1259 = vmatpush1.msra.mxu0 0.0
  %1260 = vmatprep.subr.mxu0 0.0
  %1261 = vmatpush1.msra.mxu0 0.0
  %1262 = vmatprep.subr.mxu0 0.0
  %1263 = vmatpush1.msra.mxu0 0.0
  %1264 = vmatprep.subr.mxu0 0.0
  %1265 = vmatpush1.msra.mxu0 0.0
  %1266 = vmatprep.subr.mxu0 0.0
  %1267 = vmatpush1.msra.mxu0 0.0
  %1268 = vmatprep.subr.mxu0 0.0
  %1269 = vmatpush1.msra.mxu0 0.0
  %1270 = vmatprep.subr.mxu0 0.0
  %1271 = vmatpush1.msra.mxu0 0.0
  %1272 = vmatprep.mubr.f32.mxu0 0.0
  %1273 = vmatmul.mubr.f32.gmra.mrb[0].mxu0 %v1199
  %v1274 = vpop.f32.mrb[0].mxu0
  %v1275 = vadd.f32 %v345, %v1274
  %v1276 = vpop.f32.mrb[0].mxu0
  %v1277 = vadd.f32 %v349, %v1276
  %1278 = vdwg.mxu0
  %1279 = vmatprep.subr.mxu0 0.0
  %1280 = vmatpush1.msra.mxu0 %v294
  %1281 = vmatprep.subr.mxu0 0.0
  %1282 = vmatpush1.msra.mxu0 %v297
  %1283 = vmatprep.subr.mxu0 0.0
  %1284 = vmatpush1.msra.mxu0 %v300
  %1285 = vmatprep.subr.mxu0 0.0
  %1286 = vmatpush1.msra.mxu0 %v303
  %1287 = vmatprep.subr.mxu0 0.0
  %1288 = vmatpush1.msra.mxu0 %v306
  %1289 = vmatprep.subr.mxu0 0.0
  %1290 = vmatpush1.msra.mxu0 %v309
  %1291 = vmatprep.subr.mxu0 0.0
  %1292 = vmatpush1.msra.mxu0 %v312
  %1293 = vmatprep.subr.mxu0 0.0
  %1294 = vmatpush1.msra.mxu0 %v315
  %1295 = vmatprep.subr.mxu0 0.0
  %1296 = vmatpush1.msra.mxu0 %v318
  %1297 = vmatprep.subr.mxu0 0.0
  %1298 = vmatpush1.msra.mxu0 %v321
  %1299 = vmatprep.subr.mxu0 0.0
  %1300 = vmatpush1.msra.mxu0 %v324
  %1301 = vmatprep.subr.mxu0 0.0
  %1302 = vmatpush1.msra.mxu0 %v327
  %1303 = vmatprep.subr.mxu0 0.0
  %1304 = vmatpush1.msra.mxu0 %v330
  %1305 = vmatprep.subr.mxu0 0.0
  %1306 = vmatpush1.msra.mxu0 %v333
  %1307 = vmatprep.subr.mxu0 0.0
  %1308 = vmatpush1.msra.mxu0 %v336
  %1309 = vmatprep.subr.mxu0 0.0
  %1310 = vmatpush1.msra.mxu0 %v339
  %1311 = vmatprep.subr.mxu0 0.0
  %1312 = vmatpush1.msra.mxu0 0.0
  %1313 = vmatprep.subr.mxu0 0.0
  %1314 = vmatpush1.msra.mxu0 0.0
  %1315 = vmatprep.subr.mxu0 0.0
  %1316 = vmatpush1.msra.mxu0 0.0
  %1317 = vmatprep.subr.mxu0 0.0
  %1318 = vmatpush1.msra.mxu0 0.0
  %1319 = vmatprep.subr.mxu0 0.0
  %1320 = vmatpush1.msra.mxu0 0.0
  %1321 = vmatprep.subr.mxu0 0.0
  %1322 = vmatpush1.msra.mxu0 0.0
  %1323 = vmatprep.subr.mxu0 0.0
  %1324 = vmatpush1.msra.mxu0 0.0
  %1325 = vmatprep.subr.mxu0 0.0
  %1326 = vmatpush1.msra.mxu0 0.0
  %1327 = vmatprep.subr.mxu0 0.0
  %1328 = vmatpush1.msra.mxu0 0.0
  %1329 = vmatprep.subr.mxu0 0.0
  %1330 = vmatpush1.msra.mxu0 0.0
  %1331 = vmatprep.subr.mxu0 0.0
  %1332 = vmatpush1.msra.mxu0 0.0
  %1333 = vmatprep.subr.mxu0 0.0
  %1334 = vmatpush1.msra.mxu0 0.0
  %1335 = vmatprep.subr.mxu0 0.0
  %1336 = vmatpush1.msra.mxu0 0.0
  %1337 = vmatprep.subr.mxu0 0.0
  %1338 = vmatpush1.msra.mxu0 0.0
  %1339 = vmatprep.subr.mxu0 0.0
  %1340 = vmatpush1.msra.mxu0 0.0
  %1341 = vmatprep.subr.mxu0 0.0
  %1342 = vmatpush1.msra.mxu0 0.0
  %1343 = vmatprep.mubr.f32.mxu0 0.0
  %1344 = vmatmul.mubr.f32.gmra.mrb[0].mxu0 %v1199
  %v1345 = vpop.f32.mrb[0].mxu0
  %v1346 = vadd.f32 %v353, %v1345
  %v1347 = vpop.f32.mrb[0].mxu0
  %1348 = vdwg.mxu0
  %v1349 = vadd.f32 %v1205, %v1275
  %v1350 = vadd.f32 %v1206, %v1277
  %v1351 = vxor.u32 %v1349, 2147483648
  %v1352 = vxor.u32 %v1350, 2147483648
  %v1353 = vmul.f32 %v1351, 1.442695
  %v1354 = vpow.pop %v1353
  %v1355 = vmul.f32 %v1352, 1.442695
  %v1356 = vpow.pop %v1355
  %v1357 = vadd.f32 %v1354, 1.0
  %v1358 = vadd.f32 %v1356, 1.0
  %v1359 = vrcp.pop %v1357
  %v1360 = vmul.f32 1.0, %v1359
  %v1361 = vrcp.pop %v1358
  %v1362 = vmul.f32 1.0, %v1361
  %v1363 = vmul.f32 %v1360, %v1346
  %v1364 = vadd.f32 %v1207, %v1363
  %v1365 = vtanh.pop %v1364
  %v1366 = vsub.f32 %v1199, %v1365
  %v1367 = vmul.f32 %v1362, %v1366
  %v1368 = vadd.f32 %v1365, %v1367
  %s1369 = scalar_lea.vmem [#allocation3], 40
  %1370 = vst [vmem:[%s1369] sm:$0xff] %v1368
  %s1371 = smul.u32 6, 3
  %s1372 = smul.addr %s1371, 8
  %s1373 = scalar_lea.vmem [#allocation4], %s1372
  %v1374 = vld [vmem:[%s1373] sm:$0xff]
  %v1375 = vld [vmem:[%s1373 + $0x8] sm:$0xff]
  %v1376 = vld [vmem:[%s1373 + $0x10] sm:$0xff]
  %1377 = vmatprep.subr.mxu0 %v293
  %1378 = vmatpush1.msra.mxu0 %v292
  %1379 = vmatprep.subr.mxu0 %v296
  %1380 = vmatpush1.msra.mxu0 %v295
  %1381 = vmatprep.subr.mxu0 %v299
  %1382 = vmatpush1.msra.mxu0 %v298
  %1383 = vmatprep.subr.mxu0 %v302
  %1384 = vmatpush1.msra.mxu0 %v301
  %1385 = vmatprep.subr.mxu0 %v305
  %1386 = vmatpush1.msra.mxu0 %v304
  %1387 = vmatprep.subr.mxu0 %v308
  %1388 = vmatpush1.msra.mxu0 %v307
  %1389 = vmatprep.subr.mxu0 %v311
  %1390 = vmatpush1.msra.mxu0 %v310
  %1391 = vmatprep.subr.mxu0 %v314
  %1392 = vmatpush1.msra.mxu0 %v313
  %1393 = vmatprep.subr.mxu0 %v317
  %1394 = vmatpush1.msra.mxu0 %v316
  %1395 = vmatprep.subr.mxu0 %v320
  %1396 = vmatpush1.msra.mxu0 %v319
  %1397 = vmatprep.subr.mxu0 %v323
  %1398 = vmatpush1.msra.mxu0 %v322
  %1399 = vmatprep.subr.mxu0 %v326
  %1400 = vmatpush1.msra.mxu0 %v325
  %1401 = vmatprep.subr.mxu0 %v329
  %1402 = vmatpush1.msra.mxu0 %v328
  %1403 = vmatprep.subr.mxu0 %v332
  %1404 = vmatpush1.msra.mxu0 %v331
  %1405 = vmatprep.subr.mxu0 %v335
  %1406 = vmatpush1.msra.mxu0 %v334
  %1407 = vmatprep.subr.mxu0 %v338
  %1408 = vmatpush1.msra.mxu0 %v337
  %1409 = vmatprep.subr.mxu0 0.0
  %1410 = vmatpush1.msra.mxu0 0.0
  %1411 = vmatprep.subr.mxu0 0.0
  %1412 = vmatpush1.msra.mxu0 0.0
  %1413 = vmatprep.subr.mxu0 0.0
  %1414 = vmatpush1.msra.mxu0 0.0
  %1415 = vmatprep.subr.mxu0 0.0
  %1416 = vmatpush1.msra.mxu0 0.0
  %1417 = vmatprep.subr.mxu0 0.0
  %1418 = vmatpush1.msra.mxu0 0.0
  %1419 = vmatprep.subr.mxu0 0.0
  %1420 = vmatpush1.msra.mxu0 0.0
  %1421 = vmatprep.subr.mxu0 0.0
  %1422 = vmatpush1.msra.mxu0 0.0
  %1423 = vmatprep.subr.mxu0 0.0
  %1424 = vmatpush1.msra.mxu0 0.0
  %1425 = vmatprep.subr.mxu0 0.0
  %1426 = vmatpush1.msra.mxu0 0.0
  %1427 = vmatprep.subr.mxu0 0.0
  %1428 = vmatpush1.msra.mxu0 0.0
  %1429 = vmatprep.subr.mxu0 0.0
  %1430 = vmatpush1.msra.mxu0 0.0
  %1431 = vmatprep.subr.mxu0 0.0
  %1432 = vmatpush1.msra.mxu0 0.0
  %1433 = vmatprep.subr.mxu0 0.0
  %1434 = vmatpush1.msra.mxu0 0.0
  %1435 = vmatprep.subr.mxu0 0.0
  %1436 = vmatpush1.msra.mxu0 0.0
  %1437 = vmatprep.subr.mxu0 0.0
  %1438 = vmatpush1.msra.mxu0 0.0
  %1439 = vmatprep.subr.mxu0 0.0
  %1440 = vmatpush1.msra.mxu0 0.0
  %1441 = vmatprep.mubr.f32.mxu0 0.0
  %1442 = vmatmul.mubr.f32.gmra.mrb[0].mxu0 %v1368
  %v1443 = vpop.f32.mrb[0].mxu0
  %v1444 = vadd.f32 %v345, %v1443
  %v1445 = vpop.f32.mrb[0].mxu0
  %v1446 = vadd.f32 %v349, %v1445
  %1447 = vdwg.mxu0
  %1448 = vmatprep.subr.mxu0 0.0
  %1449 = vmatpush1.msra.mxu0 %v294
  %1450 = vmatprep.subr.mxu0 0.0
  %1451 = vmatpush1.msra.mxu0 %v297
  %1452 = vmatprep.subr.mxu0 0.0
  %1453 = vmatpush1.msra.mxu0 %v300
  %1454 = vmatprep.subr.mxu0 0.0
  %1455 = vmatpush1.msra.mxu0 %v303
  %1456 = vmatprep.subr.mxu0 0.0
  %1457 = vmatpush1.msra.mxu0 %v306
  %1458 = vmatprep.subr.mxu0 0.0
  %1459 = vmatpush1.msra.mxu0 %v309
  %1460 = vmatprep.subr.mxu0 0.0
  %1461 = vmatpush1.msra.mxu0 %v312
  %1462 = vmatprep.subr.mxu0 0.0
  %1463 = vmatpush1.msra.mxu0 %v315
  %1464 = vmatprep.subr.mxu0 0.0
  %1465 = vmatpush1.msra.mxu0 %v318
  %1466 = vmatprep.subr.mxu0 0.0
  %1467 = vmatpush1.msra.mxu0 %v321
  %1468 = vmatprep.subr.mxu0 0.0
  %1469 = vmatpush1.msra.mxu0 %v324
  %1470 = vmatprep.subr.mxu0 0.0
  %1471 = vmatpush1.msra.mxu0 %v327
  %1472 = vmatprep.subr.mxu0 0.0
  %1473 = vmatpush1.msra.mxu0 %v330
  %1474 = vmatprep.subr.mxu0 0.0
  %1475 = vmatpush1.msra.mxu0 %v333
  %1476 = vmatprep.subr.mxu0 0.0
  %1477 = vmatpush1.msra.mxu0 %v336
  %1478 = vmatprep.subr.mxu0 0.0
  %1479 = vmatpush1.msra.mxu0 %v339
  %1480 = vmatprep.subr.mxu0 0.0
  %1481 = vmatpush1.msra.mxu0 0.0
  %1482 = vmatprep.subr.mxu0 0.0
  %1483 = vmatpush1.msra.mxu0 0.0
  %1484 = vmatprep.subr.mxu0 0.0
  %1485 = vmatpush1.msra.mxu0 0.0
  %1486 = vmatprep.subr.mxu0 0.0
  %1487 = vmatpush1.msra.mxu0 0.0
  %1488 = vmatprep.subr.mxu0 0.0
  %1489 = vmatpush1.msra.mxu0 0.0
  %1490 = vmatprep.subr.mxu0 0.0
  %1491 = vmatpush1.msra.mxu0 0.0
  %1492 = vmatprep.subr.mxu0 0.0
  %1493 = vmatpush1.msra.mxu0 0.0
  %1494 = vmatprep.subr.mxu0 0.0
  %1495 = vmatpush1.msra.mxu0 0.0
  %1496 = vmatprep.subr.mxu0 0.0
  %1497 = vmatpush1.msra.mxu0 0.0
  %1498 = vmatprep.subr.mxu0 0.0
  %1499 = vmatpush1.msra.mxu0 0.0
  %1500 = vmatprep.subr.mxu0 0.0
  %1501 = vmatpush1.msra.mxu0 0.0
  %1502 = vmatprep.subr.mxu0 0.0
  %1503 = vmatpush1.msra.mxu0 0.0
  %1504 = vmatprep.subr.mxu0 0.0
  %1505 = vmatpush1.msra.mxu0 0.0
  %1506 = vmatprep.subr.mxu0 0.0
  %1507 = vmatpush1.msra.mxu0 0.0
  %1508 = vmatprep.subr.mxu0 0.0
  %1509 = vmatpush1.msra.mxu0 0.0
  %1510 = vmatprep.subr.mxu0 0.0
  %1511 = vmatpush1.msra.mxu0 0.0
  %1512 = vmatprep.mubr.f32.mxu0 0.0
  %1513 = vmatmul.mubr.f32.gmra.mrb[0].mxu0 %v1368
  %v1514 = vpop.f32.mrb[0].mxu0
  %v1515 = vadd.f32 %v353, %v1514
  %v1516 = vpop.f32.mrb[0].mxu0
  %1517 = vdwg.mxu0
  %v1518 = vadd.f32 %v1374, %v1444
  %v1519 = vadd.f32 %v1375, %v1446
  %v1520 = vxor.u32 %v1518, 2147483648
  %v1521 = vxor.u32 %v1519, 2147483648
  %v1522 = vmul.f32 %v1520, 1.442695
  %v1523 = vpow.pop %v1522
  %v1524 = vmul.f32 %v1521, 1.442695
  %v1525 = vpow.pop %v1524
  %v1526 = vadd.f32 %v1523, 1.0
  %v1527 = vadd.f32 %v1525, 1.0
  %v1528 = vrcp.pop %v1526
  %v1529 = vmul.f32 1.0, %v1528
  %v1530 = vrcp.pop %v1527
  %v1531 = vmul.f32 1.0, %v1530
  %v1532 = vmul.f32 %v1529, %v1515
  %v1533 = vadd.f32 %v1376, %v1532
  %v1534 = vtanh.pop %v1533
  %v1535 = vsub.f32 %v1368, %v1534
  %v1536 = vmul.f32 %v1531, %v1535
  %v1537 = vadd.f32 %v1534, %v1536
  %s1538 = scalar_lea.vmem [#allocation3], 48
  %1539 = vst [vmem:[%s1538] sm:$0xff] %v1537
  %s1540 = smul.u32 7, 3
  %s1541 = smul.addr %s1540, 8
  %s1542 = scalar_lea.vmem [#allocation4], %s1541
  %v1543 = vld [vmem:[%s1542] sm:$0xff]
  %v1544 = vld [vmem:[%s1542 + $0x8] sm:$0xff]
  %v1545 = vld [vmem:[%s1542 + $0x10] sm:$0xff]
  %1546 = vmatprep.subr.mxu0 %v293
  %1547 = vmatpush1.msra.mxu0 %v292
  %1548 = vmatprep.subr.mxu0 %v296
  %1549 = vmatpush1.msra.mxu0 %v295
  %1550 = vmatprep.subr.mxu0 %v299
  %1551 = vmatpush1.msra.mxu0 %v298
  %1552 = vmatprep.subr.mxu0 %v302
  %1553 = vmatpush1.msra.mxu0 %v301
  %1554 = vmatprep.subr.mxu0 %v305
  %1555 = vmatpush1.msra.mxu0 %v304
  %1556 = vmatprep.subr.mxu0 %v308
  %1557 = vmatpush1.msra.mxu0 %v307
  %1558 = vmatprep.subr.mxu0 %v311
  %1559 = vmatpush1.msra.mxu0 %v310
  %1560 = vmatprep.subr.mxu0 %v314
  %1561 = vmatpush1.msra.mxu0 %v313
  %1562 = vmatprep.subr.mxu0 %v317
  %1563 = vmatpush1.msra.mxu0 %v316
  %1564 = vmatprep.subr.mxu0 %v320
  %1565 = vmatpush1.msra.mxu0 %v319
  %1566 = vmatprep.subr.mxu0 %v323
  %1567 = vmatpush1.msra.mxu0 %v322
  %1568 = vmatprep.subr.mxu0 %v326
  %1569 = vmatpush1.msra.mxu0 %v325
  %1570 = vmatprep.subr.mxu0 %v329
  %1571 = vmatpush1.msra.mxu0 %v328
  %1572 = vmatprep.subr.mxu0 %v332
  %1573 = vmatpush1.msra.mxu0 %v331
  %1574 = vmatprep.subr.mxu0 %v335
  %1575 = vmatpush1.msra.mxu0 %v334
  %1576 = vmatprep.subr.mxu0 %v338
  %1577 = vmatpush1.msra.mxu0 %v337
  %1578 = vmatprep.subr.mxu0 0.0
  %1579 = vmatpush1.msra.mxu0 0.0
  %1580 = vmatprep.subr.mxu0 0.0
  %1581 = vmatpush1.msra.mxu0 0.0
  %1582 = vmatprep.subr.mxu0 0.0
  %1583 = vmatpush1.msra.mxu0 0.0
  %1584 = vmatprep.subr.mxu0 0.0
  %1585 = vmatpush1.msra.mxu0 0.0
  %1586 = vmatprep.subr.mxu0 0.0
  %1587 = vmatpush1.msra.mxu0 0.0
  %1588 = vmatprep.subr.mxu0 0.0
  %1589 = vmatpush1.msra.mxu0 0.0
  %1590 = vmatprep.subr.mxu0 0.0
  %1591 = vmatpush1.msra.mxu0 0.0
  %1592 = vmatprep.subr.mxu0 0.0
  %1593 = vmatpush1.msra.mxu0 0.0
  %1594 = vmatprep.subr.mxu0 0.0
  %1595 = vmatpush1.msra.mxu0 0.0
  %1596 = vmatprep.subr.mxu0 0.0
  %1597 = vmatpush1.msra.mxu0 0.0
  %1598 = vmatprep.subr.mxu0 0.0
  %1599 = vmatpush1.msra.mxu0 0.0
  %1600 = vmatprep.subr.mxu0 0.0
  %1601 = vmatpush1.msra.mxu0 0.0
  %1602 = vmatprep.subr.mxu0 0.0
  %1603 = vmatpush1.msra.mxu0 0.0
  %1604 = vmatprep.subr.mxu0 0.0
  %1605 = vmatpush1.msra.mxu0 0.0
  %1606 = vmatprep.subr.mxu0 0.0
  %1607 = vmatpush1.msra.mxu0 0.0
  %1608 = vmatprep.subr.mxu0 0.0
  %1609 = vmatpush1.msra.mxu0 0.0
  %1610 = vmatprep.mubr.f32.mxu0 0.0
  %1611 = vmatmul.mubr.f32.gmra.mrb[0].mxu0 %v1537
  %v1612 = vpop.f32.mrb[0].mxu0
  %v1613 = vadd.f32 %v345, %v1612
  %v1614 = vpop.f32.mrb[0].mxu0
  %v1615 = vadd.f32 %v349, %v1614
  %1616 = vdwg.mxu0
  %1617 = vmatprep.subr.mxu0 0.0
  %1618 = vmatpush1.msra.mxu0 %v294
  %1619 = vmatprep.subr.mxu0 0.0
  %1620 = vmatpush1.msra.mxu0 %v297
  %1621 = vmatprep.subr.mxu0 0.0
  %1622 = vmatpush1.msra.mxu0 %v300
  %1623 = vmatprep.subr.mxu0 0.0
  %1624 = vmatpush1.msra.mxu0 %v303
  %1625 = vmatprep.subr.mxu0 0.0
  %1626 = vmatpush1.msra.mxu0 %v306
  %1627 = vmatprep.subr.mxu0 0.0
  %1628 = vmatpush1.msra.mxu0 %v309
  %1629 = vmatprep.subr.mxu0 0.0
  %1630 = vmatpush1.msra.mxu0 %v312
  %1631 = vmatprep.subr.mxu0 0.0
  %1632 = vmatpush1.msra.mxu0 %v315
  %1633 = vmatprep.subr.mxu0 0.0
  %1634 = vmatpush1.msra.mxu0 %v318
  %1635 = vmatprep.subr.mxu0 0.0
  %1636 = vmatpush1.msra.mxu0 %v321
  %1637 = vmatprep.subr.mxu0 0.0
  %1638 = vmatpush1.msra.mxu0 %v324
  %1639 = vmatprep.subr.mxu0 0.0
  %1640 = vmatpush1.msra.mxu0 %v327
  %1641 = vmatprep.subr.mxu0 0.0
  %1642 = vmatpush1.msra.mxu0 %v330
  %1643 = vmatprep.subr.mxu0 0.0
  %1644 = vmatpush1.msra.mxu0 %v333
  %1645 = vmatprep.subr.mxu0 0.0
  %1646 = vmatpush1.msra.mxu0 %v336
  %1647 = vmatprep.subr.mxu0 0.0
  %1648 = vmatpush1.msra.mxu0 %v339
  %1649 = vmatprep.subr.mxu0 0.0
  %1650 = vmatpush1.msra.mxu0 0.0
  %1651 = vmatprep.subr.mxu0 0.0
  %1652 = vmatpush1.msra.mxu0 0.0
  %1653 = vmatprep.subr.mxu0 0.0
  %1654 = vmatpush1.msra.mxu0 0.0
  %1655 = vmatprep.subr.mxu0 0.0
  %1656 = vmatpush1.msra.mxu0 0.0
  %1657 = vmatprep.subr.mxu0 0.0
  %1658 = vmatpush1.msra.mxu0 0.0
  %1659 = vmatprep.subr.mxu0 0.0
  %1660 = vmatpush1.msra.mxu0 0.0
  %1661 = vmatprep.subr.mxu0 0.0
  %1662 = vmatpush1.msra.mxu0 0.0
  %1663 = vmatprep.subr.mxu0 0.0
  %1664 = vmatpush1.msra.mxu0 0.0
  %1665 = vmatprep.subr.mxu0 0.0
  %1666 = vmatpush1.msra.mxu0 0.0
  %1667 = vmatprep.subr.mxu0 0.0
  %1668 = vmatpush1.msra.mxu0 0.0
  %1669 = vmatprep.subr.mxu0 0.0
  %1670 = vmatpush1.msra.mxu0 0.0
  %1671 = vmatprep.subr.mxu0 0.0
  %1672 = vmatpush1.msra.mxu0 0.0
  %1673 = vmatprep.subr.mxu0 0.0
  %1674 = vmatpush1.msra.mxu0 0.0
  %1675 = vmatprep.subr.mxu0 0.0
  %1676 = vmatpush1.msra.mxu0 0.0
  %1677 = vmatprep.subr.mxu0 0.0
  %1678 = vmatpush1.msra.mxu0 0.0
  %1679 = vmatprep.subr.mxu0 0.0
  %1680 = vmatpush1.msra.mxu0 0.0
  %1681 = vmatprep.mubr.f32.mxu0 0.0
  %1682 = vmatmul.mubr.f32.gmra.mrb[0].mxu0 %v1537
  %v1683 = vpop.f32.mrb[0].mxu0
  %v1684 = vadd.f32 %v353, %v1683
  %v1685 = vpop.f32.mrb[0].mxu0
  %1686 = vdwg.mxu0
  %v1687 = vadd.f32 %v1543, %v1613
  %v1688 = vadd.f32 %v1544, %v1615
  %v1689 = vxor.u32 %v1687, 2147483648
  %v1690 = vxor.u32 %v1688, 2147483648
  %v1691 = vmul.f32 %v1689, 1.442695
  %v1692 = vpow.pop %v1691
  %v1693 = vmul.f32 %v1690, 1.442695
  %v1694 = vpow.pop %v1693
  %v1695 = vadd.f32 %v1692, 1.0
  %v1696 = vadd.f32 %v1694, 1.0
  %v1697 = vrcp.pop %v1695
  %v1698 = vmul.f32 1.0, %v1697
  %v1699 = vrcp.pop %v1696
  %v1700 = vmul.f32 1.0, %v1699
  %v1701 = vmul.f32 %v1698, %v1684
  %v1702 = vadd.f32 %v1545, %v1701
  %v1703 = vtanh.pop %v1702
  %v1704 = vsub.f32 %v1537, %v1703
  %v1705 = vmul.f32 %v1700, %v1704
  %v1706 = vadd.f32 %v1703, %v1705
  %s1707 = scalar_lea.vmem [#allocation3], 56
  %1708 = vst [vmem:[%s1707] sm:$0xff] %v1706
  %1709 = vst [vmem:[#allocation2] sm:$0xff] %v1706
  %v1710 = vld [vmem:[#allocation3] sm:$0xff]
  %v1711 = vld [vmem:[#allocation3 + $0x8] sm:$0xff]
  %v1712 = vld [vmem:[#allocation3 + $0x10] sm:$0xff]
  %v1713 = vld [vmem:[#allocation3 + $0x18] sm:$0xff]
  %v1714 = vld [vmem:[#allocation3 + $0x20] sm:$0xff]
  %v1715 = vld [vmem:[#allocation3 + $0x28] sm:$0xff]
  %v1716 = vld [vmem:[#allocation3 + $0x30] sm:$0xff]
  %v1717 = vld [vmem:[#allocation3 + $0x38] sm:$0xff]
  %v1718 = vpack.c.bf16 %v1711, %v1710
  %v1719 = vpack.c.bf16 %v1713, %v1712
  %v1720 = vpack.c.bf16 %v1715, %v1714
  %v1721 = vpack.c.bf16 %v1717, %v1716
  %v1722 = vld [vmem:[%s6] sm:$0xff]
  %v1723 = vld [vmem:[%s6 + $0x8] sm:$0xf]
  %v1724 = vld [vmem:[%s6 + $0xc] sm:$0xff]
  %v1725 = vld [vmem:[%s6 + $0x14] sm:$0xf]
  %v1726 = vld [vmem:[%s6 + $0x18] sm:$0xff]
  %v1727 = vld [vmem:[%s6 + $0x20] sm:$0xf]
  %v1728 = vld [vmem:[%s6 + $0x24] sm:$0xff]
  %v1729 = vld [vmem:[%s6 + $0x2c] sm:$0xf]
  %v1730 = vld [vmem:[%s6 + $0x30] sm:$0xff]
  %v1731 = vld [vmem:[%s6 + $0x38] sm:$0xf]
  %v1732 = vld [vmem:[%s6 + $0x3c] sm:$0xff]
  %v1733 = vld [vmem:[%s6 + $0x44] sm:$0xf]
  %v1734 = vld [vmem:[%s6 + $0x48] sm:$0xff]
  %v1735 = vld [vmem:[%s6 + $0x50] sm:$0xf]
  %v1736 = vld [vmem:[%s6 + $0x54] sm:$0xff]
  %v1737 = vld [vmem:[%s6 + $0x5c] sm:$0xf]
  %v1738 = vld [vmem:[%s6 + $0x60] sm:$0xff]
  %v1739 = vld [vmem:[%s6 + $0x68] sm:$0xf]
  %v1740 = vld [vmem:[%s6 + $0x6c] sm:$0xff]
  %v1741 = vld [vmem:[%s6 + $0x74] sm:$0xf]
  %v1742 = vld [vmem:[%s6 + $0x78] sm:$0xff]
  %v1743 = vld [vmem:[%s6 + $0x80] sm:$0xf]
  %v1744 = vld [vmem:[%s6 + $0x84] sm:$0xff]
  %v1745 = vld [vmem:[%s6 + $0x8c] sm:$0xf]
  %v1746 = vld [vmem:[%s6 + $0x90] sm:$0xff]
  %v1747 = vld [vmem:[%s6 + $0x98] sm:$0xf]
  %v1748 = vld [vmem:[%s6 + $0x9c] sm:$0xff]
  %v1749 = vld [vmem:[%s6 + $0xa4] sm:$0xf]
  %v1750 = vld [vmem:[%s6 + $0xa8] sm:$0xff]
  %v1751 = vld [vmem:[%s6 + $0xb0] sm:$0xf]
  %v1752 = vld [vmem:[%s6 + $0xb4] sm:$0xff]
  %v1753 = vld [vmem:[%s6 + $0xbc] sm:$0xf]
  %v1754 = vld [vmem:[%s8] sm:$0x7]
  %v1756 = vlaneseq
  %v1757 = vshrl.u32 %v1756, 7
  %v1758 = vsub.s32 0, %v1757
  %v1759 = vrot.slane %v1754, %v1758
  %v1760 = vlaneseq
  %v1761 = vshrl.u32 %v1760, 7
  %v1762 = vsub.s32 1, %v1761
  %v1763 = vrot.slane %v1754, %v1762
  %v1764 = vlaneseq
  %v1765 = vshrl.u32 %v1764, 7
  %v1766 = vsub.s32 2, %v1765
  %v1767 = vrot.slane %v1754, %v1766
  %v1803 = vunpack.c.l.b16 %v1722
  %v1804 = vunpack.c.h.b16 %v1722
  %v1805 = vunpack.c.l.b16 %v1723
  %v1806 = vunpack.c.l.b16 %v1724
  %v1807 = vunpack.c.h.b16 %v1724
  %v1808 = vunpack.c.l.b16 %v1725
  %v1809 = vunpack.c.l.b16 %v1726
  %v1810 = vunpack.c.h.b16 %v1726
  %v1811 = vunpack.c.l.b16 %v1727
  %v1812 = vunpack.c.l.b16 %v1728
  %v1813 = vunpack.c.h.b16 %v1728
  %v1814 = vunpack.c.l.b16 %v1729
  %v1815 = vunpack.c.l.b16 %v1730
  %v1816 = vunpack.c.h.b16 %v1730
  %v1817 = vunpack.c.l.b16 %v1731
  %v1818 = vunpack.c.l.b16 %v1732
  %v1819 = vunpack.c.h.b16 %v1732
  %v1820 = vunpack.c.l.b16 %v1733
  %v1821 = vunpack.c.l.b16 %v1734
  %v1822 = vunpack.c.h.b16 %v1734
  %v1823 = vunpack.c.l.b16 %v1735
  %v1824 = vunpack.c.l.b16 %v1736
  %v1825 = vunpack.c.h.b16 %v1736
  %v1826 = vunpack.c.l.b16 %v1737
  %v1827 = vunpack.c.l.b16 %v1738
  %v1828 = vunpack.c.h.b16 %v1738
  %v1829 = vunpack.c.l.b16 %v1739
  %v1830 = vunpack.c.l.b16 %v1740
  %v1831 = vunpack.c.h.b16 %v1740
  %v1832 = vunpack.c.l.b16 %v1741
  %v1833 = vunpack.c.l.b16 %v1742
  %v1834 = vunpack.c.h.b16 %v1742
  %v1835 = vunpack.c.l.b16 %v1743
  %v1836 = vunpack.c.l.b16 %v1744
  %v1837 = vunpack.c.h.b16 %v1744
  %v1838 = vunpack.c.l.b16 %v1745
  %v1839 = vunpack.c.l.b16 %v1746
  %v1840 = vunpack.c.h.b16 %v1746
  %v1841 = vunpack.c.l.b16 %v1747
  %v1842 = vunpack.c.l.b16 %v1748
  %v1843 = vunpack.c.h.b16 %v1748
  %v1844 = vunpack.c.l.b16 %v1749
  %v1845 = vunpack.c.l.b16 %v1750
  %v1846 = vunpack.c.h.b16 %v1750
  %v1847 = vunpack.c.l.b16 %v1751
  %v1848 = vunpack.c.l.b16 %v1752
  %v1849 = vunpack.c.h.b16 %v1752
  %v1850 = vunpack.c.l.b16 %v1753
  %v1851 = vpack.c.b16 %v1806, %v1803
  %v1852 = vpack.c.b16 %v1807, %v1804
  %v1853 = vpack.c.b16 %v1808, %v1805
  %v1854 = vpack.c.b16 %v1812, %v1809
  %v1855 = vpack.c.b16 %v1813, %v1810
  %v1856 = vpack.c.b16 %v1814, %v1811
  %v1857 = vpack.c.b16 %v1818, %v1815
  %v1858 = vpack.c.b16 %v1819, %v1816
  %v1859 = vpack.c.b16 %v1820, %v1817
  %v1860 = vpack.c.b16 %v1824, %v1821
  %v1861 = vpack.c.b16 %v1825, %v1822
  %v1862 = vpack.c.b16 %v1826, %v1823
  %v1863 = vpack.c.b16 %v1830, %v1827
  %v1864 = vpack.c.b16 %v1831, %v1828
  %v1865 = vpack.c.b16 %v1832, %v1829
  %v1866 = vpack.c.b16 %v1836, %v1833
  %v1867 = vpack.c.b16 %v1837, %v1834
  %v1868 = vpack.c.b16 %v1838, %v1835
  %v1869 = vpack.c.b16 %v1842, %v1839
  %v1870 = vpack.c.b16 %v1843, %v1840
  %v1871 = vpack.c.b16 %v1844, %v1841
  %v1872 = vpack.c.b16 %v1848, %v1845
  %v1873 = vpack.c.b16 %v1849, %v1846
  %v1874 = vpack.c.b16 %v1850, %v1847
  %1899 = vmatprep.subr.bf16.mxu0 %v1852
  %1900 = vmatpush1.bf16.msra.mxu0 %v1851
  %1901 = vmatprep.subr.bf16.mxu0 %v1855
  %1902 = vmatpush1.bf16.msra.mxu0 %v1854
  %1903 = vmatprep.subr.bf16.mxu0 %v1858
  %1904 = vmatpush1.bf16.msra.mxu0 %v1857
  %1905 = vmatprep.subr.bf16.mxu0 %v1861
  %1906 = vmatpush1.bf16.msra.mxu0 %v1860
  %1907 = vmatprep.subr.bf16.mxu0 %v1864
  %1908 = vmatpush1.bf16.msra.mxu0 %v1863
  %1909 = vmatprep.subr.bf16.mxu0 %v1867
  %1910 = vmatpush1.bf16.msra.mxu0 %v1866
  %1911 = vmatprep.subr.bf16.mxu0 %v1870
  %1912 = vmatpush1.bf16.msra.mxu0 %v1869
  %1913 = vmatprep.subr.bf16.mxu0 %v1873
  %1914 = vmatpush1.bf16.msra.mxu0 %v1872
  %1915 = vmatprep.subr.bf16.mxu0 0
  %1916 = vmatpush1.bf16.msra.mxu0 0
  %1917 = vmatprep.subr.bf16.mxu0 0
  %1918 = vmatpush1.bf16.msra.mxu0 0
  %1919 = vmatprep.subr.bf16.mxu0 0
  %1920 = vmatpush1.bf16.msra.mxu0 0
  %1921 = vmatprep.subr.bf16.mxu0 0
  %1922 = vmatpush1.bf16.msra.mxu0 0
  %1923 = vmatprep.subr.bf16.mxu0 0
  %1924 = vmatpush1.bf16.msra.mxu0 0
  %1925 = vmatprep.subr.bf16.mxu0 0
  %1926 = vmatpush1.bf16.msra.mxu0 0
  %1927 = vmatprep.subr.bf16.mxu0 0
  %1928 = vmatpush1.bf16.msra.mxu0 0
  %1929 = vmatprep.subr.bf16.mxu0 0
  %1930 = vmatpush1.bf16.msra.mxu0 0
  %1931 = vmatprep.mubr.bf16.mxu0 0
  %1932 = vmatmul.mubr.bf16.gmra.mrb[0].mxu0 %v1718
  %v1933 = vpop.f32.mrb[0].mxu0
  %v1934 = vadd.f32 %v1759, %v1933
  %v1935 = vpop.f32.mrb[0].mxu0
  %v1936 = vadd.f32 %v1763, %v1935
  %v1937 = vpop.f32.mrb[0].mxu0
  %v1938 = vadd.f32 %v1759, %v1937
  %v1939 = vpop.f32.mrb[0].mxu0
  %v1940 = vadd.f32 %v1763, %v1939
  %1941 = vmatprep.mubr.bf16.mxu0 0
  %1942 = vmatmul.mubr.bf16.gmra.mrb[0].mxu0 %v1719
  %v1943 = vpop.f32.mrb[0].mxu0
  %v1944 = vadd.f32 %v1759, %v1943
  %v1945 = vpop.f32.mrb[0].mxu0
  %v1946 = vadd.f32 %v1763, %v1945
  %v1947 = vpop.f32.mrb[0].mxu0
  %v1948 = vadd.f32 %v1759, %v1947
  %v1949 = vpop.f32.mrb[0].mxu0
  %v1950 = vadd.f32 %v1763, %v1949
  %1951 = vmatprep.mubr.bf16.mxu0 0
  %1952 = vmatmul.mubr.bf16.gmra.mrb[0].mxu0 %v1720
  %v1953 = vpop.f32.mrb[0].mxu0
  %v1954 = vadd.f32 %v1759, %v1953
  %v1955 = vpop.f32.mrb[0].mxu0
  %v1956 = vadd.f32 %v1763, %v1955
  %v1957 = vpop.f32.mrb[0].mxu0
  %v1958 = vadd.f32 %v1759, %v1957
  %v1959 = vpop.f32.mrb[0].mxu0
  %v1960 = vadd.f32 %v1763, %v1959
  %1961 = vmatprep.mubr.bf16.mxu0 0
  %1962 = vmatmul.mubr.bf16.gmra.mrb[0].mxu0 %v1721
  %v1963 = vpop.f32.mrb[0].mxu0
  %v1964 = vadd.f32 %v1759, %v1963
  %v1965 = vpop.f32.mrb[0].mxu0
  %v1966 = vadd.f32 %v1763, %v1965
  %v1967 = vpop.f32.mrb[0].mxu0
  %v1968 = vadd.f32 %v1759, %v1967
  %v1969 = vpop.f32.mrb[0].mxu0
  %v1970 = vadd.f32 %v1763, %v1969
  %1971 = vdwg.mxu0
  %1972 = vmatprep.subr.bf16.mxu0 0
  %1973 = vmatpush1.bf16.msra.mxu0 %v1853
  %1974 = vmatprep.subr.bf16.mxu0 0
  %1975 = vmatpush1.bf16.msra.mxu0 %v1856
  %1976 = vmatprep.subr.bf16.mxu0 0
  %1977 = vmatpush1.bf16.msra.mxu0 %v1859
  %1978 = vmatprep.subr.bf16.mxu0 0
  %1979 = vmatpush1.bf16.msra.mxu0 %v1862
  %1980 = vmatprep.subr.bf16.mxu0 0
  %1981 = vmatpush1.bf16.msra.mxu0 %v1865
  %1982 = vmatprep.subr.bf16.mxu0 0
  %1983 = vmatpush1.bf16.msra.mxu0 %v1868
  %1984 = vmatprep.subr.bf16.mxu0 0
  %1985 = vmatpush1.bf16.msra.mxu0 %v1871
  %1986 = vmatprep.subr.bf16.mxu0 0
  %1987 = vmatpush1.bf16.msra.mxu0 %v1874
  %1988 = vmatprep.subr.bf16.mxu0 0
  %1989 = vmatpush1.bf16.msra.mxu0 0
  %1990 = vmatprep.subr.bf16.mxu0 0
  %1991 = vmatpush1.bf16.msra.mxu0 0
  %1992 = vmatprep.subr.bf16.mxu0 0
  %1993 = vmatpush1.bf16.msra.mxu0 0
  %1994 = vmatprep.subr.bf16.mxu0 0
  %1995 = vmatpush1.bf16.msra.mxu0 0
  %1996 = vmatprep.subr.bf16.mxu0 0
  %1997 = vmatpush1.bf16.msra.mxu0 0
  %1998 = vmatprep.subr.bf16.mxu0 0
  %1999 = vmatpush1.bf16.msra.mxu0 0
  %2000 = vmatprep.subr.bf16.mxu0 0
  %2001 = vmatpush1.bf16.msra.mxu0 0
  %2002 = vmatprep.subr.bf16.mxu0 0
  %2003 = vmatpush1.bf16.msra.mxu0 0
  %2004 = vmatprep.mubr.bf16.mxu0 0
  %2005 = vmatmul.mubr.bf16.gmra.mrb[0].mxu0 %v1718
  %v2006 = vpop.f32.mrb[0].mxu0
  %v2007 = vadd.f32 %v1767, %v2006
  %v2008 = vpop.f32.mrb[0].mxu0
  %v2009 = vpop.f32.mrb[0].mxu0
  %v2010 = vadd.f32 %v1767, %v2009
  %v2011 = vpop.f32.mrb[0].mxu0
  %2012 = vmatprep.mubr.bf16.mxu0 0
  %2013 = vmatmul.mubr.bf16.gmra.mrb[0].mxu0 %v1719
  %v2014 = vpop.f32.mrb[0].mxu0
  %v2015 = vadd.f32 %v1767, %v2014
  %v2016 = vpop.f32.mrb[0].mxu0
  %v2017 = vpop.f32.mrb[0].mxu0
  %v2018 = vadd.f32 %v1767, %v2017
  %v2019 = vpop.f32.mrb[0].mxu0
  %2020 = vmatprep.mubr.bf16.mxu0 0
  %2021 = vmatmul.mubr.bf16.gmra.mrb[0].mxu0 %v1720
  %v2022 = vpop.f32.mrb[0].mxu0
  %v2023 = vadd.f32 %v1767, %v2022
  %v2024 = vpop.f32.mrb[0].mxu0
  %v2025 = vpop.f32.mrb[0].mxu0
  %v2026 = vadd.f32 %v1767, %v2025
  %v2027 = vpop.f32.mrb[0].mxu0
  %2028 = vmatprep.mubr.bf16.mxu0 0
  %2029 = vmatmul.mubr.bf16.gmra.mrb[0].mxu0 %v1721
  %v2030 = vpop.f32.mrb[0].mxu0
  %v2031 = vadd.f32 %v1767, %v2030
  %v2032 = vpop.f32.mrb[0].mxu0
  %v2033 = vpop.f32.mrb[0].mxu0
  %v2034 = vadd.f32 %v1767, %v2033
  %v2035 = vpop.f32.mrb[0].mxu0
  %2036 = vdwg.mxu0
  %2037 = vst [vmem:[#allocation4] sm:$0xff] %v1934
  %2038 = vst [vmem:[#allocation4 + $0x8] sm:$0xff] %v1936
  %2039 = vst [vmem:[#allocation4 + $0x10] sm:$0xff] %v2007
  %2040 = vst [vmem:[#allocation4 + $0x18] sm:$0xff] %v1938
  %2041 = vst [vmem:[#allocation4 + $0x20] sm:$0xff] %v1940
  %2042 = vst [vmem:[#allocation4 + $0x28] sm:$0xff] %v2010
  %2043 = vst [vmem:[#allocation4 + $0x30] sm:$0xff] %v1944
  %2044 = vst [vmem:[#allocation4 + $0x38] sm:$0xff] %v1946
  %2045 = vst [vmem:[#allocation4 + $0x40] sm:$0xff] %v2015
  %2046 = vst [vmem:[#allocation4 + $0x48] sm:$0xff] %v1948
  %2047 = vst [vmem:[#allocation4 + $0x50] sm:$0xff] %v1950
  %2048 = vst [vmem:[#allocation4 + $0x58] sm:$0xff] %v2018
  %2049 = vst [vmem:[#allocation4 + $0x60] sm:$0xff] %v1954
  %2050 = vst [vmem:[#allocation4 + $0x68] sm:$0xff] %v1956
  %2051 = vst [vmem:[#allocation4 + $0x70] sm:$0xff] %v2023
  %2052 = vst [vmem:[#allocation4 + $0x78] sm:$0xff] %v1958
  %2053 = vst [vmem:[#allocation4 + $0x80] sm:$0xff] %v1960
  %2054 = vst [vmem:[#allocation4 + $0x88] sm:$0xff] %v2026
  %2055 = vst [vmem:[#allocation4 + $0x90] sm:$0xff] %v1964
  %2056 = vst [vmem:[#allocation4 + $0x98] sm:$0xff] %v1966
  %2057 = vst [vmem:[#allocation4 + $0xa0] sm:$0xff] %v2031
  %2058 = vst [vmem:[#allocation4 + $0xa8] sm:$0xff] %v1968
  %2059 = vst [vmem:[#allocation4 + $0xb0] sm:$0xff] %v1970
  %2060 = vst [vmem:[#allocation4 + $0xb8] sm:$0xff] %v2034
  %v2061 = vld [vmem:[%s7] sm:$0xff]
  %v2062 = vld [vmem:[%s7 + $0x8] sm:$0xff]
  %v2063 = vld [vmem:[%s7 + $0x10] sm:$0xff]
  %v2064 = vld [vmem:[%s7 + $0x18] sm:$0xff]
  %v2065 = vld [vmem:[%s7 + $0x20] sm:$0xff]
  %v2066 = vld [vmem:[%s7 + $0x28] sm:$0xff]
  %v2067 = vld [vmem:[%s7 + $0x30] sm:$0xff]
  %v2068 = vld [vmem:[%s7 + $0x38] sm:$0xff]
  %v2069 = vld [vmem:[%s7 + $0x40] sm:$0xff]
  %v2070 = vld [vmem:[%s7 + $0x48] sm:$0xff]
  %v2071 = vld [vmem:[%s7 + $0x50] sm:$0xff]
  %v2072 = vld [vmem:[%s7 + $0x58] sm:$0xff]
  %v2073 = vld [vmem:[%s7 + $0x60] sm:$0xff]
  %v2074 = vld [vmem:[%s7 + $0x68] sm:$0xff]
  %v2075 = vld [vmem:[%s7 + $0x70] sm:$0xff]
  %v2076 = vld [vmem:[%s7 + $0x78] sm:$0xff]
  %v2077 = vld [vmem:[%s7 + $0x80] sm:$0xff]
  %v2078 = vld [vmem:[%s7 + $0x88] sm:$0xff]
  %v2079 = vld [vmem:[%s7 + $0x90] sm:$0xff]
  %v2080 = vld [vmem:[%s7 + $0x98] sm:$0xff]
  %v2081 = vld [vmem:[%s7 + $0xa0] sm:$0xff]
  %v2082 = vld [vmem:[%s7 + $0xa8] sm:$0xff]
  %v2083 = vld [vmem:[%s7 + $0xb0] sm:$0xff]
  %v2084 = vld [vmem:[%s7 + $0xb8] sm:$0xff]
  %v2085 = vld [vmem:[%s7 + $0xc0] sm:$0xff]
  %v2086 = vld [vmem:[%s7 + $0xc8] sm:$0xff]
  %v2087 = vld [vmem:[%s7 + $0xd0] sm:$0xff]
  %v2088 = vld [vmem:[%s7 + $0xd8] sm:$0xff]
  %v2089 = vld [vmem:[%s7 + $0xe0] sm:$0xff]
  %v2090 = vld [vmem:[%s7 + $0xe8] sm:$0xff]
  %v2091 = vld [vmem:[%s7 + $0xf0] sm:$0xff]
  %v2092 = vld [vmem:[%s7 + $0xf8] sm:$0xff]
  %v2093 = vld [vmem:[%s7 + $0x100] sm:$0xff]
  %v2094 = vld [vmem:[%s7 + $0x108] sm:$0xff]
  %v2095 = vld [vmem:[%s7 + $0x110] sm:$0xff]
  %v2096 = vld [vmem:[%s7 + $0x118] sm:$0xff]
  %v2097 = vld [vmem:[%s7 + $0x120] sm:$0xff]
  %v2098 = vld [vmem:[%s7 + $0x128] sm:$0xff]
  %v2099 = vld [vmem:[%s7 + $0x130] sm:$0xff]
  %v2100 = vld [vmem:[%s7 + $0x138] sm:$0xff]
  %v2101 = vld [vmem:[%s7 + $0x140] sm:$0xff]
  %v2102 = vld [vmem:[%s7 + $0x148] sm:$0xff]
  %v2103 = vld [vmem:[%s7 + $0x150] sm:$0xff]
  %v2104 = vld [vmem:[%s7 + $0x158] sm:$0xff]
  %v2105 = vld [vmem:[%s7 + $0x160] sm:$0xff]
  %v2106 = vld [vmem:[%s7 + $0x168] sm:$0xff]
  %v2107 = vld [vmem:[%s7 + $0x170] sm:$0xff]
  %v2108 = vld [vmem:[%s7 + $0x178] sm:$0xff]
  %v2109 = vld [vmem:[%s9] sm:$0x7]
  %v2111 = vlaneseq
  %v2112 = vshrl.u32 %v2111, 7
  %v2113 = vsub.s32 0, %v2112
  %v2114 = vrot.slane %v2109, %v2113
  %v2115 = vlaneseq
  %v2116 = vshrl.u32 %v2115, 7
  %v2117 = vsub.s32 1, %v2116
  %v2118 = vrot.slane %v2109, %v2117
  %v2119 = vlaneseq
  %v2120 = vshrl.u32 %v2119, 7
  %v2121 = vsub.s32 2, %v2120
  %v2122 = vrot.slane %v2109, %v2121
  %s2126 = scalar_lea.vmem [#allocation2], 8
  %v2127 = vld [vmem:[%s2126] sm:$0xff]
  %v2128 = vld [vmem:[%s360] sm:$0xff]
  %v2129 = vld [vmem:[%s360 + $0x8] sm:$0xff]
  %v2130 = vld [vmem:[%s360 + $0x10] sm:$0xff]
  %2131 = vmatprep.subr.mxu0 %v2062
  %2132 = vmatpush1.msra.mxu0 %v2061
  %2133 = vmatprep.subr.mxu0 %v2065
  %2134 = vmatpush1.msra.mxu0 %v2064
  %2135 = vmatprep.subr.mxu0 %v2068
  %2136 = vmatpush1.msra.mxu0 %v2067
  %2137 = vmatprep.subr.mxu0 %v2071
  %2138 = vmatpush1.msra.mxu0 %v2070
  %2139 = vmatprep.subr.mxu0 %v2074
  %2140 = vmatpush1.msra.mxu0 %v2073
  %2141 = vmatprep.subr.mxu0 %v2077
  %2142 = vmatpush1.msra.mxu0 %v2076
  %2143 = vmatprep.subr.mxu0 %v2080
  %2144 = vmatpush1.msra.mxu0 %v2079
  %2145 = vmatprep.subr.mxu0 %v2083
  %2146 = vmatpush1.msra.mxu0 %v2082
  %2147 = vmatprep.subr.mxu0 %v2086
  %2148 = vmatpush1.msra.mxu0 %v2085
  %2149 = vmatprep.subr.mxu0 %v2089
  %2150 = vmatpush1.msra.mxu0 %v2088
  %2151 = vmatprep.subr.mxu0 %v2092
  %2152 = vmatpush1.msra.mxu0 %v2091
  %2153 = vmatprep.subr.mxu0 %v2095
  %2154 = vmatpush1.msra.mxu0 %v2094
  %2155 = vmatprep.subr.mxu0 %v2098
  %2156 = vmatpush1.msra.mxu0 %v2097
  %2157 = vmatprep.subr.mxu0 %v2101
  %2158 = vmatpush1.msra.mxu0 %v2100
  %2159 = vmatprep.subr.mxu0 %v2104
  %2160 = vmatpush1.msra.mxu0 %v2103
  %2161 = vmatprep.subr.mxu0 %v2107
  %2162 = vmatpush1.msra.mxu0 %v2106
  %2163 = vmatprep.subr.mxu0 0.0
  %2164 = vmatpush1.msra.mxu0 0.0
  %2165 = vmatprep.subr.mxu0 0.0
  %2166 = vmatpush1.msra.mxu0 0.0
  %2167 = vmatprep.subr.mxu0 0.0
  %2168 = vmatpush1.msra.mxu0 0.0
  %2169 = vmatprep.subr.mxu0 0.0
  %2170 = vmatpush1.msra.mxu0 0.0
  %2171 = vmatprep.subr.mxu0 0.0
  %2172 = vmatpush1.msra.mxu0 0.0
  %2173 = vmatprep.subr.mxu0 0.0
  %2174 = vmatpush1.msra.mxu0 0.0
  %2175 = vmatprep.subr.mxu0 0.0
  %2176 = vmatpush1.msra.mxu0 0.0
  %2177 = vmatprep.subr.mxu0 0.0
  %2178 = vmatpush1.msra.mxu0 0.0
  %2179 = vmatprep.subr.mxu0 0.0
  %2180 = vmatpush1.msra.mxu0 0.0
  %2181 = vmatprep.subr.mxu0 0.0
  %2182 = vmatpush1.msra.mxu0 0.0
  %2183 = vmatprep.subr.mxu0 0.0
  %2184 = vmatpush1.msra.mxu0 0.0
  %2185 = vmatprep.subr.mxu0 0.0
  %2186 = vmatpush1.msra.mxu0 0.0
  %2187 = vmatprep.subr.mxu0 0.0
  %2188 = vmatpush1.msra.mxu0 0.0
  %2189 = vmatprep.subr.mxu0 0.0
  %2190 = vmatpush1.msra.mxu0 0.0
  %2191 = vmatprep.subr.mxu0 0.0
  %2192 = vmatpush1.msra.mxu0 0.0
  %2193 = vmatprep.subr.mxu0 0.0
  %2194 = vmatpush1.msra.mxu0 0.0
  %2195 = vmatprep.mubr.f32.mxu0 0.0
  %2196 = vmatmul.mubr.f32.gmra.mrb[0].mxu0 %v2127
  %v2197 = vpop.f32.mrb[0].mxu0
  %v2198 = vadd.f32 %v2114, %v2197
  %v2199 = vpop.f32.mrb[0].mxu0
  %v2200 = vadd.f32 %v2118, %v2199
  %2201 = vdwg.mxu0
  %2202 = vmatprep.subr.mxu0 0.0
  %2203 = vmatpush1.msra.mxu0 %v2063
  %2204 = vmatprep.subr.mxu0 0.0
  %2205 = vmatpush1.msra.mxu0 %v2066
  %2206 = vmatprep.subr.mxu0 0.0
  %2207 = vmatpush1.msra.mxu0 %v2069
  %2208 = vmatprep.subr.mxu0 0.0
  %2209 = vmatpush1.msra.mxu0 %v2072
  %2210 = vmatprep.subr.mxu0 0.0
  %2211 = vmatpush1.msra.mxu0 %v2075
  %2212 = vmatprep.subr.mxu0 0.0
  %2213 = vmatpush1.msra.mxu0 %v2078
  %2214 = vmatprep.subr.mxu0 0.0
  %2215 = vmatpush1.msra.mxu0 %v2081
  %2216 = vmatprep.subr.mxu0 0.0
  %2217 = vmatpush1.msra.mxu0 %v2084
  %2218 = vmatprep.subr.mxu0 0.0
  %2219 = vmatpush1.msra.mxu0 %v2087
  %2220 = vmatprep.subr.mxu0 0.0
  %2221 = vmatpush1.msra.mxu0 %v2090
  %2222 = vmatprep.subr.mxu0 0.0
  %2223 = vmatpush1.msra.mxu0 %v2093
  %2224 = vmatprep.subr.mxu0 0.0
  %2225 = vmatpush1.msra.mxu0 %v2096
  %2226 = vmatprep.subr.mxu0 0.0
  %2227 = vmatpush1.msra.mxu0 %v2099
  %2228 = vmatprep.subr.mxu0 0.0
  %2229 = vmatpush1.msra.mxu0 %v2102
  %2230 = vmatprep.subr.mxu0 0.0
  %2231 = vmatpush1.msra.mxu0 %v2105
  %2232 = vmatprep.subr.mxu0 0.0
  %2233 = vmatpush1.msra.mxu0 %v2108
  %2234 = vmatprep.subr.mxu0 0.0
  %2235 = vmatpush1.msra.mxu0 0.0
  %2236 = vmatprep.subr.mxu0 0.0
  %2237 = vmatpush1.msra.mxu0 0.0
  %2238 = vmatprep.subr.mxu0 0.0
  %2239 = vmatpush1.msra.mxu0 0.0
  %2240 = vmatprep.subr.mxu0 0.0
  %2241 = vmatpush1.msra.mxu0 0.0
  %2242 = vmatprep.subr.mxu0 0.0
  %2243 = vmatpush1.msra.mxu0 0.0
  %2244 = vmatprep.subr.mxu0 0.0
  %2245 = vmatpush1.msra.mxu0 0.0
  %2246 = vmatprep.subr.mxu0 0.0
  %2247 = vmatpush1.msra.mxu0 0.0
  %2248 = vmatprep.subr.mxu0 0.0
  %2249 = vmatpush1.msra.mxu0 0.0
  %2250 = vmatprep.subr.mxu0 0.0
  %2251 = vmatpush1.msra.mxu0 0.0
  %2252 = vmatprep.subr.mxu0 0.0
  %2253 = vmatpush1.msra.mxu0 0.0
  %2254 = vmatprep.subr.mxu0 0.0
  %2255 = vmatpush1.msra.mxu0 0.0
  %2256 = vmatprep.subr.mxu0 0.0
  %2257 = vmatpush1.msra.mxu0 0.0
  %2258 = vmatprep.subr.mxu0 0.0
  %2259 = vmatpush1.msra.mxu0 0.0
  %2260 = vmatprep.subr.mxu0 0.0
  %2261 = vmatpush1.msra.mxu0 0.0
  %2262 = vmatprep.subr.mxu0 0.0
  %2263 = vmatpush1.msra.mxu0 0.0
  %2264 = vmatprep.subr.mxu0 0.0
  %2265 = vmatpush1.msra.mxu0 0.0
  %2266 = vmatprep.mubr.f32.mxu0 0.0
  %2267 = vmatmul.mubr.f32.gmra.mrb[0].mxu0 %v2127
  %v2268 = vpop.f32.mrb[0].mxu0
  %v2269 = vadd.f32 %v2122, %v2268
  %v2270 = vpop.f32.mrb[0].mxu0
  %2271 = vdwg.mxu0
  %v2272 = vadd.f32 %v2128, %v2198
  %v2273 = vadd.f32 %v2129, %v2200
  %v2274 = vxor.u32 %v2272, 2147483648
  %v2275 = vxor.u32 %v2273, 2147483648
  %v2276 = vmul.f32 %v2274, 1.442695
  %v2277 = vpow.pop %v2276
  %v2278 = vmul.f32 %v2275, 1.442695
  %v2279 = vpow.pop %v2278
  %v2280 = vadd.f32 %v2277, 1.0
  %v2281 = vadd.f32 %v2279, 1.0
  %v2282 = vrcp.pop %v2280
  %v2283 = vmul.f32 1.0, %v2282
  %v2284 = vrcp.pop %v2281
  %v2285 = vmul.f32 1.0, %v2284
  %v2286 = vmul.f32 %v2283, %v2269
  %v2287 = vadd.f32 %v2130, %v2286
  %v2288 = vtanh.pop %v2287
  %v2289 = vsub.f32 %v2127, %v2288
  %v2290 = vmul.f32 %v2285, %v2289
  %v2291 = vadd.f32 %v2288, %v2290
  %2292 = vst [vmem:[#allocation3] sm:$0xff] %v2291
  %v2293 = vld [vmem:[%s528] sm:$0xff]
  %v2294 = vld [vmem:[%s528 + $0x8] sm:$0xff]
  %v2295 = vld [vmem:[%s528 + $0x10] sm:$0xff]
  %2296 = vmatprep.subr.mxu0 %v2062
  %2297 = vmatpush1.msra.mxu0 %v2061
  %2298 = vmatprep.subr.mxu0 %v2065
  %2299 = vmatpush1.msra.mxu0 %v2064
  %2300 = vmatprep.subr.mxu0 %v2068
  %2301 = vmatpush1.msra.mxu0 %v2067
  %2302 = vmatprep.subr.mxu0 %v2071
  %2303 = vmatpush1.msra.mxu0 %v2070
  %2304 = vmatprep.subr.mxu0 %v2074
  %2305 = vmatpush1.msra.mxu0 %v2073
  %2306 = vmatprep.subr.mxu0 %v2077
  %2307 = vmatpush1.msra.mxu0 %v2076
  %2308 = vmatprep.subr.mxu0 %v2080
  %2309 = vmatpush1.msra.mxu0 %v2079
  %2310 = vmatprep.subr.mxu0 %v2083
  %2311 = vmatpush1.msra.mxu0 %v2082
  %2312 = vmatprep.subr.mxu0 %v2086
  %2313 = vmatpush1.msra.mxu0 %v2085
  %2314 = vmatprep.subr.mxu0 %v2089
  %2315 = vmatpush1.msra.mxu0 %v2088
  %2316 = vmatprep.subr.mxu0 %v2092
  %2317 = vmatpush1.msra.mxu0 %v2091
  %2318 = vmatprep.subr.mxu0 %v2095
  %2319 = vmatpush1.msra.mxu0 %v2094
  %2320 = vmatprep.subr.mxu0 %v2098
  %2321 = vmatpush1.msra.mxu0 %v2097
  %2322 = vmatprep.subr.mxu0 %v2101
  %2323 = vmatpush1.msra.mxu0 %v2100
  %2324 = vmatprep.subr.mxu0 %v2104
  %2325 = vmatpush1.msra.mxu0 %v2103
  %2326 = vmatprep.subr.mxu0 %v2107
  %2327 = vmatpush1.msra.mxu0 %v2106
  %2328 = vmatprep.subr.mxu0 0.0
  %2329 = vmatpush1.msra.mxu0 0.0
  %2330 = vmatprep.subr.mxu0 0.0
  %2331 = vmatpush1.msra.mxu0 0.0
  %2332 = vmatprep.subr.mxu0 0.0
  %2333 = vmatpush1.msra.mxu0 0.0
  %2334 = vmatprep.subr.mxu0 0.0
  %2335 = vmatpush1.msra.mxu0 0.0
  %2336 = vmatprep.subr.mxu0 0.0
  %2337 = vmatpush1.msra.mxu0 0.0
  %2338 = vmatprep.subr.mxu0 0.0
  %2339 = vmatpush1.msra.mxu0 0.0
  %2340 = vmatprep.subr.mxu0 0.0
  %2341 = vmatpush1.msra.mxu0 0.0
  %2342 = vmatprep.subr.mxu0 0.0
  %2343 = vmatpush1.msra.mxu0 0.0
  %2344 = vmatprep.subr.mxu0 0.0
  %2345 = vmatpush1.msra.mxu0 0.0
  %2346 = vmatprep.subr.mxu0 0.0
  %2347 = vmatpush1.msra.mxu0 0.0
  %2348 = vmatprep.subr.mxu0 0.0
  %2349 = vmatpush1.msra.mxu0 0.0
  %2350 = vmatprep.subr.mxu0 0.0
  %2351 = vmatpush1.msra.mxu0 0.0
  %2352 = vmatprep.subr.mxu0 0.0
  %2353 = vmatpush1.msra.mxu0 0.0
  %2354 = vmatprep.subr.mxu0 0.0
  %2355 = vmatpush1.msra.mxu0 0.0
  %2356 = vmatprep.subr.mxu0 0.0
  %2357 = vmatpush1.msra.mxu0 0.0
  %2358 = vmatprep.subr.mxu0 0.0
  %2359 = vmatpush1.msra.mxu0 0.0
  %2360 = vmatprep.mubr.f32.mxu0 0.0
  %2361 = vmatmul.mubr.f32.gmra.mrb[0].mxu0 %v2291
  %v2362 = vpop.f32.mrb[0].mxu0
  %v2363 = vadd.f32 %v2114, %v2362
  %v2364 = vpop.f32.mrb[0].mxu0
  %v2365 = vadd.f32 %v2118, %v2364
  %2366 = vdwg.mxu0
  %2367 = vmatprep.subr.mxu0 0.0
  %2368 = vmatpush1.msra.mxu0 %v2063
  %2369 = vmatprep.subr.mxu0 0.0
  %2370 = vmatpush1.msra.mxu0 %v2066
  %2371 = vmatprep.subr.mxu0 0.0
  %2372 = vmatpush1.msra.mxu0 %v2069
  %2373 = vmatprep.subr.mxu0 0.0
  %2374 = vmatpush1.msra.mxu0 %v2072
  %2375 = vmatprep.subr.mxu0 0.0
  %2376 = vmatpush1.msra.mxu0 %v2075
  %2377 = vmatprep.subr.mxu0 0.0
  %2378 = vmatpush1.msra.mxu0 %v2078
  %2379 = vmatprep.subr.mxu0 0.0
  %2380 = vmatpush1.msra.mxu0 %v2081
  %2381 = vmatprep.subr.mxu0 0.0
  %2382 = vmatpush1.msra.mxu0 %v2084
  %2383 = vmatprep.subr.mxu0 0.0
  %2384 = vmatpush1.msra.mxu0 %v2087
  %2385 = vmatprep.subr.mxu0 0.0
  %2386 = vmatpush1.msra.mxu0 %v2090
  %2387 = vmatprep.subr.mxu0 0.0
  %2388 = vmatpush1.msra.mxu0 %v2093
  %2389 = vmatprep.subr.mxu0 0.0
  %2390 = vmatpush1.msra.mxu0 %v2096
  %2391 = vmatprep.subr.mxu0 0.0
  %2392 = vmatpush1.msra.mxu0 %v2099
  %2393 = vmatprep.subr.mxu0 0.0
  %2394 = vmatpush1.msra.mxu0 %v2102
  %2395 = vmatprep.subr.mxu0 0.0
  %2396 = vmatpush1.msra.mxu0 %v2105
  %2397 = vmatprep.subr.mxu0 0.0
  %2398 = vmatpush1.msra.mxu0 %v2108
  %2399 = vmatprep.subr.mxu0 0.0
  %2400 = vmatpush1.msra.mxu0 0.0
  %2401 = vmatprep.subr.mxu0 0.0
  %2402 = vmatpush1.msra.mxu0 0.0
  %2403 = vmatprep.subr.mxu0 0.0
  %2404 = vmatpush1.msra.mxu0 0.0
  %2405 = vmatprep.subr.mxu0 0.0
  %2406 = vmatpush1.msra.mxu0 0.0
  %2407 = vmatprep.subr.mxu0 0.0
  %2408 = vmatpush1.msra.mxu0 0.0
  %2409 = vmatprep.subr.mxu0 0.0
  %2410 = vmatpush1.msra.mxu0 0.0
  %2411 = vmatprep.subr.mxu0 0.0
  %2412 = vmatpush1.msra.mxu0 0.0
  %2413 = vmatprep.subr.mxu0 0.0
  %2414 = vmatpush1.msra.mxu0 0.0
  %2415 = vmatprep.subr.mxu0 0.0
  %2416 = vmatpush1.msra.mxu0 0.0
  %2417 = vmatprep.subr.mxu0 0.0
  %2418 = vmatpush1.msra.mxu0 0.0
  %2419 = vmatprep.subr.mxu0 0.0
  %2420 = vmatpush1.msra.mxu0 0.0
  %2421 = vmatprep.subr.mxu0 0.0
  %2422 = vmatpush1.msra.mxu0 0.0
  %2423 = vmatprep.subr.mxu0 0.0
  %2424 = vmatpush1.msra.mxu0 0.0
  %2425 = vmatprep.subr.mxu0 0.0
  %2426 = vmatpush1.msra.mxu0 0.0
  %2427 = vmatprep.subr.mxu0 0.0
  %2428 = vmatpush1.msra.mxu0 0.0
  %2429 = vmatprep.subr.mxu0 0.0
  %2430 = vmatpush1.msra.mxu0 0.0
  %2431 = vmatprep.mubr.f32.mxu0 0.0
  %2432 = vmatmul.mubr.f32.gmra.mrb[0].mxu0 %v2291
  %v2433 = vpop.f32.mrb[0].mxu0
  %v2434 = vadd.f32 %v2122, %v2433
  %v2435 = vpop.f32.mrb[0].mxu0
  %2436 = vdwg.mxu0
  %v2437 = vadd.f32 %v2293, %v2363
  %v2438 = vadd.f32 %v2294, %v2365
  %v2439 = vxor.u32 %v2437, 2147483648
  %v2440 = vxor.u32 %v2438, 2147483648
  %v2441 = vmul.f32 %v2439, 1.442695
  %v2442 = vpow.pop %v2441
  %v2443 = vmul.f32 %v2440, 1.442695
  %v2444 = vpow.pop %v2443
  %v2445 = vadd.f32 %v2442, 1.0
  %v2446 = vadd.f32 %v2444, 1.0
  %v2447 = vrcp.pop %v2445
  %v2448 = vmul.f32 1.0, %v2447
  %v2449 = vrcp.pop %v2446
  %v2450 = vmul.f32 1.0, %v2449
  %v2451 = vmul.f32 %v2448, %v2434
  %v2452 = vadd.f32 %v2295, %v2451
  %v2453 = vtanh.pop %v2452
  %v2454 = vsub.f32 %v2291, %v2453
  %v2455 = vmul.f32 %v2450, %v2454
  %v2456 = vadd.f32 %v2453, %v2455
  %2457 = vst [vmem:[%s693] sm:$0xff] %v2456
  %v2458 = vld [vmem:[%s697] sm:$0xff]
  %v2459 = vld [vmem:[%s697 + $0x8] sm:$0xff]
  %v2460 = vld [vmem:[%s697 + $0x10] sm:$0xff]
  %2461 = vmatprep.subr.mxu0 %v2062
  %2462 = vmatpush1.msra.mxu0 %v2061
  %2463 = vmatprep.subr.mxu0 %v2065
  %2464 = vmatpush1.msra.mxu0 %v2064
  %2465 = vmatprep.subr.mxu0 %v2068
  %2466 = vmatpush1.msra.mxu0 %v2067
  %2467 = vmatprep.subr.mxu0 %v2071
  %2468 = vmatpush1.msra.mxu0 %v2070
  %2469 = vmatprep.subr.mxu0 %v2074
  %2470 = vmatpush1.msra.mxu0 %v2073
  %2471 = vmatprep.subr.mxu0 %v2077
  %2472 = vmatpush1.msra.mxu0 %v2076
  %2473 = vmatprep.subr.mxu0 %v2080
  %2474 = vmatpush1.msra.mxu0 %v2079
  %2475 = vmatprep.subr.mxu0 %v2083
  %2476 = vmatpush1.msra.mxu0 %v2082
  %2477 = vmatprep.subr.mxu0 %v2086
  %2478 = vmatpush1.msra.mxu0 %v2085
  %2479 = vmatprep.subr.mxu0 %v2089
  %2480 = vmatpush1.msra.mxu0 %v2088
  %2481 = vmatprep.subr.mxu0 %v2092
  %2482 = vmatpush1.msra.mxu0 %v2091
  %2483 = vmatprep.subr.mxu0 %v2095
  %2484 = vmatpush1.msra.mxu0 %v2094
  %2485 = vmatprep.subr.mxu0 %v2098
  %2486 = vmatpush1.msra.mxu0 %v2097
  %2487 = vmatprep.subr.mxu0 %v2101
  %2488 = vmatpush1.msra.mxu0 %v2100
  %2489 = vmatprep.subr.mxu0 %v2104
  %2490 = vmatpush1.msra.mxu0 %v2103
  %2491 = vmatprep.subr.mxu0 %v2107
  %2492 = vmatpush1.msra.mxu0 %v2106
  %2493 = vmatprep.subr.mxu0 0.0
  %2494 = vmatpush1.msra.mxu0 0.0
  %2495 = vmatprep.subr.mxu0 0.0
  %2496 = vmatpush1.msra.mxu0 0.0
  %2497 = vmatprep.subr.mxu0 0.0
  %2498 = vmatpush1.msra.mxu0 0.0
  %2499 = vmatprep.subr.mxu0 0.0
  %2500 = vmatpush1.msra.mxu0 0.0
  %2501 = vmatprep.subr.mxu0 0.0
  %2502 = vmatpush1.msra.mxu0 0.0
  %2503 = vmatprep.subr.mxu0 0.0
  %2504 = vmatpush1.msra.mxu0 0.0
  %2505 = vmatprep.subr.mxu0 0.0
  %2506 = vmatpush1.msra.mxu0 0.0
  %2507 = vmatprep.subr.mxu0 0.0
  %2508 = vmatpush1.msra.mxu0 0.0
  %2509 = vmatprep.subr.mxu0 0.0
  %2510 = vmatpush1.msra.mxu0 0.0
  %2511 = vmatprep.subr.mxu0 0.0
  %2512 = vmatpush1.msra.mxu0 0.0
  %2513 = vmatprep.subr.mxu0 0.0
  %2514 = vmatpush1.msra.mxu0 0.0
  %2515 = vmatprep.subr.mxu0 0.0
  %2516 = vmatpush1.msra.mxu0 0.0
  %2517 = vmatprep.subr.mxu0 0.0
  %2518 = vmatpush1.msra.mxu0 0.0
  %2519 = vmatprep.subr.mxu0 0.0
  %2520 = vmatpush1.msra.mxu0 0.0
  %2521 = vmatprep.subr.mxu0 0.0
  %2522 = vmatpush1.msra.mxu0 0.0
  %2523 = vmatprep.subr.mxu0 0.0
  %2524 = vmatpush1.msra.mxu0 0.0
  %2525 = vmatprep.mubr.f32.mxu0 0.0
  %2526 = vmatmul.mubr.f32.gmra.mrb[0].mxu0 %v2456
  %v2527 = vpop.f32.mrb[0].mxu0
  %v2528 = vadd.f32 %v2114, %v2527
  %v2529 = vpop.f32.mrb[0].mxu0
  %v2530 = vadd.f32 %v2118, %v2529
  %2531 = vdwg.mxu0
  %2532 = vmatprep.subr.mxu0 0.0
  %2533 = vmatpush1.msra.mxu0 %v2063
  %2534 = vmatprep.subr.mxu0 0.0
  %2535 = vmatpush1.msra.mxu0 %v2066
  %2536 = vmatprep.subr.mxu0 0.0
  %2537 = vmatpush1.msra.mxu0 %v2069
  %2538 = vmatprep.subr.mxu0 0.0
  %2539 = vmatpush1.msra.mxu0 %v2072
  %2540 = vmatprep.subr.mxu0 0.0
  %2541 = vmatpush1.msra.mxu0 %v2075
  %2542 = vmatprep.subr.mxu0 0.0
  %2543 = vmatpush1.msra.mxu0 %v2078
  %2544 = vmatprep.subr.mxu0 0.0
  %2545 = vmatpush1.msra.mxu0 %v2081
  %2546 = vmatprep.subr.mxu0 0.0
  %2547 = vmatpush1.msra.mxu0 %v2084
  %2548 = vmatprep.subr.mxu0 0.0
  %2549 = vmatpush1.msra.mxu0 %v2087
  %2550 = vmatprep.subr.mxu0 0.0
  %2551 = vmatpush1.msra.mxu0 %v2090
  %2552 = vmatprep.subr.mxu0 0.0
  %2553 = vmatpush1.msra.mxu0 %v2093
  %2554 = vmatprep.subr.mxu0 0.0
  %2555 = vmatpush1.msra.mxu0 %v2096
  %2556 = vmatprep.subr.mxu0 0.0
  %2557 = vmatpush1.msra.mxu0 %v2099
  %2558 = vmatprep.subr.mxu0 0.0
  %2559 = vmatpush1.msra.mxu0 %v2102
  %2560 = vmatprep.subr.mxu0 0.0
  %2561 = vmatpush1.msra.mxu0 %v2105
  %2562 = vmatprep.subr.mxu0 0.0
  %2563 = vmatpush1.msra.mxu0 %v2108
  %2564 = vmatprep.subr.mxu0 0.0
  %2565 = vmatpush1.msra.mxu0 0.0
  %2566 = vmatprep.subr.mxu0 0.0
  %2567 = vmatpush1.msra.mxu0 0.0
  %2568 = vmatprep.subr.mxu0 0.0
  %2569 = vmatpush1.msra.mxu0 0.0
  %2570 = vmatprep.subr.mxu0 0.0
  %2571 = vmatpush1.msra.mxu0 0.0
  %2572 = vmatprep.subr.mxu0 0.0
  %2573 = vmatpush1.msra.mxu0 0.0
  %2574 = vmatprep.subr.mxu0 0.0
  %2575 = vmatpush1.msra.mxu0 0.0
  %2576 = vmatprep.subr.mxu0 0.0
  %2577 = vmatpush1.msra.mxu0 0.0
  %2578 = vmatprep.subr.mxu0 0.0
  %2579 = vmatpush1.msra.mxu0 0.0
  %2580 = vmatprep.subr.mxu0 0.0
  %2581 = vmatpush1.msra.mxu0 0.0
  %2582 = vmatprep.subr.mxu0 0.0
  %2583 = vmatpush1.msra.mxu0 0.0
  %2584 = vmatprep.subr.mxu0 0.0
  %2585 = vmatpush1.msra.mxu0 0.0
  %2586 = vmatprep.subr.mxu0 0.0
  %2587 = vmatpush1.msra.mxu0 0.0
  %2588 = vmatprep.subr.mxu0 0.0
  %2589 = vmatpush1.msra.mxu0 0.0
  %2590 = vmatprep.subr.mxu0 0.0
  %2591 = vmatpush1.msra.mxu0 0.0
  %2592 = vmatprep.subr.mxu0 0.0
  %2593 = vmatpush1.msra.mxu0 0.0
  %2594 = vmatprep.subr.mxu0 0.0
  %2595 = vmatpush1.msra.mxu0 0.0
  %2596 = vmatprep.mubr.f32.mxu0 0.0
  %2597 = vmatmul.mubr.f32.gmra.mrb[0].mxu0 %v2456
  %v2598 = vpop.f32.mrb[0].mxu0
  %v2599 = vadd.f32 %v2122, %v2598
  %v2600 = vpop.f32.mrb[0].mxu0
  %2601 = vdwg.mxu0
  %v2602 = vadd.f32 %v2458, %v2528
  %v2603 = vadd.f32 %v2459, %v2530
  %v2604 = vxor.u32 %v2602, 2147483648
  %v2605 = vxor.u32 %v2603, 2147483648
  %v2606 = vmul.f32 %v2604, 1.442695
  %v2607 = vpow.pop %v2606
  %v2608 = vmul.f32 %v2605, 1.442695
  %v2609 = vpow.pop %v2608
  %v2610 = vadd.f32 %v2607, 1.0
  %v2611 = vadd.f32 %v2609, 1.0
  %v2612 = vrcp.pop %v2610
  %v2613 = vmul.f32 1.0, %v2612
  %v2614 = vrcp.pop %v2611
  %v2615 = vmul.f32 1.0, %v2614
  %v2616 = vmul.f32 %v2613, %v2599
  %v2617 = vadd.f32 %v2460, %v2616
  %v2618 = vtanh.pop %v2617
  %v2619 = vsub.f32 %v2456, %v2618
  %v2620 = vmul.f32 %v2615, %v2619
  %v2621 = vadd.f32 %v2618, %v2620
  %2622 = vst [vmem:[%s862] sm:$0xff] %v2621
  %v2623 = vld [vmem:[%s866] sm:$0xff]
  %v2624 = vld [vmem:[%s866 + $0x8] sm:$0xff]
  %v2625 = vld [vmem:[%s866 + $0x10] sm:$0xff]
  %2626 = vmatprep.subr.mxu0 %v2062
  %2627 = vmatpush1.msra.mxu0 %v2061
  %2628 = vmatprep.subr.mxu0 %v2065
  %2629 = vmatpush1.msra.mxu0 %v2064
  %2630 = vmatprep.subr.mxu0 %v2068
  %2631 = vmatpush1.msra.mxu0 %v2067
  %2632 = vmatprep.subr.mxu0 %v2071
  %2633 = vmatpush1.msra.mxu0 %v2070
  %2634 = vmatprep.subr.mxu0 %v2074
  %2635 = vmatpush1.msra.mxu0 %v2073
  %2636 = vmatprep.subr.mxu0 %v2077
  %2637 = vmatpush1.msra.mxu0 %v2076
  %2638 = vmatprep.subr.mxu0 %v2080
  %2639 = vmatpush1.msra.mxu0 %v2079
  %2640 = vmatprep.subr.mxu0 %v2083
  %2641 = vmatpush1.msra.mxu0 %v2082
  %2642 = vmatprep.subr.mxu0 %v2086
  %2643 = vmatpush1.msra.mxu0 %v2085
  %2644 = vmatprep.subr.mxu0 %v2089
  %2645 = vmatpush1.msra.mxu0 %v2088
  %2646 = vmatprep.subr.mxu0 %v2092
  %2647 = vmatpush1.msra.mxu0 %v2091
  %2648 = vmatprep.subr.mxu0 %v2095
  %2649 = vmatpush1.msra.mxu0 %v2094
  %2650 = vmatprep.subr.mxu0 %v2098
  %2651 = vmatpush1.msra.mxu0 %v2097
  %2652 = vmatprep.subr.mxu0 %v2101
  %2653 = vmatpush1.msra.mxu0 %v2100
  %2654 = vmatprep.subr.mxu0 %v2104
  %2655 = vmatpush1.msra.mxu0 %v2103
  %2656 = vmatprep.subr.mxu0 %v2107
  %2657 = vmatpush1.msra.mxu0 %v2106
  %2658 = vmatprep.subr.mxu0 0.0
  %2659 = vmatpush1.msra.mxu0 0.0
  %2660 = vmatprep.subr.mxu0 0.0
  %2661 = vmatpush1.msra.mxu0 0.0
  %2662 = vmatprep.subr.mxu0 0.0
  %2663 = vmatpush1.msra.mxu0 0.0
  %2664 = vmatprep.subr.mxu0 0.0
  %2665 = vmatpush1.msra.mxu0 0.0
  %2666 = vmatprep.subr.mxu0 0.0
  %2667 = vmatpush1.msra.mxu0 0.0
  %2668 = vmatprep.subr.mxu0 0.0
  %2669 = vmatpush1.msra.mxu0 0.0
  %2670 = vmatprep.subr.mxu0 0.0
  %2671 = vmatpush1.msra.mxu0 0.0
  %2672 = vmatprep.subr.mxu0 0.0
  %2673 = vmatpush1.msra.mxu0 0.0
  %2674 = vmatprep.subr.mxu0 0.0
  %2675 = vmatpush1.msra.mxu0 0.0
  %2676 = vmatprep.subr.mxu0 0.0
  %2677 = vmatpush1.msra.mxu0 0.0
  %2678 = vmatprep.subr.mxu0 0.0
  %2679 = vmatpush1.msra.mxu0 0.0
  %2680 = vmatprep.subr.mxu0 0.0
  %2681 = vmatpush1.msra.mxu0 0.0
  %2682 = vmatprep.subr.mxu0 0.0
  %2683 = vmatpush1.msra.mxu0 0.0
  %2684 = vmatprep.subr.mxu0 0.0
  %2685 = vmatpush1.msra.mxu0 0.0
  %2686 = vmatprep.subr.mxu0 0.0
  %2687 = vmatpush1.msra.mxu0 0.0
  %2688 = vmatprep.subr.mxu0 0.0
  %2689 = vmatpush1.msra.mxu0 0.0
  %2690 = vmatprep.mubr.f32.mxu0 0.0
  %2691 = vmatmul.mubr.f32.gmra.mrb[0].mxu0 %v2621
  %v2692 = vpop.f32.mrb[0].mxu0
  %v2693 = vadd.f32 %v2114, %v2692
  %v2694 = vpop.f32.mrb[0].mxu0
  %v2695 = vadd.f32 %v2118, %v2694
  %2696 = vdwg.mxu0
  %2697 = vmatprep.subr.mxu0 0.0
  %2698 = vmatpush1.msra.mxu0 %v2063
  %2699 = vmatprep.subr.mxu0 0.0
  %2700 = vmatpush1.msra.mxu0 %v2066
  %2701 = vmatprep.subr.mxu0 0.0
  %2702 = vmatpush1.msra.mxu0 %v2069
  %2703 = vmatprep.subr.mxu0 0.0
  %2704 = vmatpush1.msra.mxu0 %v2072
  %2705 = vmatprep.subr.mxu0 0.0
  %2706 = vmatpush1.msra.mxu0 %v2075
  %2707 = vmatprep.subr.mxu0 0.0
  %2708 = vmatpush1.msra.mxu0 %v2078
  %2709 = vmatprep.subr.mxu0 0.0
  %2710 = vmatpush1.msra.mxu0 %v2081
  %2711 = vmatprep.subr.mxu0 0.0
  %2712 = vmatpush1.msra.mxu0 %v2084
  %2713 = vmatprep.subr.mxu0 0.0
  %2714 = vmatpush1.msra.mxu0 %v2087
  %2715 = vmatprep.subr.mxu0 0.0
  %2716 = vmatpush1.msra.mxu0 %v2090
  %2717 = vmatprep.subr.mxu0 0.0
  %2718 = vmatpush1.msra.mxu0 %v2093
  %2719 = vmatprep.subr.mxu0 0.0
  %2720 = vmatpush1.msra.mxu0 %v2096
  %2721 = vmatprep.subr.mxu0 0.0
  %2722 = vmatpush1.msra.mxu0 %v2099
  %2723 = vmatprep.subr.mxu0 0.0
  %2724 = vmatpush1.msra.mxu0 %v2102
  %2725 = vmatprep.subr.mxu0 0.0
  %2726 = vmatpush1.msra.mxu0 %v2105
  %2727 = vmatprep.subr.mxu0 0.0
  %2728 = vmatpush1.msra.mxu0 %v2108
  %2729 = vmatprep.subr.mxu0 0.0
  %2730 = vmatpush1.msra.mxu0 0.0
  %2731 = vmatprep.subr.mxu0 0.0
  %2732 = vmatpush1.msra.mxu0 0.0
  %2733 = vmatprep.subr.mxu0 0.0
  %2734 = vmatpush1.msra.mxu0 0.0
  %2735 = vmatprep.subr.mxu0 0.0
  %2736 = vmatpush1.msra.mxu0 0.0
  %2737 = vmatprep.subr.mxu0 0.0
  %2738 = vmatpush1.msra.mxu0 0.0
  %2739 = vmatprep.subr.mxu0 0.0
  %2740 = vmatpush1.msra.mxu0 0.0
  %2741 = vmatprep.subr.mxu0 0.0
  %2742 = vmatpush1.msra.mxu0 0.0
  %2743 = vmatprep.subr.mxu0 0.0
  %2744 = vmatpush1.msra.mxu0 0.0
  %2745 = vmatprep.subr.mxu0 0.0
  %2746 = vmatpush1.msra.mxu0 0.0
  %2747 = vmatprep.subr.mxu0 0.0
  %2748 = vmatpush1.msra.mxu0 0.0
  %2749 = vmatprep.subr.mxu0 0.0
  %2750 = vmatpush1.msra.mxu0 0.0
  %2751 = vmatprep.subr.mxu0 0.0
  %2752 = vmatpush1.msra.mxu0 0.0
  %2753 = vmatprep.subr.mxu0 0.0
  %2754 = vmatpush1.msra.mxu0 0.0
  %2755 = vmatprep.subr.mxu0 0.0
  %2756 = vmatpush1.msra.mxu0 0.0
  %2757 = vmatprep.subr.mxu0 0.0
  %2758 = vmatpush1.msra.mxu0 0.0
  %2759 = vmatprep.subr.mxu0 0.0
  %2760 = vmatpush1.msra.mxu0 0.0
  %2761 = vmatprep.mubr.f32.mxu0 0.0
  %2762 = vmatmul.mubr.f32.gmra.mrb[0].mxu0 %v2621
  %v2763 = vpop.f32.mrb[0].mxu0
  %v2764 = vadd.f32 %v2122, %v2763
  %v2765 = vpop.f32.mrb[0].mxu0
  %2766 = vdwg.mxu0
  %v2767 = vadd.f32 %v2623, %v2693
  %v2768 = vadd.f32 %v2624, %v2695
  %v2769 = vxor.u32 %v2767, 2147483648
  %v2770 = vxor.u32 %v2768, 2147483648
  %v2771 = vmul.f32 %v2769, 1.442695
  %v2772 = vpow.pop %v2771
  %v2773 = vmul.f32 %v2770, 1.442695
  %v2774 = vpow.pop %v2773
  %v2775 = vadd.f32 %v2772, 1.0
  %v2776 = vadd.f32 %v2774, 1.0
  %v2777 = vrcp.pop %v2775
  %v2778 = vmul.f32 1.0, %v2777
  %v2779 = vrcp.pop %v2776
  %v2780 = vmul.f32 1.0, %v2779
  %v2781 = vmul.f32 %v2778, %v2764
  %v2782 = vadd.f32 %v2625, %v2781
  %v2783 = vtanh.pop %v2782
  %v2784 = vsub.f32 %v2621, %v2783
  %v2785 = vmul.f32 %v2780, %v2784
  %v2786 = vadd.f32 %v2783, %v2785
  %2787 = vst [vmem:[%s1031] sm:$0xff] %v2786
  %v2788 = vld [vmem:[%s1035] sm:$0xff]
  %v2789 = vld [vmem:[%s1035 + $0x8] sm:$0xff]
  %v2790 = vld [vmem:[%s1035 + $0x10] sm:$0xff]
  %2791 = vmatprep.subr.mxu0 %v2062
  %2792 = vmatpush1.msra.mxu0 %v2061
  %2793 = vmatprep.subr.mxu0 %v2065
  %2794 = vmatpush1.msra.mxu0 %v2064
  %2795 = vmatprep.subr.mxu0 %v2068
  %2796 = vmatpush1.msra.mxu0 %v2067
  %2797 = vmatprep.subr.mxu0 %v2071
  %2798 = vmatpush1.msra.mxu0 %v2070
  %2799 = vmatprep.subr.mxu0 %v2074
  %2800 = vmatpush1.msra.mxu0 %v2073
  %2801 = vmatprep.subr.mxu0 %v2077
  %2802 = vmatpush1.msra.mxu0 %v2076
  %2803 = vmatprep.subr.mxu0 %v2080
  %2804 = vmatpush1.msra.mxu0 %v2079
  %2805 = vmatprep.subr.mxu0 %v2083
  %2806 = vmatpush1.msra.mxu0 %v2082
  %2807 = vmatprep.subr.mxu0 %v2086
  %2808 = vmatpush1.msra.mxu0 %v2085
  %2809 = vmatprep.subr.mxu0 %v2089
  %2810 = vmatpush1.msra.mxu0 %v2088
  %2811 = vmatprep.subr.mxu0 %v2092
  %2812 = vmatpush1.msra.mxu0 %v2091
  %2813 = vmatprep.subr.mxu0 %v2095
  %2814 = vmatpush1.msra.mxu0 %v2094
  %2815 = vmatprep.subr.mxu0 %v2098
  %2816 = vmatpush1.msra.mxu0 %v2097
  %2817 = vmatprep.subr.mxu0 %v2101
  %2818 = vmatpush1.msra.mxu0 %v2100
  %2819 = vmatprep.subr.mxu0 %v2104
  %2820 = vmatpush1.msra.mxu0 %v2103
  %2821 = vmatprep.subr.mxu0 %v2107
  %2822 = vmatpush1.msra.mxu0 %v2106
  %2823 = vmatprep.subr.mxu0 0.0
  %2824 = vmatpush1.msra.mxu0 0.0
  %2825 = vmatprep.subr.mxu0 0.0
  %2826 = vmatpush1.msra.mxu0 0.0
  %2827 = vmatprep.subr.mxu0 0.0
  %2828 = vmatpush1.msra.mxu0 0.0
  %2829 = vmatprep.subr.mxu0 0.0
  %2830 = vmatpush1.msra.mxu0 0.0
  %2831 = vmatprep.subr.mxu0 0.0
  %2832 = vmatpush1.msra.mxu0 0.0
  %2833 = vmatprep.subr.mxu0 0.0
  %2834 = vmatpush1.msra.mxu0 0.0
  %2835 = vmatprep.subr.mxu0 0.0
  %2836 = vmatpush1.msra.mxu0 0.0
  %2837 = vmatprep.subr.mxu0 0.0
  %2838 = vmatpush1.msra.mxu0 0.0
  %2839 = vmatprep.subr.mxu0 0.0
  %2840 = vmatpush1.msra.mxu0 0.0
  %2841 = vmatprep.subr.mxu0 0.0
  %2842 = vmatpush1.msra.mxu0 0.0
  %2843 = vmatprep.subr.mxu0 0.0
  %2844 = vmatpush1.msra.mxu0 0.0
  %2845 = vmatprep.subr.mxu0 0.0
  %2846 = vmatpush1.msra.mxu0 0.0
  %2847 = vmatprep.subr.mxu0 0.0
  %2848 = vmatpush1.msra.mxu0 0.0
  %2849 = vmatprep.subr.mxu0 0.0
  %2850 = vmatpush1.msra.mxu0 0.0
  %2851 = vmatprep.subr.mxu0 0.0
  %2852 = vmatpush1.msra.mxu0 0.0
  %2853 = vmatprep.subr.mxu0 0.0
  %2854 = vmatpush1.msra.mxu0 0.0
  %2855 = vmatprep.mubr.f32.mxu0 0.0
  %2856 = vmatmul.mubr.f32.gmra.mrb[0].mxu0 %v2786
  %v2857 = vpop.f32.mrb[0].mxu0
  %v2858 = vadd.f32 %v2114, %v2857
  %v2859 = vpop.f32.mrb[0].mxu0
  %v2860 = vadd.f32 %v2118, %v2859
  %2861 = vdwg.mxu0
  %2862 = vmatprep.subr.mxu0 0.0
  %2863 = vmatpush1.msra.mxu0 %v2063
  %2864 = vmatprep.subr.mxu0 0.0
  %2865 = vmatpush1.msra.mxu0 %v2066
  %2866 = vmatprep.subr.mxu0 0.0
  %2867 = vmatpush1.msra.mxu0 %v2069
  %2868 = vmatprep.subr.mxu0 0.0
  %2869 = vmatpush1.msra.mxu0 %v2072
  %2870 = vmatprep.subr.mxu0 0.0
  %2871 = vmatpush1.msra.mxu0 %v2075
  %2872 = vmatprep.subr.mxu0 0.0
  %2873 = vmatpush1.msra.mxu0 %v2078
  %2874 = vmatprep.subr.mxu0 0.0
  %2875 = vmatpush1.msra.mxu0 %v2081
  %2876 = vmatprep.subr.mxu0 0.0
  %2877 = vmatpush1.msra.mxu0 %v2084
  %2878 = vmatprep.subr.mxu0 0.0
  %2879 = vmatpush1.msra.mxu0 %v2087
  %2880 = vmatprep.subr.mxu0 0.0
  %2881 = vmatpush1.msra.mxu0 %v2090
  %2882 = vmatprep.subr.mxu0 0.0
  %2883 = vmatpush1.msra.mxu0 %v2093
  %2884 = vmatprep.subr.mxu0 0.0
  %2885 = vmatpush1.msra.mxu0 %v2096
  %2886 = vmatprep.subr.mxu0 0.0
  %2887 = vmatpush1.msra.mxu0 %v2099
  %2888 = vmatprep.subr.mxu0 0.0
  %2889 = vmatpush1.msra.mxu0 %v2102
  %2890 = vmatprep.subr.mxu0 0.0
  %2891 = vmatpush1.msra.mxu0 %v2105
  %2892 = vmatprep.subr.mxu0 0.0
  %2893 = vmatpush1.msra.mxu0 %v2108
  %2894 = vmatprep.subr.mxu0 0.0
  %2895 = vmatpush1.msra.mxu0 0.0
  %2896 = vmatprep.subr.mxu0 0.0
  %2897 = vmatpush1.msra.mxu0 0.0
  %2898 = vmatprep.subr.mxu0 0.0
  %2899 = vmatpush1.msra.mxu0 0.0
  %2900 = vmatprep.subr.mxu0 0.0
  %2901 = vmatpush1.msra.mxu0 0.0
  %2902 = vmatprep.subr.mxu0 0.0
  %2903 = vmatpush1.msra.mxu0 0.0
  %2904 = vmatprep.subr.mxu0 0.0
  %2905 = vmatpush1.msra.mxu0 0.0
  %2906 = vmatprep.subr.mxu0 0.0
  %2907 = vmatpush1.msra.mxu0 0.0
  %2908 = vmatprep.subr.mxu0 0.0
  %2909 = vmatpush1.msra.mxu0 0.0
  %2910 = vmatprep.subr.mxu0 0.0
  %2911 = vmatpush1.msra.mxu0 0.0
  %2912 = vmatprep.subr.mxu0 0.0
  %2913 = vmatpush1.msra.mxu0 0.0
  %2914 = vmatprep.subr.mxu0 0.0
  %2915 = vmatpush1.msra.mxu0 0.0
  %2916 = vmatprep.subr.mxu0 0.0
  %2917 = vmatpush1.msra.mxu0 0.0
  %2918 = vmatprep.subr.mxu0 0.0
  %2919 = vmatpush1.msra.mxu0 0.0
  %2920 = vmatprep.subr.mxu0 0.0
  %2921 = vmatpush1.msra.mxu0 0.0
  %2922 = vmatprep.subr.mxu0 0.0
  %2923 = vmatpush1.msra.mxu0 0.0
  %2924 = vmatprep.subr.mxu0 0.0
  %2925 = vmatpush1.msra.mxu0 0.0
  %2926 = vmatprep.mubr.f32.mxu0 0.0
  %2927 = vmatmul.mubr.f32.gmra.mrb[0].mxu0 %v2786
  %v2928 = vpop.f32.mrb[0].mxu0
  %v2929 = vadd.f32 %v2122, %v2928
  %v2930 = vpop.f32.mrb[0].mxu0
  %2931 = vdwg.mxu0
  %v2932 = vadd.f32 %v2788, %v2858
  %v2933 = vadd.f32 %v2789, %v2860
  %v2934 = vxor.u32 %v2932, 2147483648
  %v2935 = vxor.u32 %v2933, 2147483648
  %v2936 = vmul.f32 %v2934, 1.442695
  %v2937 = vpow.pop %v2936
  %v2938 = vmul.f32 %v2935, 1.442695
  %v2939 = vpow.pop %v2938
  %v2940 = vadd.f32 %v2937, 1.0
  %v2941 = vadd.f32 %v2939, 1.0
  %v2942 = vrcp.pop %v2940
  %v2943 = vmul.f32 1.0, %v2942
  %v2944 = vrcp.pop %v2941
  %v2945 = vmul.f32 1.0, %v2944
  %v2946 = vmul.f32 %v2943, %v2929
  %v2947 = vadd.f32 %v2790, %v2946
  %v2948 = vtanh.pop %v2947
  %v2949 = vsub.f32 %v2786, %v2948
  %v2950 = vmul.f32 %v2945, %v2949
  %v2951 = vadd.f32 %v2948, %v2950
  %2952 = vst [vmem:[%s1200] sm:$0xff] %v2951
  %v2953 = vld [vmem:[%s1204] sm:$0xff]
  %v2954 = vld [vmem:[%s1204 + $0x8] sm:$0xff]
  %v2955 = vld [vmem:[%s1204 + $0x10] sm:$0xff]
  %2956 = vmatprep.subr.mxu0 %v2062
  %2957 = vmatpush1.msra.mxu0 %v2061
  %2958 = vmatprep.subr.mxu0 %v2065
  %2959 = vmatpush1.msra.mxu0 %v2064
  %2960 = vmatprep.subr.mxu0 %v2068
  %2961 = vmatpush1.msra.mxu0 %v2067
  %2962 = vmatprep.subr.mxu0 %v2071
  %2963 = vmatpush1.msra.mxu0 %v2070
  %2964 = vmatprep.subr.mxu0 %v2074
  %2965 = vmatpush1.msra.mxu0 %v2073
  %2966 = vmatprep.subr.mxu0 %v2077
  %2967 = vmatpush1.msra.mxu0 %v2076
  %2968 = vmatprep.subr.mxu0 %v2080
  %2969 = vmatpush1.msra.mxu0 %v2079
  %2970 = vmatprep.subr.mxu0 %v2083
  %2971 = vmatpush1.msra.mxu0 %v2082
  %2972 = vmatprep.subr.mxu0 %v2086
  %2973 = vmatpush1.msra.mxu0 %v2085
  %2974 = vmatprep.subr.mxu0 %v2089
  %2975 = vmatpush1.msra.mxu0 %v2088
  %2976 = vmatprep.subr.mxu0 %v2092
  %2977 = vmatpush1.msra.mxu0 %v2091
  %2978 = vmatprep.subr.mxu0 %v2095
  %2979 = vmatpush1.msra.mxu0 %v2094
  %2980 = vmatprep.subr.mxu0 %v2098
  %2981 = vmatpush1.msra.mxu0 %v2097
  %2982 = vmatprep.subr.mxu0 %v2101
  %2983 = vmatpush1.msra.mxu0 %v2100
  %2984 = vmatprep.subr.mxu0 %v2104
  %2985 = vmatpush1.msra.mxu0 %v2103
  %2986 = vmatprep.subr.mxu0 %v2107
  %2987 = vmatpush1.msra.mxu0 %v2106
  %2988 = vmatprep.subr.mxu0 0.0
  %2989 = vmatpush1.msra.mxu0 0.0
  %2990 = vmatprep.subr.mxu0 0.0
  %2991 = vmatpush1.msra.mxu0 0.0
  %2992 = vmatprep.subr.mxu0 0.0
  %2993 = vmatpush1.msra.mxu0 0.0
  %2994 = vmatprep.subr.mxu0 0.0
  %2995 = vmatpush1.msra.mxu0 0.0
  %2996 = vmatprep.subr.mxu0 0.0
  %2997 = vmatpush1.msra.mxu0 0.0
  %2998 = vmatprep.subr.mxu0 0.0
  %2999 = vmatpush1.msra.mxu0 0.0
  %3000 = vmatprep.subr.mxu0 0.0
  %3001 = vmatpush1.msra.mxu0 0.0
  %3002 = vmatprep.subr.mxu0 0.0
  %3003 = vmatpush1.msra.mxu0 0.0
  %3004 = vmatprep.subr.mxu0 0.0
  %3005 = vmatpush1.msra.mxu0 0.0
  %3006 = vmatprep.subr.mxu0 0.0
  %3007 = vmatpush1.msra.mxu0 0.0
  %3008 = vmatprep.subr.mxu0 0.0
  %3009 = vmatpush1.msra.mxu0 0.0
  %3010 = vmatprep.subr.mxu0 0.0
  %3011 = vmatpush1.msra.mxu0 0.0
  %3012 = vmatprep.subr.mxu0 0.0
  %3013 = vmatpush1.msra.mxu0 0.0
  %3014 = vmatprep.subr.mxu0 0.0
  %3015 = vmatpush1.msra.mxu0 0.0
  %3016 = vmatprep.subr.mxu0 0.0
  %3017 = vmatpush1.msra.mxu0 0.0
  %3018 = vmatprep.subr.mxu0 0.0
  %3019 = vmatpush1.msra.mxu0 0.0
  %3020 = vmatprep.mubr.f32.mxu0 0.0
  %3021 = vmatmul.mubr.f32.gmra.mrb[0].mxu0 %v2951
  %v3022 = vpop.f32.mrb[0].mxu0
  %v3023 = vadd.f32 %v2114, %v3022
  %v3024 = vpop.f32.mrb[0].mxu0
  %v3025 = vadd.f32 %v2118, %v3024
  %3026 = vdwg.mxu0
  %3027 = vmatprep.subr.mxu0 0.0
  %3028 = vmatpush1.msra.mxu0 %v2063
  %3029 = vmatprep.subr.mxu0 0.0
  %3030 = vmatpush1.msra.mxu0 %v2066
  %3031 = vmatprep.subr.mxu0 0.0
  %3032 = vmatpush1.msra.mxu0 %v2069
  %3033 = vmatprep.subr.mxu0 0.0
  %3034 = vmatpush1.msra.mxu0 %v2072
  %3035 = vmatprep.subr.mxu0 0.0
  %3036 = vmatpush1.msra.mxu0 %v2075
  %3037 = vmatprep.subr.mxu0 0.0
  %3038 = vmatpush1.msra.mxu0 %v2078
  %3039 = vmatprep.subr.mxu0 0.0
  %3040 = vmatpush1.msra.mxu0 %v2081
  %3041 = vmatprep.subr.mxu0 0.0
  %3042 = vmatpush1.msra.mxu0 %v2084
  %3043 = vmatprep.subr.mxu0 0.0
  %3044 = vmatpush1.msra.mxu0 %v2087
  %3045 = vmatprep.subr.mxu0 0.0
  %3046 = vmatpush1.msra.mxu0 %v2090
  %3047 = vmatprep.subr.mxu0 0.0
  %3048 = vmatpush1.msra.mxu0 %v2093
  %3049 = vmatprep.subr.mxu0 0.0
  %3050 = vmatpush1.msra.mxu0 %v2096
  %3051 = vmatprep.subr.mxu0 0.0
  %3052 = vmatpush1.msra.mxu0 %v2099
  %3053 = vmatprep.subr.mxu0 0.0
  %3054 = vmatpush1.msra.mxu0 %v2102
  %3055 = vmatprep.subr.mxu0 0.0
  %3056 = vmatpush1.msra.mxu0 %v2105
  %3057 = vmatprep.subr.mxu0 0.0
  %3058 = vmatpush1.msra.mxu0 %v2108
  %3059 = vmatprep.subr.mxu0 0.0
  %3060 = vmatpush1.msra.mxu0 0.0
  %3061 = vmatprep.subr.mxu0 0.0
  %3062 = vmatpush1.msra.mxu0 0.0
  %3063 = vmatprep.subr.mxu0 0.0
  %3064 = vmatpush1.msra.mxu0 0.0
  %3065 = vmatprep.subr.mxu0 0.0
  %3066 = vmatpush1.msra.mxu0 0.0
  %3067 = vmatprep.subr.mxu0 0.0
  %3068 = vmatpush1.msra.mxu0 0.0
  %3069 = vmatprep.subr.mxu0 0.0
  %3070 = vmatpush1.msra.mxu0 0.0
  %3071 = vmatprep.subr.mxu0 0.0
  %3072 = vmatpush1.msra.mxu0 0.0
  %3073 = vmatprep.subr.mxu0 0.0
  %3074 = vmatpush1.msra.mxu0 0.0
  %3075 = vmatprep.subr.mxu0 0.0
  %3076 = vmatpush1.msra.mxu0 0.0
  %3077 = vmatprep.subr.mxu0 0.0
  %3078 = vmatpush1.msra.mxu0 0.0
  %3079 = vmatprep.subr.mxu0 0.0
  %3080 = vmatpush1.msra.mxu0 0.0
  %3081 = vmatprep.subr.mxu0 0.0
  %3082 = vmatpush1.msra.mxu0 0.0
  %3083 = vmatprep.subr.mxu0 0.0
  %3084 = vmatpush1.msra.mxu0 0.0
  %3085 = vmatprep.subr.mxu0 0.0
  %3086 = vmatpush1.msra.mxu0 0.0
  %3087 = vmatprep.subr.mxu0 0.0
  %3088 = vmatpush1.msra.mxu0 0.0
  %3089 = vmatprep.subr.mxu0 0.0
  %3090 = vmatpush1.msra.mxu0 0.0
  %3091 = vmatprep.mubr.f32.mxu0 0.0
  %3092 = vmatmul.mubr.f32.gmra.mrb[0].mxu0 %v2951
  %v3093 = vpop.f32.mrb[0].mxu0
  %v3094 = vadd.f32 %v2122, %v3093
  %v3095 = vpop.f32.mrb[0].mxu0
  %3096 = vdwg.mxu0
  %v3097 = vadd.f32 %v2953, %v3023
  %v3098 = vadd.f32 %v2954, %v3025
  %v3099 = vxor.u32 %v3097, 2147483648
  %v3100 = vxor.u32 %v3098, 2147483648
  %v3101 = vmul.f32 %v3099, 1.442695
  %v3102 = vpow.pop %v3101
  %v3103 = vmul.f32 %v3100, 1.442695
  %v3104 = vpow.pop %v3103
  %v3105 = vadd.f32 %v3102, 1.0
  %v3106 = vadd.f32 %v3104, 1.0
  %v3107 = vrcp.pop %v3105
  %v3108 = vmul.f32 1.0, %v3107
  %v3109 = vrcp.pop %v3106
  %v3110 = vmul.f32 1.0, %v3109
  %v3111 = vmul.f32 %v3108, %v3094
  %v3112 = vadd.f32 %v2955, %v3111
  %v3113 = vtanh.pop %v3112
  %v3114 = vsub.f32 %v2951, %v3113
  %v3115 = vmul.f32 %v3110, %v3114
  %v3116 = vadd.f32 %v3113, %v3115
  %3117 = vst [vmem:[%s1369] sm:$0xff] %v3116
  %v3118 = vld [vmem:[%s1373] sm:$0xff]
  %v3119 = vld [vmem:[%s1373 + $0x8] sm:$0xff]
  %v3120 = vld [vmem:[%s1373 + $0x10] sm:$0xff]
  %3121 = vmatprep.subr.mxu0 %v2062
  %3122 = vmatpush1.msra.mxu0 %v2061
  %3123 = vmatprep.subr.mxu0 %v2065
  %3124 = vmatpush1.msra.mxu0 %v2064
  %3125 = vmatprep.subr.mxu0 %v2068
  %3126 = vmatpush1.msra.mxu0 %v2067
  %3127 = vmatprep.subr.mxu0 %v2071
  %3128 = vmatpush1.msra.mxu0 %v2070
  %3129 = vmatprep.subr.mxu0 %v2074
  %3130 = vmatpush1.msra.mxu0 %v2073
  %3131 = vmatprep.subr.mxu0 %v2077
  %3132 = vmatpush1.msra.mxu0 %v2076
  %3133 = vmatprep.subr.mxu0 %v2080
  %3134 = vmatpush1.msra.mxu0 %v2079
  %3135 = vmatprep.subr.mxu0 %v2083
  %3136 = vmatpush1.msra.mxu0 %v2082
  %3137 = vmatprep.subr.mxu0 %v2086
  %3138 = vmatpush1.msra.mxu0 %v2085
  %3139 = vmatprep.subr.mxu0 %v2089
  %3140 = vmatpush1.msra.mxu0 %v2088
  %3141 = vmatprep.subr.mxu0 %v2092
  %3142 = vmatpush1.msra.mxu0 %v2091
  %3143 = vmatprep.subr.mxu0 %v2095
  %3144 = vmatpush1.msra.mxu0 %v2094
  %3145 = vmatprep.subr.mxu0 %v2098
  %3146 = vmatpush1.msra.mxu0 %v2097
  %3147 = vmatprep.subr.mxu0 %v2101
  %3148 = vmatpush1.msra.mxu0 %v2100
  %3149 = vmatprep.subr.mxu0 %v2104
  %3150 = vmatpush1.msra.mxu0 %v2103
  %3151 = vmatprep.subr.mxu0 %v2107
  %3152 = vmatpush1.msra.mxu0 %v2106
  %3153 = vmatprep.subr.mxu0 0.0
  %3154 = vmatpush1.msra.mxu0 0.0
  %3155 = vmatprep.subr.mxu0 0.0
  %3156 = vmatpush1.msra.mxu0 0.0
  %3157 = vmatprep.subr.mxu0 0.0
  %3158 = vmatpush1.msra.mxu0 0.0
  %3159 = vmatprep.subr.mxu0 0.0
  %3160 = vmatpush1.msra.mxu0 0.0
  %3161 = vmatprep.subr.mxu0 0.0
  %3162 = vmatpush1.msra.mxu0 0.0
  %3163 = vmatprep.subr.mxu0 0.0
  %3164 = vmatpush1.msra.mxu0 0.0
  %3165 = vmatprep.subr.mxu0 0.0
  %3166 = vmatpush1.msra.mxu0 0.0
  %3167 = vmatprep.subr.mxu0 0.0
  %3168 = vmatpush1.msra.mxu0 0.0
  %3169 = vmatprep.subr.mxu0 0.0
  %3170 = vmatpush1.msra.mxu0 0.0
  %3171 = vmatprep.subr.mxu0 0.0
  %3172 = vmatpush1.msra.mxu0 0.0
  %3173 = vmatprep.subr.mxu0 0.0
  %3174 = vmatpush1.msra.mxu0 0.0
  %3175 = vmatprep.subr.mxu0 0.0
  %3176 = vmatpush1.msra.mxu0 0.0
  %3177 = vmatprep.subr.mxu0 0.0
  %3178 = vmatpush1.msra.mxu0 0.0
  %3179 = vmatprep.subr.mxu0 0.0
  %3180 = vmatpush1.msra.mxu0 0.0
  %3181 = vmatprep.subr.mxu0 0.0
  %3182 = vmatpush1.msra.mxu0 0.0
  %3183 = vmatprep.subr.mxu0 0.0
  %3184 = vmatpush1.msra.mxu0 0.0
  %3185 = vmatprep.mubr.f32.mxu0 0.0
  %3186 = vmatmul.mubr.f32.gmra.mrb[0].mxu0 %v3116
  %v3187 = vpop.f32.mrb[0].mxu0
  %v3188 = vadd.f32 %v2114, %v3187
  %v3189 = vpop.f32.mrb[0].mxu0
  %v3190 = vadd.f32 %v2118, %v3189
  %3191 = vdwg.mxu0
  %3192 = vmatprep.subr.mxu0 0.0
  %3193 = vmatpush1.msra.mxu0 %v2063
  %3194 = vmatprep.subr.mxu0 0.0
  %3195 = vmatpush1.msra.mxu0 %v2066
  %3196 = vmatprep.subr.mxu0 0.0
  %3197 = vmatpush1.msra.mxu0 %v2069
  %3198 = vmatprep.subr.mxu0 0.0
  %3199 = vmatpush1.msra.mxu0 %v2072
  %3200 = vmatprep.subr.mxu0 0.0
  %3201 = vmatpush1.msra.mxu0 %v2075
  %3202 = vmatprep.subr.mxu0 0.0
  %3203 = vmatpush1.msra.mxu0 %v2078
  %3204 = vmatprep.subr.mxu0 0.0
  %3205 = vmatpush1.msra.mxu0 %v2081
  %3206 = vmatprep.subr.mxu0 0.0
  %3207 = vmatpush1.msra.mxu0 %v2084
  %3208 = vmatprep.subr.mxu0 0.0
  %3209 = vmatpush1.msra.mxu0 %v2087
  %3210 = vmatprep.subr.mxu0 0.0
  %3211 = vmatpush1.msra.mxu0 %v2090
  %3212 = vmatprep.subr.mxu0 0.0
  %3213 = vmatpush1.msra.mxu0 %v2093
  %3214 = vmatprep.subr.mxu0 0.0
  %3215 = vmatpush1.msra.mxu0 %v2096
  %3216 = vmatprep.subr.mxu0 0.0
  %3217 = vmatpush1.msra.mxu0 %v2099
  %3218 = vmatprep.subr.mxu0 0.0
  %3219 = vmatpush1.msra.mxu0 %v2102
  %3220 = vmatprep.subr.mxu0 0.0
  %3221 = vmatpush1.msra.mxu0 %v2105
  %3222 = vmatprep.subr.mxu0 0.0
  %3223 = vmatpush1.msra.mxu0 %v2108
  %3224 = vmatprep.subr.mxu0 0.0
  %3225 = vmatpush1.msra.mxu0 0.0
  %3226 = vmatprep.subr.mxu0 0.0
  %3227 = vmatpush1.msra.mxu0 0.0
  %3228 = vmatprep.subr.mxu0 0.0
  %3229 = vmatpush1.msra.mxu0 0.0
  %3230 = vmatprep.subr.mxu0 0.0
  %3231 = vmatpush1.msra.mxu0 0.0
  %3232 = vmatprep.subr.mxu0 0.0
  %3233 = vmatpush1.msra.mxu0 0.0
  %3234 = vmatprep.subr.mxu0 0.0
  %3235 = vmatpush1.msra.mxu0 0.0
  %3236 = vmatprep.subr.mxu0 0.0
  %3237 = vmatpush1.msra.mxu0 0.0
  %3238 = vmatprep.subr.mxu0 0.0
  %3239 = vmatpush1.msra.mxu0 0.0
  %3240 = vmatprep.subr.mxu0 0.0
  %3241 = vmatpush1.msra.mxu0 0.0
  %3242 = vmatprep.subr.mxu0 0.0
  %3243 = vmatpush1.msra.mxu0 0.0
  %3244 = vmatprep.subr.mxu0 0.0
  %3245 = vmatpush1.msra.mxu0 0.0
  %3246 = vmatprep.subr.mxu0 0.0
  %3247 = vmatpush1.msra.mxu0 0.0
  %3248 = vmatprep.subr.mxu0 0.0
  %3249 = vmatpush1.msra.mxu0 0.0
  %3250 = vmatprep.subr.mxu0 0.0
  %3251 = vmatpush1.msra.mxu0 0.0
  %3252 = vmatprep.subr.mxu0 0.0
  %3253 = vmatpush1.msra.mxu0 0.0
  %3254 = vmatprep.subr.mxu0 0.0
  %3255 = vmatpush1.msra.mxu0 0.0
  %3256 = vmatprep.mubr.f32.mxu0 0.0
  %3257 = vmatmul.mubr.f32.gmra.mrb[0].mxu0 %v3116
  %v3258 = vpop.f32.mrb[0].mxu0
  %v3259 = vadd.f32 %v2122, %v3258
  %v3260 = vpop.f32.mrb[0].mxu0
  %3261 = vdwg.mxu0
  %v3262 = vadd.f32 %v3118, %v3188
  %v3263 = vadd.f32 %v3119, %v3190
  %v3264 = vxor.u32 %v3262, 2147483648
  %v3265 = vxor.u32 %v3263, 2147483648
  %v3266 = vmul.f32 %v3264, 1.442695
  %v3267 = vpow.pop %v3266
  %v3268 = vmul.f32 %v3265, 1.442695
  %v3269 = vpow.pop %v3268
  %v3270 = vadd.f32 %v3267, 1.0
  %v3271 = vadd.f32 %v3269, 1.0
  %v3272 = vrcp.pop %v3270
  %v3273 = vmul.f32 1.0, %v3272
  %v3274 = vrcp.pop %v3271
  %v3275 = vmul.f32 1.0, %v3274
  %v3276 = vmul.f32 %v3273, %v3259
  %v3277 = vadd.f32 %v3120, %v3276
  %v3278 = vtanh.pop %v3277
  %v3279 = vsub.f32 %v3116, %v3278
  %v3280 = vmul.f32 %v3275, %v3279
  %v3281 = vadd.f32 %v3278, %v3280
  %3282 = vst [vmem:[%s1538] sm:$0xff] %v3281
  %v3283 = vld [vmem:[%s1542] sm:$0xff]
  %v3284 = vld [vmem:[%s1542 + $0x8] sm:$0xff]
  %v3285 = vld [vmem:[%s1542 + $0x10] sm:$0xff]
  %3286 = vmatprep.subr.mxu0 %v2062
  %3287 = vmatpush1.msra.mxu0 %v2061
  %3288 = vmatprep.subr.mxu0 %v2065
  %3289 = vmatpush1.msra.mxu0 %v2064
  %3290 = vmatprep.subr.mxu0 %v2068
  %3291 = vmatpush1.msra.mxu0 %v2067
  %3292 = vmatprep.subr.mxu0 %v2071
  %3293 = vmatpush1.msra.mxu0 %v2070
  %3294 = vmatprep.subr.mxu0 %v2074
  %3295 = vmatpush1.msra.mxu0 %v2073
  %3296 = vmatprep.subr.mxu0 %v2077
  %3297 = vmatpush1.msra.mxu0 %v2076
  %3298 = vmatprep.subr.mxu0 %v2080
  %3299 = vmatpush1.msra.mxu0 %v2079
  %3300 = vmatprep.subr.mxu0 %v2083
  %3301 = vmatpush1.msra.mxu0 %v2082
  %3302 = vmatprep.subr.mxu0 %v2086
  %3303 = vmatpush1.msra.mxu0 %v2085
  %3304 = vmatprep.subr.mxu0 %v2089
  %3305 = vmatpush1.msra.mxu0 %v2088
  %3306 = vmatprep.subr.mxu0 %v2092
  %3307 = vmatpush1.msra.mxu0 %v2091
  %3308 = vmatprep.subr.mxu0 %v2095
  %3309 = vmatpush1.msra.mxu0 %v2094
  %3310 = vmatprep.subr.mxu0 %v2098
  %3311 = vmatpush1.msra.mxu0 %v2097
  %3312 = vmatprep.subr.mxu0 %v2101
  %3313 = vmatpush1.msra.mxu0 %v2100
  %3314 = vmatprep.subr.mxu0 %v2104
  %3315 = vmatpush1.msra.mxu0 %v2103
  %3316 = vmatprep.subr.mxu0 %v2107
  %3317 = vmatpush1.msra.mxu0 %v2106
  %3318 = vmatprep.subr.mxu0 0.0
  %3319 = vmatpush1.msra.mxu0 0.0
  %3320 = vmatprep.subr.mxu0 0.0
  %3321 = vmatpush1.msra.mxu0 0.0
  %3322 = vmatprep.subr.mxu0 0.0
  %3323 = vmatpush1.msra.mxu0 0.0
  %3324 = vmatprep.subr.mxu0 0.0
  %3325 = vmatpush1.msra.mxu0 0.0
  %3326 = vmatprep.subr.mxu0 0.0
  %3327 = vmatpush1.msra.mxu0 0.0
  %3328 = vmatprep.subr.mxu0 0.0
  %3329 = vmatpush1.msra.mxu0 0.0
  %3330 = vmatprep.subr.mxu0 0.0
  %3331 = vmatpush1.msra.mxu0 0.0
  %3332 = vmatprep.subr.mxu0 0.0
  %3333 = vmatpush1.msra.mxu0 0.0
  %3334 = vmatprep.subr.mxu0 0.0
  %3335 = vmatpush1.msra.mxu0 0.0
  %3336 = vmatprep.subr.mxu0 0.0
  %3337 = vmatpush1.msra.mxu0 0.0
  %3338 = vmatprep.subr.mxu0 0.0
  %3339 = vmatpush1.msra.mxu0 0.0
  %3340 = vmatprep.subr.mxu0 0.0
  %3341 = vmatpush1.msra.mxu0 0.0
  %3342 = vmatprep.subr.mxu0 0.0
  %3343 = vmatpush1.msra.mxu0 0.0
  %3344 = vmatprep.subr.mxu0 0.0
  %3345 = vmatpush1.msra.mxu0 0.0
  %3346 = vmatprep.subr.mxu0 0.0
  %3347 = vmatpush1.msra.mxu0 0.0
  %3348 = vmatprep.subr.mxu0 0.0
  %3349 = vmatpush1.msra.mxu0 0.0
  %3350 = vmatprep.mubr.f32.mxu0 0.0
  %3351 = vmatmul.mubr.f32.gmra.mrb[0].mxu0 %v3281
  %v3352 = vpop.f32.mrb[0].mxu0
  %v3353 = vadd.f32 %v2114, %v3352
  %v3354 = vpop.f32.mrb[0].mxu0
  %v3355 = vadd.f32 %v2118, %v3354
  %3356 = vdwg.mxu0
  %3357 = vmatprep.subr.mxu0 0.0
  %3358 = vmatpush1.msra.mxu0 %v2063
  %3359 = vmatprep.subr.mxu0 0.0
  %3360 = vmatpush1.msra.mxu0 %v2066
  %3361 = vmatprep.subr.mxu0 0.0
  %3362 = vmatpush1.msra.mxu0 %v2069
  %3363 = vmatprep.subr.mxu0 0.0
  %3364 = vmatpush1.msra.mxu0 %v2072
  %3365 = vmatprep.subr.mxu0 0.0
  %3366 = vmatpush1.msra.mxu0 %v2075
  %3367 = vmatprep.subr.mxu0 0.0
  %3368 = vmatpush1.msra.mxu0 %v2078
  %3369 = vmatprep.subr.mxu0 0.0
  %3370 = vmatpush1.msra.mxu0 %v2081
  %3371 = vmatprep.subr.mxu0 0.0
  %3372 = vmatpush1.msra.mxu0 %v2084
  %3373 = vmatprep.subr.mxu0 0.0
  %3374 = vmatpush1.msra.mxu0 %v2087
  %3375 = vmatprep.subr.mxu0 0.0
  %3376 = vmatpush1.msra.mxu0 %v2090
  %3377 = vmatprep.subr.mxu0 0.0
  %3378 = vmatpush1.msra.mxu0 %v2093
  %3379 = vmatprep.subr.mxu0 0.0
  %3380 = vmatpush1.msra.mxu0 %v2096
  %3381 = vmatprep.subr.mxu0 0.0
  %3382 = vmatpush1.msra.mxu0 %v2099
  %3383 = vmatprep.subr.mxu0 0.0
  %3384 = vmatpush1.msra.mxu0 %v2102
  %3385 = vmatprep.subr.mxu0 0.0
  %3386 = vmatpush1.msra.mxu0 %v2105
  %3387 = vmatprep.subr.mxu0 0.0
  %3388 = vmatpush1.msra.mxu0 %v2108
  %3389 = vmatprep.subr.mxu0 0.0
  %3390 = vmatpush1.msra.mxu0 0.0
  %3391 = vmatprep.subr.mxu0 0.0
  %3392 = vmatpush1.msra.mxu0 0.0
  %3393 = vmatprep.subr.mxu0 0.0
  %3394 = vmatpush1.msra.mxu0 0.0
  %3395 = vmatprep.subr.mxu0 0.0
  %3396 = vmatpush1.msra.mxu0 0.0
  %3397 = vmatprep.subr.mxu0 0.0
  %3398 = vmatpush1.msra.mxu0 0.0
  %3399 = vmatprep.subr.mxu0 0.0
  %3400 = vmatpush1.msra.mxu0 0.0
  %3401 = vmatprep.subr.mxu0 0.0
  %3402 = vmatpush1.msra.mxu0 0.0
  %3403 = vmatprep.subr.mxu0 0.0
  %3404 = vmatpush1.msra.mxu0 0.0
  %3405 = vmatprep.subr.mxu0 0.0
  %3406 = vmatpush1.msra.mxu0 0.0
  %3407 = vmatprep.subr.mxu0 0.0
  %3408 = vmatpush1.msra.mxu0 0.0
  %3409 = vmatprep.subr.mxu0 0.0
  %3410 = vmatpush1.msra.mxu0 0.0
  %3411 = vmatprep.subr.mxu0 0.0
  %3412 = vmatpush1.msra.mxu0 0.0
  %3413 = vmatprep.subr.mxu0 0.0
  %3414 = vmatpush1.msra.mxu0 0.0
  %3415 = vmatprep.subr.mxu0 0.0
  %3416 = vmatpush1.msra.mxu0 0.0
  %3417 = vmatprep.subr.mxu0 0.0
  %3418 = vmatpush1.msra.mxu0 0.0
  %3419 = vmatprep.subr.mxu0 0.0
  %3420 = vmatpush1.msra.mxu0 0.0
  %3421 = vmatprep.mubr.f32.mxu0 0.0
  %3422 = vmatmul.mubr.f32.gmra.mrb[0].mxu0 %v3281
  %v3423 = vpop.f32.mrb[0].mxu0
  %v3424 = vadd.f32 %v2122, %v3423
  %v3425 = vpop.f32.mrb[0].mxu0
  %3426 = vdwg.mxu0
  %v3427 = vadd.f32 %v3283, %v3353
  %v3428 = vadd.f32 %v3284, %v3355
  %v3429 = vxor.u32 %v3427, 2147483648
  %v3430 = vxor.u32 %v3428, 2147483648
  %v3431 = vmul.f32 %v3429, 1.442695
  %v3432 = vpow.pop %v3431
  %v3433 = vmul.f32 %v3430, 1.442695
  %v3434 = vpow.pop %v3433
  %v3435 = vadd.f32 %v3432, 1.0
  %v3436 = vadd.f32 %v3434, 1.0
  %v3437 = vrcp.pop %v3435
  %v3438 = vmul.f32 1.0, %v3437
  %v3439 = vrcp.pop %v3436
  %v3440 = vmul.f32 1.0, %v3439
  %v3441 = vmul.f32 %v3438, %v3424
  %v3442 = vadd.f32 %v3285, %v3441
  %v3443 = vtanh.pop %v3442
  %v3444 = vsub.f32 %v3281, %v3443
  %v3445 = vmul.f32 %v3440, %v3444
  %v3446 = vadd.f32 %v3443, %v3445
  %3447 = vst [vmem:[%s1707] sm:$0xff] %v3446
  %3448 = vst [vmem:[%s2126] sm:$0xff] %v3446
  %v3449 = vld [vmem:[#allocation3] sm:$0xff]
  %v3450 = vld [vmem:[#allocation3 + $0x8] sm:$0xff]
  %v3451 = vld [vmem:[#allocation3 + $0x10] sm:$0xff]
  %v3452 = vld [vmem:[#allocation3 + $0x18] sm:$0xff]
  %v3453 = vld [vmem:[#allocation3 + $0x20] sm:$0xff]
  %v3454 = vld [vmem:[#allocation3 + $0x28] sm:$0xff]
  %v3455 = vld [vmem:[#allocation3 + $0x30] sm:$0xff]
  %v3456 = vld [vmem:[#allocation3 + $0x38] sm:$0xff]
  %v3457 = vpack.c.bf16 %v3450, %v3449
  %v3458 = vpack.c.bf16 %v3452, %v3451
  %v3459 = vpack.c.bf16 %v3454, %v3453
  %v3460 = vpack.c.bf16 %v3456, %v3455
  %v3461 = vld [vmem:[%s10] sm:$0xf]
  %v3462 = vld [vmem:[%s10 + $0x4] sm:$0xf]
  %v3463 = vld [vmem:[%s10 + $0x8] sm:$0xf]
  %v3464 = vld [vmem:[%s10 + $0xc] sm:$0xf]
  %v3465 = vld [vmem:[%s10 + $0x10] sm:$0xf]
  %v3466 = vld [vmem:[%s10 + $0x14] sm:$0xf]
  %v3467 = vld [vmem:[%s10 + $0x18] sm:$0xf]
  %v3468 = vld [vmem:[%s10 + $0x1c] sm:$0xf]
  %v3469 = vld [vmem:[%s10 + $0x20] sm:$0xf]
  %v3470 = vld [vmem:[%s10 + $0x24] sm:$0xf]
  %v3471 = vld [vmem:[%s10 + $0x28] sm:$0xf]
  %v3472 = vld [vmem:[%s10 + $0x2c] sm:$0xf]
  %v3473 = vld [vmem:[%s10 + $0x30] sm:$0xf]
  %v3474 = vld [vmem:[%s10 + $0x34] sm:$0xf]
  %v3475 = vld [vmem:[%s10 + $0x38] sm:$0xf]
  %v3476 = vld [vmem:[%s10 + $0x3c] sm:$0xf]
  %v3477 = vld [vmem:[%s11] sm:$0x1]
  %v3479 = vlaneseq
  %v3480 = vshrl.u32 %v3479, 7
  %v3481 = vsub.s32 0, %v3480
  %v3482 = vrot.slane %v3477, %v3481
  %v3500 = vunpack.c.l.b16 %v3461
  %v3501 = vunpack.c.l.b16 %v3462
  %v3502 = vunpack.c.l.b16 %v3463
  %v3503 = vunpack.c.l.b16 %v3464
  %v3504 = vunpack.c.l.b16 %v3465
  %v3505 = vunpack.c.l.b16 %v3466
  %v3506 = vunpack.c.l.b16 %v3467
  %v3507 = vunpack.c.l.b16 %v3468
  %v3508 = vunpack.c.l.b16 %v3469
  %v3509 = vunpack.c.l.b16 %v3470
  %v3510 = vunpack.c.l.b16 %v3471
  %v3511 = vunpack.c.l.b16 %v3472
  %v3512 = vunpack.c.l.b16 %v3473
  %v3513 = vunpack.c.l.b16 %v3474
  %v3514 = vunpack.c.l.b16 %v3475
  %v3515 = vunpack.c.l.b16 %v3476
  %v3516 = vpack.c.b16 %v3501, %v3500
  %v3517 = vpack.c.b16 %v3503, %v3502
  %v3518 = vpack.c.b16 %v3505, %v3504
  %v3519 = vpack.c.b16 %v3507, %v3506
  %v3520 = vpack.c.b16 %v3509, %v3508
  %v3521 = vpack.c.b16 %v3511, %v3510
  %v3522 = vpack.c.b16 %v3513, %v3512
  %v3523 = vpack.c.b16 %v3515, %v3514
  %3532 = vmatprep.subr.bf16.mxu0 0
  %3533 = vmatpush1.bf16.msra.mxu0 %v3516
  %3534 = vmatprep.subr.bf16.mxu0 0
  %3535 = vmatpush1.bf16.msra.mxu0 %v3517
  %3536 = vmatprep.subr.bf16.mxu0 0
  %3537 = vmatpush1.bf16.msra.mxu0 %v3518
  %3538 = vmatprep.subr.bf16.mxu0 0
  %3539 = vmatpush1.bf16.msra.mxu0 %v3519
  %3540 = vmatprep.subr.bf16.mxu0 0
  %3541 = vmatpush1.bf16.msra.mxu0 %v3520
  %3542 = vmatprep.subr.bf16.mxu0 0
  %3543 = vmatpush1.bf16.msra.mxu0 %v3521
  %3544 = vmatprep.subr.bf16.mxu0 0
  %3545 = vmatpush1.bf16.msra.mxu0 %v3522
  %3546 = vmatprep.subr.bf16.mxu0 0
  %3547 = vmatpush1.bf16.msra.mxu0 %v3523
  %3548 = vmatprep.subr.bf16.mxu0 0
  %3549 = vmatpush1.bf16.msra.mxu0 0
  %3550 = vmatprep.subr.bf16.mxu0 0
  %3551 = vmatpush1.bf16.msra.mxu0 0
  %3552 = vmatprep.subr.bf16.mxu0 0
  %3553 = vmatpush1.bf16.msra.mxu0 0
  %3554 = vmatprep.subr.bf16.mxu0 0
  %3555 = vmatpush1.bf16.msra.mxu0 0
  %3556 = vmatprep.subr.bf16.mxu0 0
  %3557 = vmatpush1.bf16.msra.mxu0 0
  %3558 = vmatprep.subr.bf16.mxu0 0
  %3559 = vmatpush1.bf16.msra.mxu0 0
  %3560 = vmatprep.subr.bf16.mxu0 0
  %3561 = vmatpush1.bf16.msra.mxu0 0
  %3562 = vmatprep.subr.bf16.mxu0 0
  %3563 = vmatpush1.bf16.msra.mxu0 0
  %3564 = vmatprep.mubr.bf16.mxu0 0
  %3565 = vmatmul.mubr.bf16.gmra.mrb[0].mxu0 %v3457
  %v3566 = vpop.f32.mrb[0].mxu0
  %v3567 = vadd.f32 %v3482, %v3566
  %v3568 = vpop.f32.mrb[0].mxu0
  %v3569 = vpop.f32.mrb[0].mxu0
  %v3570 = vadd.f32 %v3482, %v3569
  %v3571 = vpop.f32.mrb[0].mxu0
  %3572 = vmatprep.mubr.bf16.mxu0 0
  %3573 = vmatmul.mubr.bf16.gmra.mrb[0].mxu0 %v3458
  %v3574 = vpop.f32.mrb[0].mxu0
  %v3575 = vadd.f32 %v3482, %v3574
  %v3576 = vpop.f32.mrb[0].mxu0
  %v3577 = vpop.f32.mrb[0].mxu0
  %v3578 = vadd.f32 %v3482, %v3577
  %v3579 = vpop.f32.mrb[0].mxu0
  %3580 = vmatprep.mubr.bf16.mxu0 0
  %3581 = vmatmul.mubr.bf16.gmra.mrb[0].mxu0 %v3459
  %v3582 = vpop.f32.mrb[0].mxu0
  %v3583 = vadd.f32 %v3482, %v3582
  %v3584 = vpop.f32.mrb[0].mxu0
  %v3585 = vpop.f32.mrb[0].mxu0
  %v3586 = vadd.f32 %v3482, %v3585
  %v3587 = vpop.f32.mrb[0].mxu0
  %3588 = vmatprep.mubr.bf16.mxu0 0
  %3589 = vmatmul.mubr.bf16.gmra.mrb[0].mxu0 %v3460
  %v3590 = vpop.f32.mrb[0].mxu0
  %v3591 = vadd.f32 %v3482, %v3590
  %v3592 = vpop.f32.mrb[0].mxu0
  %v3593 = vpop.f32.mrb[0].mxu0
  %v3594 = vadd.f32 %v3482, %v3593
  %v3595 = vpop.f32.mrb[0].mxu0
  %3596 = vdwg.mxu0
  %3597 = vst [vmem:[%s12] sm:$0xff] %v3567
  %3598 = vst [vmem:[%s12 + $0x8] sm:$0xff] %v3570
  %3599 = vst [vmem:[%s12 + $0x10] sm:$0xff] %v3575
  %3600 = vst [vmem:[%s12 + $0x18] sm:$0xff] %v3578
  %3601 = vst [vmem:[%s12 + $0x20] sm:$0xff] %v3583
  %3602 = vst [vmem:[%s12 + $0x28] sm:$0xff] %v3586
  %3603 = vst [vmem:[%s12 + $0x30] sm:$0xff] %v3591
  %3604 = vst [vmem:[%s12 + $0x38] sm:$0xff] %v3594
  // Predicated region
  $region54: #{gru_forward.1} parent=0 // pred_check
    %p3605 = pneg %p44
  $region55: #{gru_forward.1} parent=0 // pred_check_branch
    %3607 = sbr.rel (%p3605) target = $region57
  $region56: #{gru_forward.1} parent=0 // pred_region
    %v3608 = vld [vmem:[#allocation2] sm:$0xff]
    %v3609 = vld [vmem:[#allocation2 + $0x8] sm:$0xff]
    %3610 = vst [vmem:[%s13] sm:$0xff] %v3608
    %3611 = vst [vmem:[%s13 + $0x8] sm:$0xff] %v3609
  $region57: #{gru_forward.1} parent=0 // pred_fallthru
    _
  // Predicated region
  $region58: #{gru_forward.1} parent=0 // pred_check
    _
  $region59: #{gru_forward.1} parent=0 // pred_check_branch
    %3613 = sbr.rel (0) target = $region61
  $region60: #{gru_forward.1} parent=0 // pred_region
    _
  $region61: #{gru_forward.1} parent=0 // pred_fallthru
    _
  // Predicated region
  $region62: #{gru_forward.1} parent=0 // pred_check
    _
  $region63: #{gru_forward.1} parent=0 // pred_check_branch
    %3615 = sbr.rel (0) target = $region65
  $region64: #{gru_forward.1} parent=0 // pred_region
    _
  $region65: #{gru_forward.1} parent=0 // pred_fallthru
    _
  // Predicated region
  $region66: #{gru_forward.1} parent=0 // pred_check
    _
  $region67: #{gru_forward.1} parent=0 // pred_check_branch
    %3617 = sbr.rel (0) target = $region69
  $region68: #{gru_forward.1} parent=0 // pred_region
    _
  $region69: #{gru_forward.1} parent=0 // pred_fallthru
    _
  // Predicated region
  $region70: #{gru_forward.1} parent=0 // pred_check
    _
  $region71: #{gru_forward.1} parent=0 // pred_check_branch
    %3619 = sbr.rel (0) target = $region73
  $region72: #{gru_forward.1} parent=0 // pred_region
    _
  $region73: #{gru_forward.1} parent=0 // pred_fallthru
    _

</llo_original>
